<compile_context>
chip_gen: v7x
topology: tpu7x:2x2x1
jax: 0.10.0
libtpu: 0.0.40
codegen_flags: <defaults>
</compile_context>

<pallas_src>
import jax
import jax.numpy as jnp
from jax import lax
from jax.experimental import pallas as pl
from jax.experimental.pallas import tpu as pltpu

# ---- small config consistent with the module signature ----
NUM_LAYERS = 2
D_MODEL = 32
N_HEAD = 4
HEAD_DIM = D_MODEL // N_HEAD
D_FF = 64
LONG_SEQ = 6
NUM_SHORT = 2
SEQ = LONG_SEQ + NUM_SHORT            # 8
BATCH = 2
EPS = 1e-5                            # PyTorch LayerNorm default eps

# ---- packed parameter slab layout (single (TOTAL_ROWS, 128) f32 buffer) ----
LANES = 128
R_QKVO = 0        # rows +0  .. +31 : cols 0:96  = [Wq*scale | Wk | Wv], 96:128 = Wo
R_W1 = 32         # rows +32 .. +63 : cols 0:64  = W1
R_W2 = 64         # rows +64 .. +127: cols 0:32  = W2
R_VEC = 128       # rows +128.. +135: row0 = [bqkv | bo], row1 = [n1w|n1b|n2w|n2b], row2 = [b1|b2]
LAYER_ROWS = 136
GLOBAL_ROW = NUM_LAYERS * LAYER_ROWS  # 272: row0 = [nw | nb | pad]
TOTAL_ROWS = GLOBAL_ROW + 8           # 280

# batched-over-(batch*head) dot_general dimension numbers
_DN_SCORES = (((2,), (2,)), ((0,), (0,)))  # (BH,S,hd) x (BH,S,hd) -> (BH,S,S)
_DN_CTX = (((2,), (1,)), ((0,), (0,)))     # (BH,S,S)  x (BH,S,hd) -> (BH,S,hd)


def _layer_norm(x, w, b):
    mu = jnp.mean(x, axis=-1, keepdims=True)
    var = jnp.mean(jnp.square(x - mu), axis=-1, keepdims=True)
    return (x - mu) * lax.rsqrt(var + EPS) * w + b


def _split_heads(qkv, col_off):
    """(B*S, 96) slab + column offset -> (B*H, S, hd), batch index = b*H + h."""
    blocks = []
    for b in range(BATCH):
        for h in range(N_HEAD):
            blocks.append(qkv[b * SEQ:(b + 1) * SEQ,
                              col_off + h * HEAD_DIM: col_off + (h + 1) * HEAD_DIM])
    return jnp.stack(blocks, axis=0)                      # (8, 8, 8)


def _merge_heads(ctx):
    """(B*H, S, hd) -> (B*S, H*hd) with heads concatenated along lanes."""
    rows = []
    for b in range(BATCH):
        rows.append(jnp.concatenate(
            [ctx[b * N_HEAD + h] for h in range(N_HEAD)], axis=1))  # (S, H*hd)
    return jnp.concatenate(rows, axis=0)                            # (B*S, H*hd)


def fused_encoder_kernel(x_ref, p_ref, out_ref):
    """All layers + whole batch in one invocation.

    x_ref: (B*S, E) f32 activations.  p_ref: (TOTAL_ROWS, 128) packed params.
    """
    x = x_ref[...]                                        # (16, 32)

    gvec = p_ref[GLOBAL_ROW:GLOBAL_ROW + 8, :]            # aligned (8, 128) load
    nw = gvec[0:1, 0:D_MODEL]                             # shared outer LayerNorm
    nb = gvec[0:1, D_MODEL:2 * D_MODEL]

    for l in range(NUM_LAYERS):                           # static unroll over fused layers
        base = l * LAYER_ROWS

        blk_qkvo = p_ref[base + R_QKVO:base + R_QKVO + D_MODEL, :]       # (32, 128)
        wqkv = blk_qkvo[:, 0:3 * D_MODEL]                                # (32, 96)
        wo = blk_qkvo[:, 3 * D_MODEL:4 * D_MODEL]                        # (32, 32)
        w1 = p_ref[base + R_W1:base + R_W1 + D_MODEL, 0:D_FF]            # (32, 64)
        w2 = p_ref[base + R_W2:base + R_W2 + D_FF, 0:D_MODEL]            # (64, 32)
        vecs = p_ref[base + R_VEC:base + R_VEC + 8, :]                   # (8, 128)
        bqkv = vecs[0:1, 0:3 * D_MODEL]
        bo = vecs[0:1, 3 * D_MODEL:4 * D_MODEL]
        n1w = vecs[1:2, 0:32]
        n1b = vecs[1:2, 32:64]
        n2w = vecs[1:2, 64:96]
        n2b = vecs[1:2, 96:128]
        b1 = vecs[2:3, 0:D_FF]
        b2 = vecs[2:3, D_FF:D_FF + D_MODEL]

        # ---- fused QKV projection on the full (B*S, E) slab (scale folded) ----
        qkv = jnp.dot(x, wqkv, preferred_element_type=jnp.float32) + bqkv  # (16, 96)

        # ---- attention, batched over the fused (batch*head) = 8 axis ----
        q3 = _split_heads(qkv, 0)                          # (8, 8, 8)
        k3 = _split_heads(qkv, D_MODEL)
        v3 = _split_heads(qkv, 2 * D_MODEL)

        s = lax.dot_general(q3, k3, _DN_SCORES,
                            preferred_element_type=jnp.float32)           # (8, 8, 8)
        s = s - jnp.max(s, axis=-1, keepdims=True)
        p = jnp.exp(s)
        p = p * pl.reciprocal(jnp.sum(p, axis=-1, keepdims=True), approx=True)
        ctx = lax.dot_general(p, v3, _DN_CTX,
                              preferred_element_type=jnp.float32)         # (8, 8, 8)

        # ---- single out-projection on the merged (B*S, H*hd) ctx ----
        attn = jnp.dot(_merge_heads(ctx), wo,
                       preferred_element_type=jnp.float32) + bo           # (16, 32)

        # ---- post-norm encoder layer epilogue + FFN (full 16-row slab) ----
        src = _layer_norm(x + attn, n1w, n1b)
        h1 = jnp.maximum(
            jnp.dot(src, w1, preferred_element_type=jnp.float32) + b1, 0.0)
        ff = jnp.dot(h1, w2, preferred_element_type=jnp.float32) + b2
        src = _layer_norm(src + ff, n2w, n2b)

        # ---- outer residual + shared LayerNorm:  x = norm(x + layer(x)) ----
        x = _layer_norm(x + src, nw, nb)

    out_ref[...] = x


@jax.jit
def fused_encoder(x, param_slab):
    bs = BATCH * SEQ
    x2d = x.reshape(bs, D_MODEL)                          # free reshape on HBM
    out2d = pl.pallas_call(
        fused_encoder_kernel,
        out_shape=jax.ShapeDtypeStruct((bs, D_MODEL), jnp.float32),
        in_specs=[pl.BlockSpec(memory_space=pltpu.MemorySpace.VMEM),
                  pl.BlockSpec(memory_space=pltpu.MemorySpace.VMEM)],
        out_specs=pl.BlockSpec(memory_space=pltpu.MemorySpace.VMEM),
    )(x2d, param_slab)
    return out2d.reshape(BATCH, SEQ, D_MODEL)


# ----------------------------- parameters -----------------------------------
def init_params(key):
    """Base (un-packed) parameters; convention: y = x @ w_t + b."""
    base_layers = []
    E, F = D_MODEL, D_FF
    for _ in range(NUM_LAYERS):
        key, *ks = jax.random.split(key, 13)
        wq = jax.random.normal(ks[0], (E, E), jnp.float32) * 0.08
        wk = jax.random.normal(ks[1], (E, E), jnp.float32) * 0.08
        wv = jax.random.normal(ks[2], (E, E), jnp.float32) * 0.08
        bq = jax.random.normal(ks[3], (E,), jnp.float32) * 0.02
        bk = jax.random.normal(ks[4], (E,), jnp.float32) * 0.02
        bv = jax.random.normal(ks[5], (E,), jnp.float32) * 0.02
        wo = jax.random.normal(ks[6], (E, E), jnp.float32) * 0.08
        bo = jax.random.normal(ks[7], (E,), jnp.float32) * 0.02
        w1 = jax.random.normal(ks[8], (F, E), jnp.float32) * 0.08
        b1 = jax.random.normal(ks[9], (F,), jnp.float32) * 0.02
        w2 = jax.random.normal(ks[10], (E, F), jnp.float32) * 0.08
        b2 = jax.random.normal(ks[11], (E,), jnp.float32) * 0.02
        base_layers.append(dict(
            wq_t=wq.T, wk_t=wk.T, wv_t=wv.T, bq=bq, bk=bk, bv=bv,
            wo_t=wo.T, bo=bo,
            n1w=jnp.ones((E,), jnp.float32), n1b=jnp.zeros((E,), jnp.float32),
            w1_t=w1.T, b1=b1, w2_t=w2.T, b2=b2,
            n2w=jnp.ones((E,), jnp.float32), n2b=jnp.zeros((E,), jnp.float32),
        ))
    nw = jnp.ones((D_MODEL,), jnp.float32)   # shared outer LayerNorm (PyTorch init)
    nb = jnp.zeros((D_MODEL,), jnp.float32)
    return base_layers, nw, nb


def pack_params(base_layers, nw, nb):
    """Pack every weight/bias/norm into one lane-dense (TOTAL_ROWS, 128) slab.

    Per layer block (LAYER_ROWS rows):
      rows  0..31 : cols 0:96  = [Wq*scale | Wk | Wv]   cols 96:128 = Wo
      rows 32..63 : cols 0:64  = W1
      rows 64..127: cols 0:32  = W2
      row  128    : cols 0:96  = [bq*scale | bk | bv]   cols 96:128 = bo
      row  129    : [n1w | n1b | n2w | n2b]
      row  130    : cols 0:64 = b1, cols 64:96 = b2
    Global row GLOBAL_ROW: [nw | nb | pad].
    """
    scale = 1.0 / (HEAD_DIM ** 0.5)
    slab = jnp.zeros((TOTAL_ROWS, LANES), jnp.float32)
    for l, lp in enumerate(base_layers):
        base = l * LAYER_ROWS
        wqkv = jnp.concatenate([lp["wq_t"] * scale, lp["wk_t"], lp["wv_t"]], axis=1)
        slab = slab.at[base + R_QKVO:base + R_QKVO + D_MODEL, 0:3 * D_MODEL].set(wqkv)
        slab = slab.at[base + R_QKVO:base + R_QKVO + D_MODEL,
                       3 * D_MODEL:4 * D_MODEL].set(lp["wo_t"])
        slab = slab.at[base + R_W1:base + R_W1 + D_MODEL, 0:D_FF].set(lp["w1_t"])
        slab = slab.at[base + R_W2:base + R_W2 + D_FF, 0:D_MODEL].set(lp["w2_t"])
        bqkv = jnp.concatenate([lp["bq"] * scale, lp["bk"], lp["bv"]], axis=0)
        slab = slab.at[base + R_VEC, 0:3 * D_MODEL].set(bqkv)
        slab = slab.at[base + R_VEC, 3 * D_MODEL:4 * D_MODEL].set(lp["bo"])
        slab = slab.at[base + R_VEC + 1, 0:32].set(lp["n1w"])
        slab = slab.at[base + R_VEC + 1, 32:64].set(lp["n1b"])
        slab = slab.at[base + R_VEC + 1, 64:96].set(lp["n2w"])
        slab = slab.at[base + R_VEC + 1, 96:128].set(lp["n2b"])
        slab = slab.at[base + R_VEC + 2, 0:D_FF].set(lp["b1"])
        slab = slab.at[base + R_VEC + 2, D_FF:D_FF + D_MODEL].set(lp["b2"])
    slab = slab.at[GLOBAL_ROW, 0:D_MODEL].set(nw)
    slab = slab.at[GLOBAL_ROW, D_MODEL:2 * D_MODEL].set(nb)
    return slab


# ----------------------------- pure-JAX reference ----------------------------
def ref_forward(x, base_layers, nw, nb):
    hd = HEAD_DIM

    def ln(v, w, b):
        mu = v.mean(-1, keepdims=True)
        var = ((v - mu) ** 2).mean(-1, keepdims=True)
        return (v - mu) / jnp.sqrt(var + EPS) * w + b

    def split_heads(t):
        N, S, _ = t.shape
        return t.reshape(N, S, N_HEAD, hd).transpose(0, 2, 1, 3)

    for lp in base_layers:
        xin = x
        q = x @ lp["wq_t"] + lp["bq"]
        k = x @ lp["wk_t"] + lp["bk"]
        v = x @ lp["wv_t"] + lp["bv"]
        qh, kh, vh = split_heads(q), split_heads(k), split_heads(v)
        s = jnp.einsum("nhqd,nhkd->nhqk", qh, kh) / jnp.sqrt(float(hd))
        p = jax.nn.softmax(s, axis=-1)
        ctx = jnp.einsum("nhqk,nhkd->nhqd", p, vh).transpose(0, 2, 1, 3).reshape(x.shape)
        attn = ctx @ lp["wo_t"] + lp["bo"]
        src = ln(x + attn, lp["n1w"], lp["n1b"])
        ff = jnp.maximum(src @ lp["w1_t"] + lp["b1"], 0.0) @ lp["w2_t"] + lp["b2"]
        src = ln(src + ff, lp["n2w"], lp["n2b"])
        x = ln(xin + src, nw, nb)
    return x


if __name__ == "__main__":
    key = jax.random.PRNGKey(0)
    kx, kp = jax.random.split(key)
    x = jax.random.normal(kx, (BATCH, SEQ, D_MODEL), jnp.float32)
    base_layers, nw, nb = init_params(kp)
    param_slab = pack_params(base_layers, nw, nb)

    out = fused_encoder(x, param_slab)
    out = jax.block_until_ready(out)

    ref = ref_forward(x, base_layers, nw, nb)
    assert out.shape == (BATCH, SEQ, D_MODEL)
    max_err = float(jnp.max(jnp.abs(out - ref)))
    assert jnp.allclose(out, ref, atol=2e-3, rtol=2e-3), max_err
    print("KERNEL_OK")
</pallas_src>

<mosaic_0001>
module attributes {stable_mosaic.version = 11 : i64} {
  func.func @fused_encoder_kernel(%arg0: memref<16x32xf32, #tpu.memory_space<vmem>>, %arg1: memref<280x128xf32, #tpu.memory_space<vmem>>, %arg2: memref<16x32xf32, #tpu.memory_space<vmem>>) attributes {dimension_semantics = [], scalar_prefetch = 0 : i64, scratch_operands = 0 : i64, tpu.core_type = #tpu.core_type<tc>} {
    %c0 = arith.constant 0 : index
    %c0_0 = arith.constant 0 : index
    %0 = vector.load %arg0[%c0, %c0_0] : memref<16x32xf32, #tpu.memory_space<vmem>>, vector<16x32xf32>
    %c272 = arith.constant 272 : index
    %c0_1 = arith.constant 0 : index
    %1 = vector.load %arg1[%c272, %c0_1] : memref<280x128xf32, #tpu.memory_space<vmem>>, vector<8x128xf32>
    %2 = vector.extract_strided_slice %1 {offsets = [0, 0], sizes = [1, 32], strides = [1, 1]} : vector<8x128xf32> to vector<1x32xf32>
    %3 = vector.extract_strided_slice %1 {offsets = [0, 32], sizes = [1, 32], strides = [1, 1]} : vector<8x128xf32> to vector<1x32xf32>
    %c0_2 = arith.constant 0 : index
    %c0_3 = arith.constant 0 : index
    %4 = vector.load %arg1[%c0_2, %c0_3] : memref<280x128xf32, #tpu.memory_space<vmem>>, vector<32x128xf32>
    %5 = vector.extract_strided_slice %4 {offsets = [0, 0], sizes = [32, 96], strides = [1, 1]} : vector<32x128xf32> to vector<32x96xf32>
    %6 = vector.extract_strided_slice %4 {offsets = [0, 96], sizes = [32, 32], strides = [1, 1]} : vector<32x128xf32> to vector<32x32xf32>
    %c32 = arith.constant 32 : index
    %c0_4 = arith.constant 0 : index
    %7 = vector.load %arg1[%c32, %c0_4] : memref<280x128xf32, #tpu.memory_space<vmem>>, vector<32x64xf32>
    %c64 = arith.constant 64 : index
    %c0_5 = arith.constant 0 : index
    %8 = vector.load %arg1[%c64, %c0_5] : memref<280x128xf32, #tpu.memory_space<vmem>>, vector<64x32xf32>
    %c128 = arith.constant 128 : index
    %c0_6 = arith.constant 0 : index
    %9 = vector.load %arg1[%c128, %c0_6] : memref<280x128xf32, #tpu.memory_space<vmem>>, vector<8x128xf32>
    %10 = vector.extract_strided_slice %9 {offsets = [0, 0], sizes = [1, 96], strides = [1, 1]} : vector<8x128xf32> to vector<1x96xf32>
    %11 = vector.extract_strided_slice %9 {offsets = [0, 96], sizes = [1, 32], strides = [1, 1]} : vector<8x128xf32> to vector<1x32xf32>
    %12 = vector.extract_strided_slice %9 {offsets = [1, 0], sizes = [1, 32], strides = [1, 1]} : vector<8x128xf32> to vector<1x32xf32>
    %13 = vector.extract_strided_slice %9 {offsets = [1, 32], sizes = [1, 32], strides = [1, 1]} : vector<8x128xf32> to vector<1x32xf32>
    %14 = vector.extract_strided_slice %9 {offsets = [1, 64], sizes = [1, 32], strides = [1, 1]} : vector<8x128xf32> to vector<1x32xf32>
    %15 = vector.extract_strided_slice %9 {offsets = [1, 96], sizes = [1, 32], strides = [1, 1]} : vector<8x128xf32> to vector<1x32xf32>
    %16 = vector.extract_strided_slice %9 {offsets = [2, 0], sizes = [1, 64], strides = [1, 1]} : vector<8x128xf32> to vector<1x64xf32>
    %17 = vector.extract_strided_slice %9 {offsets = [2, 64], sizes = [1, 32], strides = [1, 1]} : vector<8x128xf32> to vector<1x32xf32>
    %cst = arith.constant dense<0.000000e+00> : vector<16x96xf32>
    %18 = tpu.matmul %0, %5, %cst {dimension_numbers = #tpu.dot_dimension_numbers<[1], [0], [0], [1], [0, 0, 1, 1], [], []>} : vector<16x32xf32>, vector<32x96xf32>, vector<16x96xf32> -> vector<16x96xf32>
    %19 = vector.broadcast %10 : vector<1x96xf32> to vector<16x96xf32>
    %20 = arith.addf %18, %19 : vector<16x96xf32>
    %21 = vector.extract_strided_slice %20 {offsets = [0, 0], sizes = [8, 8], strides = [1, 1]} : vector<16x96xf32> to vector<8x8xf32>
    %22 = vector.extract_strided_slice %20 {offsets = [0, 8], sizes = [8, 8], strides = [1, 1]} : vector<16x96xf32> to vector<8x8xf32>
    %23 = vector.extract_strided_slice %20 {offsets = [0, 16], sizes = [8, 8], strides = [1, 1]} : vector<16x96xf32> to vector<8x8xf32>
    %24 = vector.extract_strided_slice %20 {offsets = [0, 24], sizes = [8, 8], strides = [1, 1]} : vector<16x96xf32> to vector<8x8xf32>
    %25 = vector.extract_strided_slice %20 {offsets = [8, 0], sizes = [8, 8], strides = [1, 1]} : vector<16x96xf32> to vector<8x8xf32>
    %26 = vector.extract_strided_slice %20 {offsets = [8, 8], sizes = [8, 8], strides = [1, 1]} : vector<16x96xf32> to vector<8x8xf32>
    %27 = vector.extract_strided_slice %20 {offsets = [8, 16], sizes = [8, 8], strides = [1, 1]} : vector<16x96xf32> to vector<8x8xf32>
    %28 = vector.extract_strided_slice %20 {offsets = [8, 24], sizes = [8, 8], strides = [1, 1]} : vector<16x96xf32> to vector<8x8xf32>
    %29 = vector.shape_cast %21 : vector<8x8xf32> to vector<1x8x8xf32>
    %30 = vector.shape_cast %22 : vector<8x8xf32> to vector<1x8x8xf32>
    %31 = vector.shape_cast %23 : vector<8x8xf32> to vector<1x8x8xf32>
    %32 = vector.shape_cast %24 : vector<8x8xf32> to vector<1x8x8xf32>
    %33 = vector.shape_cast %25 : vector<8x8xf32> to vector<1x8x8xf32>
    %34 = vector.shape_cast %26 : vector<8x8xf32> to vector<1x8x8xf32>
    %35 = vector.shape_cast %27 : vector<8x8xf32> to vector<1x8x8xf32>
    %36 = vector.shape_cast %28 : vector<8x8xf32> to vector<1x8x8xf32>
    %37 = tpu.concatenate %29, %30, %31, %32, %33, %34, %35, %36 in 0 : vector<1x8x8xf32>, vector<1x8x8xf32>, vector<1x8x8xf32>, vector<1x8x8xf32>, vector<1x8x8xf32>, vector<1x8x8xf32>, vector<1x8x8xf32>, vector<1x8x8xf32> -> vector<8x8x8xf32>
    %38 = vector.extract_strided_slice %20 {offsets = [0, 32], sizes = [8, 8], strides = [1, 1]} : vector<16x96xf32> to vector<8x8xf32>
    %39 = vector.extract_strided_slice %20 {offsets = [0, 40], sizes = [8, 8], strides = [1, 1]} : vector<16x96xf32> to vector<8x8xf32>
    %40 = vector.extract_strided_slice %20 {offsets = [0, 48], sizes = [8, 8], strides = [1, 1]} : vector<16x96xf32> to vector<8x8xf32>
    %41 = vector.extract_strided_slice %20 {offsets = [0, 56], sizes = [8, 8], strides = [1, 1]} : vector<16x96xf32> to vector<8x8xf32>
    %42 = vector.extract_strided_slice %20 {offsets = [8, 32], sizes = [8, 8], strides = [1, 1]} : vector<16x96xf32> to vector<8x8xf32>
    %43 = vector.extract_strided_slice %20 {offsets = [8, 40], sizes = [8, 8], strides = [1, 1]} : vector<16x96xf32> to vector<8x8xf32>
    %44 = vector.extract_strided_slice %20 {offsets = [8, 48], sizes = [8, 8], strides = [1, 1]} : vector<16x96xf32> to vector<8x8xf32>
    %45 = vector.extract_strided_slice %20 {offsets = [8, 56], sizes = [8, 8], strides = [1, 1]} : vector<16x96xf32> to vector<8x8xf32>
    %46 = vector.shape_cast %38 : vector<8x8xf32> to vector<1x8x8xf32>
    %47 = vector.shape_cast %39 : vector<8x8xf32> to vector<1x8x8xf32>
    %48 = vector.shape_cast %40 : vector<8x8xf32> to vector<1x8x8xf32>
    %49 = vector.shape_cast %41 : vector<8x8xf32> to vector<1x8x8xf32>
    %50 = vector.shape_cast %42 : vector<8x8xf32> to vector<1x8x8xf32>
    %51 = vector.shape_cast %43 : vector<8x8xf32> to vector<1x8x8xf32>
    %52 = vector.shape_cast %44 : vector<8x8xf32> to vector<1x8x8xf32>
    %53 = vector.shape_cast %45 : vector<8x8xf32> to vector<1x8x8xf32>
    %54 = tpu.concatenate %46, %47, %48, %49, %50, %51, %52, %53 in 0 : vector<1x8x8xf32>, vector<1x8x8xf32>, vector<1x8x8xf32>, vector<1x8x8xf32>, vector<1x8x8xf32>, vector<1x8x8xf32>, vector<1x8x8xf32>, vector<1x8x8xf32> -> vector<8x8x8xf32>
    %55 = vector.extract_strided_slice %20 {offsets = [0, 64], sizes = [8, 8], strides = [1, 1]} : vector<16x96xf32> to vector<8x8xf32>
    %56 = vector.extract_strided_slice %20 {offsets = [0, 72], sizes = [8, 8], strides = [1, 1]} : vector<16x96xf32> to vector<8x8xf32>
    %57 = vector.extract_strided_slice %20 {offsets = [0, 80], sizes = [8, 8], strides = [1, 1]} : vector<16x96xf32> to vector<8x8xf32>
    %58 = vector.extract_strided_slice %20 {offsets = [0, 88], sizes = [8, 8], strides = [1, 1]} : vector<16x96xf32> to vector<8x8xf32>
    %59 = vector.extract_strided_slice %20 {offsets = [8, 64], sizes = [8, 8], strides = [1, 1]} : vector<16x96xf32> to vector<8x8xf32>
    %60 = vector.extract_strided_slice %20 {offsets = [8, 72], sizes = [8, 8], strides = [1, 1]} : vector<16x96xf32> to vector<8x8xf32>
    %61 = vector.extract_strided_slice %20 {offsets = [8, 80], sizes = [8, 8], strides = [1, 1]} : vector<16x96xf32> to vector<8x8xf32>
    %62 = vector.extract_strided_slice %20 {offsets = [8, 88], sizes = [8, 8], strides = [1, 1]} : vector<16x96xf32> to vector<8x8xf32>
    %63 = vector.shape_cast %55 : vector<8x8xf32> to vector<1x8x8xf32>
    %64 = vector.shape_cast %56 : vector<8x8xf32> to vector<1x8x8xf32>
    %65 = vector.shape_cast %57 : vector<8x8xf32> to vector<1x8x8xf32>
    %66 = vector.shape_cast %58 : vector<8x8xf32> to vector<1x8x8xf32>
    %67 = vector.shape_cast %59 : vector<8x8xf32> to vector<1x8x8xf32>
    %68 = vector.shape_cast %60 : vector<8x8xf32> to vector<1x8x8xf32>
    %69 = vector.shape_cast %61 : vector<8x8xf32> to vector<1x8x8xf32>
    %70 = vector.shape_cast %62 : vector<8x8xf32> to vector<1x8x8xf32>
    %71 = tpu.concatenate %63, %64, %65, %66, %67, %68, %69, %70 in 0 : vector<1x8x8xf32>, vector<1x8x8xf32>, vector<1x8x8xf32>, vector<1x8x8xf32>, vector<1x8x8xf32>, vector<1x8x8xf32>, vector<1x8x8xf32>, vector<1x8x8xf32> -> vector<8x8x8xf32>
    %cst_7 = arith.constant dense<0.000000e+00> : vector<8x8x8xf32>
    %72 = tpu.matmul %37, %54, %cst_7 {dimension_numbers = #tpu.dot_dimension_numbers<[2], [2], [1], [1], [0, 0, 0, 1, 1, 1], [0], [0]>} : vector<8x8x8xf32>, vector<8x8x8xf32>, vector<8x8x8xf32> -> vector<8x8x8xf32>
    %cst_8 = arith.constant dense<0xFF800000> : vector<8x8xf32>
    %73 = vector.multi_reduction <maximumf>, %72, %cst_8 [2] : vector<8x8x8xf32> to vector<8x8xf32>
    %74 = vector.shape_cast %73 : vector<8x8xf32> to vector<8x8x1xf32>
    %75 = vector.broadcast %74 : vector<8x8x1xf32> to vector<8x8x8xf32>
    %76 = arith.subf %72, %75 : vector<8x8x8xf32>
    %77 = math.exp %76 : vector<8x8x8xf32>
    %cst_9 = arith.constant dense<0.000000e+00> : vector<8x8xf32>
    %78 = vector.multi_reduction <add>, %77, %cst_9 [2] : vector<8x8x8xf32> to vector<8x8xf32>
    %79 = vector.shape_cast %78 : vector<8x8xf32> to vector<8x8x1xf32>
    %80 = tpu.reciprocal %79 {approx = true} : vector<8x8x1xf32> -> vector<8x8x1xf32>
    %81 = vector.broadcast %80 : vector<8x8x1xf32> to vector<8x8x8xf32>
    %82 = arith.mulf %77, %81 : vector<8x8x8xf32>
    %cst_10 = arith.constant dense<0.000000e+00> : vector<8x8x8xf32>
    %83 = tpu.matmul %82, %71, %cst_10 {dimension_numbers = #tpu.dot_dimension_numbers<[2], [1], [1], [2], [0, 0, 0, 1, 1, 2], [0], [0]>} : vector<8x8x8xf32>, vector<8x8x8xf32>, vector<8x8x8xf32> -> vector<8x8x8xf32>
    %84 = vector.extract_strided_slice %83 {offsets = [0, 0, 0], sizes = [1, 8, 8], strides = [1, 1, 1]} : vector<8x8x8xf32> to vector<1x8x8xf32>
    %85 = vector.shape_cast %84 : vector<1x8x8xf32> to vector<8x8xf32>
    %86 = vector.extract_strided_slice %83 {offsets = [1, 0, 0], sizes = [1, 8, 8], strides = [1, 1, 1]} : vector<8x8x8xf32> to vector<1x8x8xf32>
    %87 = vector.shape_cast %86 : vector<1x8x8xf32> to vector<8x8xf32>
    %88 = vector.extract_strided_slice %83 {offsets = [2, 0, 0], sizes = [1, 8, 8], strides = [1, 1, 1]} : vector<8x8x8xf32> to vector<1x8x8xf32>
    %89 = vector.shape_cast %88 : vector<1x8x8xf32> to vector<8x8xf32>
    %90 = vector.extract_strided_slice %83 {offsets = [3, 0, 0], sizes = [1, 8, 8], strides = [1, 1, 1]} : vector<8x8x8xf32> to vector<1x8x8xf32>
    %91 = vector.shape_cast %90 : vector<1x8x8xf32> to vector<8x8xf32>
    %92 = tpu.concatenate %85, %87, %89, %91 in 1 : vector<8x8xf32>, vector<8x8xf32>, vector<8x8xf32>, vector<8x8xf32> -> vector<8x32xf32>
    %93 = vector.extract_strided_slice %83 {offsets = [4, 0, 0], sizes = [1, 8, 8], strides = [1, 1, 1]} : vector<8x8x8xf32> to vector<1x8x8xf32>
    %94 = vector.shape_cast %93 : vector<1x8x8xf32> to vector<8x8xf32>
    %95 = vector.extract_strided_slice %83 {offsets = [5, 0, 0], sizes = [1, 8, 8], strides = [1, 1, 1]} : vector<8x8x8xf32> to vector<1x8x8xf32>
    %96 = vector.shape_cast %95 : vector<1x8x8xf32> to vector<8x8xf32>
    %97 = vector.extract_strided_slice %83 {offsets = [6, 0, 0], sizes = [1, 8, 8], strides = [1, 1, 1]} : vector<8x8x8xf32> to vector<1x8x8xf32>
    %98 = vector.shape_cast %97 : vector<1x8x8xf32> to vector<8x8xf32>
    %99 = vector.extract_strided_slice %83 {offsets = [7, 0, 0], sizes = [1, 8, 8], strides = [1, 1, 1]} : vector<8x8x8xf32> to vector<1x8x8xf32>
    %100 = vector.shape_cast %99 : vector<1x8x8xf32> to vector<8x8xf32>
    %101 = tpu.concatenate %94, %96, %98, %100 in 1 : vector<8x8xf32>, vector<8x8xf32>, vector<8x8xf32>, vector<8x8xf32> -> vector<8x32xf32>
    %102 = tpu.concatenate %92, %101 in 0 : vector<8x32xf32>, vector<8x32xf32> -> vector<16x32xf32>
    %cst_11 = arith.constant dense<0.000000e+00> : vector<16x32xf32>
    %103 = tpu.matmul %102, %6, %cst_11 {dimension_numbers = #tpu.dot_dimension_numbers<[1], [0], [0], [1], [0, 0, 1, 1], [], []>} : vector<16x32xf32>, vector<32x32xf32>, vector<16x32xf32> -> vector<16x32xf32>
    %104 = vector.broadcast %11 : vector<1x32xf32> to vector<16x32xf32>
    %105 = arith.addf %103, %104 : vector<16x32xf32>
    %106 = arith.addf %0, %105 : vector<16x32xf32>
    %cst_12 = arith.constant dense<0.000000e+00> : vector<16xf32>
    %107 = vector.multi_reduction <add>, %106, %cst_12 [1] : vector<16x32xf32> to vector<16xf32>
    %108 = vector.shape_cast %107 : vector<16xf32> to vector<16x1xf32>
    %cst_13 = arith.constant 3.200000e+01 : f32
    %109 = vector.broadcast %cst_13 : f32 to vector<16x1xf32>
    %110 = arith.divf %108, %109 : vector<16x1xf32>
    %111 = vector.broadcast %110 : vector<16x1xf32> to vector<16x32xf32>
    %112 = arith.subf %106, %111 : vector<16x32xf32>
    %113 = arith.mulf %112, %112 : vector<16x32xf32>
    %cst_14 = arith.constant dense<0.000000e+00> : vector<16xf32>
    %114 = vector.multi_reduction <add>, %113, %cst_14 [1] : vector<16x32xf32> to vector<16xf32>
    %115 = vector.shape_cast %114 : vector<16xf32> to vector<16x1xf32>
    %cst_15 = arith.constant 3.200000e+01 : f32
    %116 = vector.broadcast %cst_15 : f32 to vector<16x1xf32>
    %117 = arith.divf %115, %116 : vector<16x1xf32>
    %118 = vector.broadcast %110 : vector<16x1xf32> to vector<16x32xf32>
    %119 = arith.subf %106, %118 : vector<16x32xf32>
    %cst_16 = arith.constant 9.99999974E-6 : f32
    %120 = vector.broadcast %cst_16 : f32 to vector<16x1xf32>
    %121 = arith.addf %117, %120 : vector<16x1xf32>
    %122 = math.rsqrt %121 : vector<16x1xf32>
    %123 = vector.broadcast %122 : vector<16x1xf32> to vector<16x32xf32>
    %124 = arith.mulf %119, %123 : vector<16x32xf32>
    %125 = vector.broadcast %12 : vector<1x32xf32> to vector<16x32xf32>
    %126 = arith.mulf %124, %125 : vector<16x32xf32>
    %127 = vector.broadcast %13 : vector<1x32xf32> to vector<16x32xf32>
    %128 = arith.addf %126, %127 : vector<16x32xf32>
    %cst_17 = arith.constant dense<0.000000e+00> : vector<16x64xf32>
    %129 = tpu.matmul %128, %7, %cst_17 {dimension_numbers = #tpu.dot_dimension_numbers<[1], [0], [0], [1], [0, 0, 1, 1], [], []>} : vector<16x32xf32>, vector<32x64xf32>, vector<16x64xf32> -> vector<16x64xf32>
    %130 = vector.broadcast %16 : vector<1x64xf32> to vector<16x64xf32>
    %131 = arith.addf %129, %130 : vector<16x64xf32>
    %cst_18 = arith.constant 0.000000e+00 : f32
    %132 = vector.broadcast %cst_18 : f32 to vector<16x64xf32>
    %133 = arith.maximumf %131, %132 : vector<16x64xf32>
    %cst_19 = arith.constant dense<0.000000e+00> : vector<16x32xf32>
    %134 = tpu.matmul %133, %8, %cst_19 {dimension_numbers = #tpu.dot_dimension_numbers<[1], [0], [0], [1], [0, 0, 1, 1], [], []>} : vector<16x64xf32>, vector<64x32xf32>, vector<16x32xf32> -> vector<16x32xf32>
    %135 = vector.broadcast %17 : vector<1x32xf32> to vector<16x32xf32>
    %136 = arith.addf %134, %135 : vector<16x32xf32>
    %137 = arith.addf %128, %136 : vector<16x32xf32>
    %cst_20 = arith.constant dense<0.000000e+00> : vector<16xf32>
    %138 = vector.multi_reduction <add>, %137, %cst_20 [1] : vector<16x32xf32> to vector<16xf32>
    %139 = vector.shape_cast %138 : vector<16xf32> to vector<16x1xf32>
    %cst_21 = arith.constant 3.200000e+01 : f32
    %140 = vector.broadcast %cst_21 : f32 to vector<16x1xf32>
    %141 = arith.divf %139, %140 : vector<16x1xf32>
    %142 = vector.broadcast %141 : vector<16x1xf32> to vector<16x32xf32>
    %143 = arith.subf %137, %142 : vector<16x32xf32>
    %144 = arith.mulf %143, %143 : vector<16x32xf32>
    %cst_22 = arith.constant dense<0.000000e+00> : vector<16xf32>
    %145 = vector.multi_reduction <add>, %144, %cst_22 [1] : vector<16x32xf32> to vector<16xf32>
    %146 = vector.shape_cast %145 : vector<16xf32> to vector<16x1xf32>
    %cst_23 = arith.constant 3.200000e+01 : f32
    %147 = vector.broadcast %cst_23 : f32 to vector<16x1xf32>
    %148 = arith.divf %146, %147 : vector<16x1xf32>
    %149 = vector.broadcast %141 : vector<16x1xf32> to vector<16x32xf32>
    %150 = arith.subf %137, %149 : vector<16x32xf32>
    %cst_24 = arith.constant 9.99999974E-6 : f32
    %151 = vector.broadcast %cst_24 : f32 to vector<16x1xf32>
    %152 = arith.addf %148, %151 : vector<16x1xf32>
    %153 = math.rsqrt %152 : vector<16x1xf32>
    %154 = vector.broadcast %153 : vector<16x1xf32> to vector<16x32xf32>
    %155 = arith.mulf %150, %154 : vector<16x32xf32>
    %156 = vector.broadcast %14 : vector<1x32xf32> to vector<16x32xf32>
    %157 = arith.mulf %155, %156 : vector<16x32xf32>
    %158 = vector.broadcast %15 : vector<1x32xf32> to vector<16x32xf32>
    %159 = arith.addf %157, %158 : vector<16x32xf32>
    %160 = arith.addf %0, %159 : vector<16x32xf32>
    %cst_25 = arith.constant dense<0.000000e+00> : vector<16xf32>
    %161 = vector.multi_reduction <add>, %160, %cst_25 [1] : vector<16x32xf32> to vector<16xf32>
    %162 = vector.shape_cast %161 : vector<16xf32> to vector<16x1xf32>
    %cst_26 = arith.constant 3.200000e+01 : f32
    %163 = vector.broadcast %cst_26 : f32 to vector<16x1xf32>
    %164 = arith.divf %162, %163 : vector<16x1xf32>
    %165 = vector.broadcast %164 : vector<16x1xf32> to vector<16x32xf32>
    %166 = arith.subf %160, %165 : vector<16x32xf32>
    %167 = arith.mulf %166, %166 : vector<16x32xf32>
    %cst_27 = arith.constant dense<0.000000e+00> : vector<16xf32>
    %168 = vector.multi_reduction <add>, %167, %cst_27 [1] : vector<16x32xf32> to vector<16xf32>
    %169 = vector.shape_cast %168 : vector<16xf32> to vector<16x1xf32>
    %cst_28 = arith.constant 3.200000e+01 : f32
    %170 = vector.broadcast %cst_28 : f32 to vector<16x1xf32>
    %171 = arith.divf %169, %170 : vector<16x1xf32>
    %172 = vector.broadcast %164 : vector<16x1xf32> to vector<16x32xf32>
    %173 = arith.subf %160, %172 : vector<16x32xf32>
    %cst_29 = arith.constant 9.99999974E-6 : f32
    %174 = vector.broadcast %cst_29 : f32 to vector<16x1xf32>
    %175 = arith.addf %171, %174 : vector<16x1xf32>
    %176 = math.rsqrt %175 : vector<16x1xf32>
    %177 = vector.broadcast %176 : vector<16x1xf32> to vector<16x32xf32>
    %178 = arith.mulf %173, %177 : vector<16x32xf32>
    %179 = vector.broadcast %2 : vector<1x32xf32> to vector<16x32xf32>
    %180 = arith.mulf %178, %179 : vector<16x32xf32>
    %181 = vector.broadcast %3 : vector<1x32xf32> to vector<16x32xf32>
    %182 = arith.addf %180, %181 : vector<16x32xf32>
    %c136 = arith.constant 136 : index
    %c0_30 = arith.constant 0 : index
    %183 = vector.load %arg1[%c136, %c0_30] : memref<280x128xf32, #tpu.memory_space<vmem>>, vector<32x128xf32>
    %184 = vector.extract_strided_slice %183 {offsets = [0, 0], sizes = [32, 96], strides = [1, 1]} : vector<32x128xf32> to vector<32x96xf32>
    %185 = vector.extract_strided_slice %183 {offsets = [0, 96], sizes = [32, 32], strides = [1, 1]} : vector<32x128xf32> to vector<32x32xf32>
    %c168 = arith.constant 168 : index
    %c0_31 = arith.constant 0 : index
    %186 = vector.load %arg1[%c168, %c0_31] : memref<280x128xf32, #tpu.memory_space<vmem>>, vector<32x64xf32>
    %c200 = arith.constant 200 : index
    %c0_32 = arith.constant 0 : index
    %187 = vector.load %arg1[%c200, %c0_32] : memref<280x128xf32, #tpu.memory_space<vmem>>, vector<64x32xf32>
    %c264 = arith.constant 264 : index
    %c0_33 = arith.constant 0 : index
    %188 = vector.load %arg1[%c264, %c0_33] : memref<280x128xf32, #tpu.memory_space<vmem>>, vector<8x128xf32>
    %189 = vector.extract_strided_slice %188 {offsets = [0, 0], sizes = [1, 96], strides = [1, 1]} : vector<8x128xf32> to vector<1x96xf32>
    %190 = vector.extract_strided_slice %188 {offsets = [0, 96], sizes = [1, 32], strides = [1, 1]} : vector<8x128xf32> to vector<1x32xf32>
    %191 = vector.extract_strided_slice %188 {offsets = [1, 0], sizes = [1, 32], strides = [1, 1]} : vector<8x128xf32> to vector<1x32xf32>
    %192 = vector.extract_strided_slice %188 {offsets = [1, 32], sizes = [1, 32], strides = [1, 1]} : vector<8x128xf32> to vector<1x32xf32>
    %193 = vector.extract_strided_slice %188 {offsets = [1, 64], sizes = [1, 32], strides = [1, 1]} : vector<8x128xf32> to vector<1x32xf32>
    %194 = vector.extract_strided_slice %188 {offsets = [1, 96], sizes = [1, 32], strides = [1, 1]} : vector<8x128xf32> to vector<1x32xf32>
    %195 = vector.extract_strided_slice %188 {offsets = [2, 0], sizes = [1, 64], strides = [1, 1]} : vector<8x128xf32> to vector<1x64xf32>
    %196 = vector.extract_strided_slice %188 {offsets = [2, 64], sizes = [1, 32], strides = [1, 1]} : vector<8x128xf32> to vector<1x32xf32>
    %cst_34 = arith.constant dense<0.000000e+00> : vector<16x96xf32>
    %197 = tpu.matmul %182, %184, %cst_34 {dimension_numbers = #tpu.dot_dimension_numbers<[1], [0], [0], [1], [0, 0, 1, 1], [], []>} : vector<16x32xf32>, vector<32x96xf32>, vector<16x96xf32> -> vector<16x96xf32>
    %198 = vector.broadcast %189 : vector<1x96xf32> to vector<16x96xf32>
    %199 = arith.addf %197, %198 : vector<16x96xf32>
    %200 = vector.extract_strided_slice %199 {offsets = [0, 0], sizes = [8, 8], strides = [1, 1]} : vector<16x96xf32> to vector<8x8xf32>
    %201 = vector.extract_strided_slice %199 {offsets = [0, 8], sizes = [8, 8], strides = [1, 1]} : vector<16x96xf32> to vector<8x8xf32>
    %202 = vector.extract_strided_slice %199 {offsets = [0, 16], sizes = [8, 8], strides = [1, 1]} : vector<16x96xf32> to vector<8x8xf32>
    %203 = vector.extract_strided_slice %199 {offsets = [0, 24], sizes = [8, 8], strides = [1, 1]} : vector<16x96xf32> to vector<8x8xf32>
    %204 = vector.extract_strided_slice %199 {offsets = [8, 0], sizes = [8, 8], strides = [1, 1]} : vector<16x96xf32> to vector<8x8xf32>
    %205 = vector.extract_strided_slice %199 {offsets = [8, 8], sizes = [8, 8], strides = [1, 1]} : vector<16x96xf32> to vector<8x8xf32>
    %206 = vector.extract_strided_slice %199 {offsets = [8, 16], sizes = [8, 8], strides = [1, 1]} : vector<16x96xf32> to vector<8x8xf32>
    %207 = vector.extract_strided_slice %199 {offsets = [8, 24], sizes = [8, 8], strides = [1, 1]} : vector<16x96xf32> to vector<8x8xf32>
    %208 = vector.shape_cast %200 : vector<8x8xf32> to vector<1x8x8xf32>
    %209 = vector.shape_cast %201 : vector<8x8xf32> to vector<1x8x8xf32>
    %210 = vector.shape_cast %202 : vector<8x8xf32> to vector<1x8x8xf32>
    %211 = vector.shape_cast %203 : vector<8x8xf32> to vector<1x8x8xf32>
    %212 = vector.shape_cast %204 : vector<8x8xf32> to vector<1x8x8xf32>
    %213 = vector.shape_cast %205 : vector<8x8xf32> to vector<1x8x8xf32>
    %214 = vector.shape_cast %206 : vector<8x8xf32> to vector<1x8x8xf32>
    %215 = vector.shape_cast %207 : vector<8x8xf32> to vector<1x8x8xf32>
    %216 = tpu.concatenate %208, %209, %210, %211, %212, %213, %214, %215 in 0 : vector<1x8x8xf32>, vector<1x8x8xf32>, vector<1x8x8xf32>, vector<1x8x8xf32>, vector<1x8x8xf32>, vector<1x8x8xf32>, vector<1x8x8xf32>, vector<1x8x8xf32> -> vector<8x8x8xf32>
    %217 = vector.extract_strided_slice %199 {offsets = [0, 32], sizes = [8, 8], strides = [1, 1]} : vector<16x96xf32> to vector<8x8xf32>
    %218 = vector.extract_strided_slice %199 {offsets = [0, 40], sizes = [8, 8], strides = [1, 1]} : vector<16x96xf32> to vector<8x8xf32>
    %219 = vector.extract_strided_slice %199 {offsets = [0, 48], sizes = [8, 8], strides = [1, 1]} : vector<16x96xf32> to vector<8x8xf32>
    %220 = vector.extract_strided_slice %199 {offsets = [0, 56], sizes = [8, 8], strides = [1, 1]} : vector<16x96xf32> to vector<8x8xf32>
    %221 = vector.extract_strided_slice %199 {offsets = [8, 32], sizes = [8, 8], strides = [1, 1]} : vector<16x96xf32> to vector<8x8xf32>
    %222 = vector.extract_strided_slice %199 {offsets = [8, 40], sizes = [8, 8], strides = [1, 1]} : vector<16x96xf32> to vector<8x8xf32>
    %223 = vector.extract_strided_slice %199 {offsets = [8, 48], sizes = [8, 8], strides = [1, 1]} : vector<16x96xf32> to vector<8x8xf32>
    %224 = vector.extract_strided_slice %199 {offsets = [8, 56], sizes = [8, 8], strides = [1, 1]} : vector<16x96xf32> to vector<8x8xf32>
    %225 = vector.shape_cast %217 : vector<8x8xf32> to vector<1x8x8xf32>
    %226 = vector.shape_cast %218 : vector<8x8xf32> to vector<1x8x8xf32>
    %227 = vector.shape_cast %219 : vector<8x8xf32> to vector<1x8x8xf32>
    %228 = vector.shape_cast %220 : vector<8x8xf32> to vector<1x8x8xf32>
    %229 = vector.shape_cast %221 : vector<8x8xf32> to vector<1x8x8xf32>
    %230 = vector.shape_cast %222 : vector<8x8xf32> to vector<1x8x8xf32>
    %231 = vector.shape_cast %223 : vector<8x8xf32> to vector<1x8x8xf32>
    %232 = vector.shape_cast %224 : vector<8x8xf32> to vector<1x8x8xf32>
    %233 = tpu.concatenate %225, %226, %227, %228, %229, %230, %231, %232 in 0 : vector<1x8x8xf32>, vector<1x8x8xf32>, vector<1x8x8xf32>, vector<1x8x8xf32>, vector<1x8x8xf32>, vector<1x8x8xf32>, vector<1x8x8xf32>, vector<1x8x8xf32> -> vector<8x8x8xf32>
    %234 = vector.extract_strided_slice %199 {offsets = [0, 64], sizes = [8, 8], strides = [1, 1]} : vector<16x96xf32> to vector<8x8xf32>
    %235 = vector.extract_strided_slice %199 {offsets = [0, 72], sizes = [8, 8], strides = [1, 1]} : vector<16x96xf32> to vector<8x8xf32>
    %236 = vector.extract_strided_slice %199 {offsets = [0, 80], sizes = [8, 8], strides = [1, 1]} : vector<16x96xf32> to vector<8x8xf32>
    %237 = vector.extract_strided_slice %199 {offsets = [0, 88], sizes = [8, 8], strides = [1, 1]} : vector<16x96xf32> to vector<8x8xf32>
    %238 = vector.extract_strided_slice %199 {offsets = [8, 64], sizes = [8, 8], strides = [1, 1]} : vector<16x96xf32> to vector<8x8xf32>
    %239 = vector.extract_strided_slice %199 {offsets = [8, 72], sizes = [8, 8], strides = [1, 1]} : vector<16x96xf32> to vector<8x8xf32>
    %240 = vector.extract_strided_slice %199 {offsets = [8, 80], sizes = [8, 8], strides = [1, 1]} : vector<16x96xf32> to vector<8x8xf32>
    %241 = vector.extract_strided_slice %199 {offsets = [8, 88], sizes = [8, 8], strides = [1, 1]} : vector<16x96xf32> to vector<8x8xf32>
    %242 = vector.shape_cast %234 : vector<8x8xf32> to vector<1x8x8xf32>
    %243 = vector.shape_cast %235 : vector<8x8xf32> to vector<1x8x8xf32>
    %244 = vector.shape_cast %236 : vector<8x8xf32> to vector<1x8x8xf32>
    %245 = vector.shape_cast %237 : vector<8x8xf32> to vector<1x8x8xf32>
    %246 = vector.shape_cast %238 : vector<8x8xf32> to vector<1x8x8xf32>
    %247 = vector.shape_cast %239 : vector<8x8xf32> to vector<1x8x8xf32>
    %248 = vector.shape_cast %240 : vector<8x8xf32> to vector<1x8x8xf32>
    %249 = vector.shape_cast %241 : vector<8x8xf32> to vector<1x8x8xf32>
    %250 = tpu.concatenate %242, %243, %244, %245, %246, %247, %248, %249 in 0 : vector<1x8x8xf32>, vector<1x8x8xf32>, vector<1x8x8xf32>, vector<1x8x8xf32>, vector<1x8x8xf32>, vector<1x8x8xf32>, vector<1x8x8xf32>, vector<1x8x8xf32> -> vector<8x8x8xf32>
    %cst_35 = arith.constant dense<0.000000e+00> : vector<8x8x8xf32>
    %251 = tpu.matmul %216, %233, %cst_35 {dimension_numbers = #tpu.dot_dimension_numbers<[2], [2], [1], [1], [0, 0, 0, 1, 1, 1], [0], [0]>} : vector<8x8x8xf32>, vector<8x8x8xf32>, vector<8x8x8xf32> -> vector<8x8x8xf32>
    %cst_36 = arith.constant dense<0xFF800000> : vector<8x8xf32>
    %252 = vector.multi_reduction <maximumf>, %251, %cst_36 [2] : vector<8x8x8xf32> to vector<8x8xf32>
    %253 = vector.shape_cast %252 : vector<8x8xf32> to vector<8x8x1xf32>
    %254 = vector.broadcast %253 : vector<8x8x1xf32> to vector<8x8x8xf32>
    %255 = arith.subf %251, %254 : vector<8x8x8xf32>
    %256 = math.exp %255 : vector<8x8x8xf32>
    %cst_37 = arith.constant dense<0.000000e+00> : vector<8x8xf32>
    %257 = vector.multi_reduction <add>, %256, %cst_37 [2] : vector<8x8x8xf32> to vector<8x8xf32>
    %258 = vector.shape_cast %257 : vector<8x8xf32> to vector<8x8x1xf32>
    %259 = tpu.reciprocal %258 {approx = true} : vector<8x8x1xf32> -> vector<8x8x1xf32>
    %260 = vector.broadcast %259 : vector<8x8x1xf32> to vector<8x8x8xf32>
    %261 = arith.mulf %256, %260 : vector<8x8x8xf32>
    %cst_38 = arith.constant dense<0.000000e+00> : vector<8x8x8xf32>
    %262 = tpu.matmul %261, %250, %cst_38 {dimension_numbers = #tpu.dot_dimension_numbers<[2], [1], [1], [2], [0, 0, 0, 1, 1, 2], [0], [0]>} : vector<8x8x8xf32>, vector<8x8x8xf32>, vector<8x8x8xf32> -> vector<8x8x8xf32>
    %263 = vector.extract_strided_slice %262 {offsets = [0, 0, 0], sizes = [1, 8, 8], strides = [1, 1, 1]} : vector<8x8x8xf32> to vector<1x8x8xf32>
    %264 = vector.shape_cast %263 : vector<1x8x8xf32> to vector<8x8xf32>
    %265 = vector.extract_strided_slice %262 {offsets = [1, 0, 0], sizes = [1, 8, 8], strides = [1, 1, 1]} : vector<8x8x8xf32> to vector<1x8x8xf32>
    %266 = vector.shape_cast %265 : vector<1x8x8xf32> to vector<8x8xf32>
    %267 = vector.extract_strided_slice %262 {offsets = [2, 0, 0], sizes = [1, 8, 8], strides = [1, 1, 1]} : vector<8x8x8xf32> to vector<1x8x8xf32>
    %268 = vector.shape_cast %267 : vector<1x8x8xf32> to vector<8x8xf32>
    %269 = vector.extract_strided_slice %262 {offsets = [3, 0, 0], sizes = [1, 8, 8], strides = [1, 1, 1]} : vector<8x8x8xf32> to vector<1x8x8xf32>
    %270 = vector.shape_cast %269 : vector<1x8x8xf32> to vector<8x8xf32>
    %271 = tpu.concatenate %264, %266, %268, %270 in 1 : vector<8x8xf32>, vector<8x8xf32>, vector<8x8xf32>, vector<8x8xf32> -> vector<8x32xf32>
    %272 = vector.extract_strided_slice %262 {offsets = [4, 0, 0], sizes = [1, 8, 8], strides = [1, 1, 1]} : vector<8x8x8xf32> to vector<1x8x8xf32>
    %273 = vector.shape_cast %272 : vector<1x8x8xf32> to vector<8x8xf32>
    %274 = vector.extract_strided_slice %262 {offsets = [5, 0, 0], sizes = [1, 8, 8], strides = [1, 1, 1]} : vector<8x8x8xf32> to vector<1x8x8xf32>
    %275 = vector.shape_cast %274 : vector<1x8x8xf32> to vector<8x8xf32>
    %276 = vector.extract_strided_slice %262 {offsets = [6, 0, 0], sizes = [1, 8, 8], strides = [1, 1, 1]} : vector<8x8x8xf32> to vector<1x8x8xf32>
    %277 = vector.shape_cast %276 : vector<1x8x8xf32> to vector<8x8xf32>
    %278 = vector.extract_strided_slice %262 {offsets = [7, 0, 0], sizes = [1, 8, 8], strides = [1, 1, 1]} : vector<8x8x8xf32> to vector<1x8x8xf32>
    %279 = vector.shape_cast %278 : vector<1x8x8xf32> to vector<8x8xf32>
    %280 = tpu.concatenate %273, %275, %277, %279 in 1 : vector<8x8xf32>, vector<8x8xf32>, vector<8x8xf32>, vector<8x8xf32> -> vector<8x32xf32>
    %281 = tpu.concatenate %271, %280 in 0 : vector<8x32xf32>, vector<8x32xf32> -> vector<16x32xf32>
    %cst_39 = arith.constant dense<0.000000e+00> : vector<16x32xf32>
    %282 = tpu.matmul %281, %185, %cst_39 {dimension_numbers = #tpu.dot_dimension_numbers<[1], [0], [0], [1], [0, 0, 1, 1], [], []>} : vector<16x32xf32>, vector<32x32xf32>, vector<16x32xf32> -> vector<16x32xf32>
    %283 = vector.broadcast %190 : vector<1x32xf32> to vector<16x32xf32>
    %284 = arith.addf %282, %283 : vector<16x32xf32>
    %285 = arith.addf %182, %284 : vector<16x32xf32>
    %cst_40 = arith.constant dense<0.000000e+00> : vector<16xf32>
    %286 = vector.multi_reduction <add>, %285, %cst_40 [1] : vector<16x32xf32> to vector<16xf32>
    %287 = vector.shape_cast %286 : vector<16xf32> to vector<16x1xf32>
    %cst_41 = arith.constant 3.200000e+01 : f32
    %288 = vector.broadcast %cst_41 : f32 to vector<16x1xf32>
    %289 = arith.divf %287, %288 : vector<16x1xf32>
    %290 = vector.broadcast %289 : vector<16x1xf32> to vector<16x32xf32>
    %291 = arith.subf %285, %290 : vector<16x32xf32>
    %292 = arith.mulf %291, %291 : vector<16x32xf32>
    %cst_42 = arith.constant dense<0.000000e+00> : vector<16xf32>
    %293 = vector.multi_reduction <add>, %292, %cst_42 [1] : vector<16x32xf32> to vector<16xf32>
    %294 = vector.shape_cast %293 : vector<16xf32> to vector<16x1xf32>
    %cst_43 = arith.constant 3.200000e+01 : f32
    %295 = vector.broadcast %cst_43 : f32 to vector<16x1xf32>
    %296 = arith.divf %294, %295 : vector<16x1xf32>
    %297 = vector.broadcast %289 : vector<16x1xf32> to vector<16x32xf32>
    %298 = arith.subf %285, %297 : vector<16x32xf32>
    %cst_44 = arith.constant 9.99999974E-6 : f32
    %299 = vector.broadcast %cst_44 : f32 to vector<16x1xf32>
    %300 = arith.addf %296, %299 : vector<16x1xf32>
    %301 = math.rsqrt %300 : vector<16x1xf32>
    %302 = vector.broadcast %301 : vector<16x1xf32> to vector<16x32xf32>
    %303 = arith.mulf %298, %302 : vector<16x32xf32>
    %304 = vector.broadcast %191 : vector<1x32xf32> to vector<16x32xf32>
    %305 = arith.mulf %303, %304 : vector<16x32xf32>
    %306 = vector.broadcast %192 : vector<1x32xf32> to vector<16x32xf32>
    %307 = arith.addf %305, %306 : vector<16x32xf32>
    %cst_45 = arith.constant dense<0.000000e+00> : vector<16x64xf32>
    %308 = tpu.matmul %307, %186, %cst_45 {dimension_numbers = #tpu.dot_dimension_numbers<[1], [0], [0], [1], [0, 0, 1, 1], [], []>} : vector<16x32xf32>, vector<32x64xf32>, vector<16x64xf32> -> vector<16x64xf32>
    %309 = vector.broadcast %195 : vector<1x64xf32> to vector<16x64xf32>
    %310 = arith.addf %308, %309 : vector<16x64xf32>
    %cst_46 = arith.constant 0.000000e+00 : f32
    %311 = vector.broadcast %cst_46 : f32 to vector<16x64xf32>
    %312 = arith.maximumf %310, %311 : vector<16x64xf32>
    %cst_47 = arith.constant dense<0.000000e+00> : vector<16x32xf32>
    %313 = tpu.matmul %312, %187, %cst_47 {dimension_numbers = #tpu.dot_dimension_numbers<[1], [0], [0], [1], [0, 0, 1, 1], [], []>} : vector<16x64xf32>, vector<64x32xf32>, vector<16x32xf32> -> vector<16x32xf32>
    %314 = vector.broadcast %196 : vector<1x32xf32> to vector<16x32xf32>
    %315 = arith.addf %313, %314 : vector<16x32xf32>
    %316 = arith.addf %307, %315 : vector<16x32xf32>
    %cst_48 = arith.constant dense<0.000000e+00> : vector<16xf32>
    %317 = vector.multi_reduction <add>, %316, %cst_48 [1] : vector<16x32xf32> to vector<16xf32>
    %318 = vector.shape_cast %317 : vector<16xf32> to vector<16x1xf32>
    %cst_49 = arith.constant 3.200000e+01 : f32
    %319 = vector.broadcast %cst_49 : f32 to vector<16x1xf32>
    %320 = arith.divf %318, %319 : vector<16x1xf32>
    %321 = vector.broadcast %320 : vector<16x1xf32> to vector<16x32xf32>
    %322 = arith.subf %316, %321 : vector<16x32xf32>
    %323 = arith.mulf %322, %322 : vector<16x32xf32>
    %cst_50 = arith.constant dense<0.000000e+00> : vector<16xf32>
    %324 = vector.multi_reduction <add>, %323, %cst_50 [1] : vector<16x32xf32> to vector<16xf32>
    %325 = vector.shape_cast %324 : vector<16xf32> to vector<16x1xf32>
    %cst_51 = arith.constant 3.200000e+01 : f32
    %326 = vector.broadcast %cst_51 : f32 to vector<16x1xf32>
    %327 = arith.divf %325, %326 : vector<16x1xf32>
    %328 = vector.broadcast %320 : vector<16x1xf32> to vector<16x32xf32>
    %329 = arith.subf %316, %328 : vector<16x32xf32>
    %cst_52 = arith.constant 9.99999974E-6 : f32
    %330 = vector.broadcast %cst_52 : f32 to vector<16x1xf32>
    %331 = arith.addf %327, %330 : vector<16x1xf32>
    %332 = math.rsqrt %331 : vector<16x1xf32>
    %333 = vector.broadcast %332 : vector<16x1xf32> to vector<16x32xf32>
    %334 = arith.mulf %329, %333 : vector<16x32xf32>
    %335 = vector.broadcast %193 : vector<1x32xf32> to vector<16x32xf32>
    %336 = arith.mulf %334, %335 : vector<16x32xf32>
    %337 = vector.broadcast %194 : vector<1x32xf32> to vector<16x32xf32>
    %338 = arith.addf %336, %337 : vector<16x32xf32>
    %339 = arith.addf %182, %338 : vector<16x32xf32>
    %cst_53 = arith.constant dense<0.000000e+00> : vector<16xf32>
    %340 = vector.multi_reduction <add>, %339, %cst_53 [1] : vector<16x32xf32> to vector<16xf32>
    %341 = vector.shape_cast %340 : vector<16xf32> to vector<16x1xf32>
    %cst_54 = arith.constant 3.200000e+01 : f32
    %342 = vector.broadcast %cst_54 : f32 to vector<16x1xf32>
    %343 = arith.divf %341, %342 : vector<16x1xf32>
    %344 = vector.broadcast %343 : vector<16x1xf32> to vector<16x32xf32>
    %345 = arith.subf %339, %344 : vector<16x32xf32>
    %346 = arith.mulf %345, %345 : vector<16x32xf32>
    %cst_55 = arith.constant dense<0.000000e+00> : vector<16xf32>
    %347 = vector.multi_reduction <add>, %346, %cst_55 [1] : vector<16x32xf32> to vector<16xf32>
    %348 = vector.shape_cast %347 : vector<16xf32> to vector<16x1xf32>
    %cst_56 = arith.constant 3.200000e+01 : f32
    %349 = vector.broadcast %cst_56 : f32 to vector<16x1xf32>
    %350 = arith.divf %348, %349 : vector<16x1xf32>
    %351 = vector.broadcast %343 : vector<16x1xf32> to vector<16x32xf32>
    %352 = arith.subf %339, %351 : vector<16x32xf32>
    %cst_57 = arith.constant 9.99999974E-6 : f32
    %353 = vector.broadcast %cst_57 : f32 to vector<16x1xf32>
    %354 = arith.addf %350, %353 : vector<16x1xf32>
    %355 = math.rsqrt %354 : vector<16x1xf32>
    %356 = vector.broadcast %355 : vector<16x1xf32> to vector<16x32xf32>
    %357 = arith.mulf %352, %356 : vector<16x32xf32>
    %358 = vector.broadcast %2 : vector<1x32xf32> to vector<16x32xf32>
    %359 = arith.mulf %357, %358 : vector<16x32xf32>
    %360 = vector.broadcast %3 : vector<1x32xf32> to vector<16x32xf32>
    %361 = arith.addf %359, %360 : vector<16x32xf32>
    %c0_58 = arith.constant 0 : index
    %c0_59 = arith.constant 0 : index
    %362 = vector.load %arg2[%c0_58, %c0_59] : memref<16x32xf32, #tpu.memory_space<vmem>>, vector<16x32xf32>
    tpu.vector_store %arg2[%c0_58, %c0_59], %361 {strides = array<i32>} : memref<16x32xf32, #tpu.memory_space<vmem>>, vector<16x32xf32>,
    return
  }
}

</mosaic_0001>

<llo_original>
// kernel: fused_encoder.1
$region0: #{fused_encoder.1}
  #allocation0 [shape = 'u32[]', space=smem, size = 0x4, offset = 0x4, fixed_abs, tag = 'smem constant byte address 0x4 - core index']
  #allocation1 [shape = 'u32[144,128]{1,0:T(1,128)}', space=vmem, size = 0x12000, scoped, tag = 'internal scratch']
  %s0 = inlined_call_operand.hbm [shape: f32[16,32], index: 0, kind: input, shape index: {}]
  %s1 = inlined_call_operand.hbm [shape: f32[280,128], index: 1, kind: input, shape index: {}]
  %s2 = inlined_call_operand.hbm [shape: f32[16,32], index: 2, kind: output, shape index: {}]
  %s3 = sld [smem:[#allocation0]]
  $region26: #{fused_encoder.1} parent=0
    _
  %s5 = ssub.s32 1, %s3
  %s6 = scalar_select 0, %s5, %s3
  $region1: #{fused_encoder.1} parent=0
    #allocation2 [shape = 'u8[8192]{0}', space=vmem, size = 0x2000, scoped, tag = 'input window, operand 0, single buffered']
    #allocation3 [shape = 's32[1]{0}', space=sflag, size = 0x4, scoped, tag = 'scoped memory for fused_encoder.1']
    #allocation4 [shape = 's32[1]{0}', space=sflag, size = 0x4, scoped, tag = 'scoped memory for fused_encoder.1']
    #allocation5 [shape = 'u8[143360]{0}', space=vmem, size = 0x23000, scoped, tag = 'input window, operand 1, single buffered']
    #allocation6 [shape = 's32[1]{0}', space=sflag, size = 0x4, scoped, tag = 'scoped memory for fused_encoder.1']
    #allocation7 [shape = 'u8[8192]{0}', space=vmem, size = 0x2000, scoped, tag = 'output window, operand 0, single buffered']
    %7 = vsyncpa [#allocation3], 0
    %8 = vsyncpa [#allocation6], 0
    %9 = vsyncpa [#allocation4], 0
    // Predicated region
    $region2: #{fused_encoder.1} parent=1 // pred_check
      _
    $region3: #{fused_encoder.1} parent=1 // pred_check_branch
      %11 = sbr.rel (0) target = $region5
    $region4: #{fused_encoder.1} parent=1 // pred_region
      %s13 = ssub.s32 256, 256
      %14 = vsyncadd [#allocation3], %s13
      %s15 = sshll.u32 [#allocation2], 4
      %s16 = int_to_ptr.vmem [resolvable:$true] %s15
      %21 = dma.hbm_to_vmem [thread:$0]  %s0, 256, %s16, [#allocation3], 128, 128, 8
    $region5: #{fused_encoder.1} parent=1 // pred_fallthru
      _
    // Predicated region
    $region6: #{fused_encoder.1} parent=1 // pred_check
      _
    $region7: #{fused_encoder.1} parent=1 // pred_check_branch
      %23 = sbr.rel (0) target = $region9
    $region8: #{fused_encoder.1} parent=1 // pred_region
      %s25 = ssub.s32 4480, 4480
      %26 = vsyncadd [#allocation6], %s25
      %s27 = sshll.u32 [#allocation5], 4
      %s28 = int_to_ptr.vmem [resolvable:$true] %s27
      %33 = dma.hbm_to_vmem [thread:$0]  %s1, 4480, %s28, [#allocation6], 128, 128, 8
    $region9: #{fused_encoder.1} parent=1 // pred_fallthru
      _
    // Predicated region
    $region10: #{fused_encoder.1} parent=1 // pred_check
      _
    $region11: #{fused_encoder.1} parent=1 // pred_check_branch
      %35 = sbr.rel (0) target = $region13
    $region12: #{fused_encoder.1} parent=1 // pred_region
      %36 = dma.done [#allocation3], 256
    $region13: #{fused_encoder.1} parent=1 // pred_fallthru
      _
    // Predicated region
    $region14: #{fused_encoder.1} parent=1 // pred_check
      _
    $region15: #{fused_encoder.1} parent=1 // pred_check_branch
      %38 = sbr.rel (0) target = $region17
    $region16: #{fused_encoder.1} parent=1 // pred_region
      %39 = dma.done [#allocation6], 4480
    $region17: #{fused_encoder.1} parent=1 // pred_fallthru
      _
    %v40 = vld [vmem:[#allocation2] sm:$0xff]
    %v41 = vld [vmem:[#allocation2 + $0x8] sm:$0xff]
    %v42 = vld [vmem:[#allocation5 + $0x110] sm:$0xff]
    %v43 = vld [vmem:[#allocation5] sm:$0xff]
    %v44 = vld [vmem:[#allocation5 + $0x8] sm:$0xff]
    %v45 = vld [vmem:[#allocation5 + $0x10] sm:$0xff]
    %v46 = vld [vmem:[#allocation5 + $0x18] sm:$0xff]
    %v47 = vld [vmem:[#allocation5 + $0x20] sm:$0xff]
    %v48 = vld [vmem:[#allocation5 + $0x28] sm:$0xff]
    %v49 = vld [vmem:[#allocation5 + $0x30] sm:$0xff]
    %v50 = vld [vmem:[#allocation5 + $0x38] sm:$0xff]
    %v51 = vld [vmem:[#allocation5 + $0x40] sm:$0xff]
    %v52 = vld [vmem:[#allocation5 + $0x48] sm:$0xff]
    %v53 = vld [vmem:[#allocation5 + $0x50] sm:$0xff]
    %v54 = vld [vmem:[#allocation5 + $0x58] sm:$0xff]
    %v55 = vld [vmem:[#allocation5 + $0x60] sm:$0xff]
    %v56 = vld [vmem:[#allocation5 + $0x68] sm:$0xff]
    %v57 = vld [vmem:[#allocation5 + $0x70] sm:$0xff]
    %v58 = vld [vmem:[#allocation5 + $0x78] sm:$0xff]
    %v59 = vld [vmem:[#allocation5 + $0x80] sm:$0xff]
    %v60 = vlaneseq
    %v61 = vshrl.u32 %v60, 7
    %v62 = vsub.s32 0, %v61
    %v63 = vrot.slane %v59, %v62
    %vm64 = vcmask 261120
    %v66 = vsel %vm64, %v40, 0
    %v69 = vsel %vm64, %v41, 0
    %71 = vmatprep.subr.mxu0 0.0
    %72 = vmatpush1.msra.mxu0 %v43
    %73 = vmatprep.subr.mxu0 0.0
    %74 = vmatpush1.msra.mxu0 %v44
    %75 = vmatprep.subr.mxu0 0.0
    %76 = vmatpush1.msra.mxu0 %v45
    %77 = vmatprep.subr.mxu0 0.0
    %78 = vmatpush1.msra.mxu0 %v46
    %79 = vmatprep.subr.mxu0 0.0
    %80 = vmatpush1.msra.mxu0 0.0
    %81 = vmatprep.subr.mxu0 0.0
    %82 = vmatpush1.msra.mxu0 0.0
    %83 = vmatprep.subr.mxu0 0.0
    %84 = vmatpush1.msra.mxu0 0.0
    %85 = vmatprep.subr.mxu0 0.0
    %86 = vmatpush1.msra.mxu0 0.0
    %87 = vmatprep.subr.mxu0 0.0
    %88 = vmatpush1.msra.mxu0 0.0
    %89 = vmatprep.subr.mxu0 0.0
    %90 = vmatpush1.msra.mxu0 0.0
    %91 = vmatprep.subr.mxu0 0.0
    %92 = vmatpush1.msra.mxu0 0.0
    %93 = vmatprep.subr.mxu0 0.0
    %94 = vmatpush1.msra.mxu0 0.0
    %95 = vmatprep.subr.mxu0 0.0
    %96 = vmatpush1.msra.mxu0 0.0
    %97 = vmatprep.subr.mxu0 0.0
    %98 = vmatpush1.msra.mxu0 0.0
    %99 = vmatprep.subr.mxu0 0.0
    %100 = vmatpush1.msra.mxu0 0.0
    %101 = vmatprep.subr.mxu0 0.0
    %102 = vmatpush1.msra.mxu0 0.0
    %103 = vmatprep.subr.mxu0 0.0
    %104 = vmatpush1.msra.mxu0 0.0
    %105 = vmatprep.subr.mxu0 0.0
    %106 = vmatpush1.msra.mxu0 0.0
    %107 = vmatprep.subr.mxu0 0.0
    %108 = vmatpush1.msra.mxu0 0.0
    %109 = vmatprep.subr.mxu0 0.0
    %110 = vmatpush1.msra.mxu0 0.0
    %111 = vmatprep.subr.mxu0 0.0
    %112 = vmatpush1.msra.mxu0 0.0
    %113 = vmatprep.subr.mxu0 0.0
    %114 = vmatpush1.msra.mxu0 0.0
    %115 = vmatprep.subr.mxu0 0.0
    %116 = vmatpush1.msra.mxu0 0.0
    %117 = vmatprep.subr.mxu0 0.0
    %118 = vmatpush1.msra.mxu0 0.0
    %119 = vmatprep.subr.mxu0 0.0
    %120 = vmatpush1.msra.mxu0 0.0
    %121 = vmatprep.subr.mxu0 0.0
    %122 = vmatpush1.msra.mxu0 0.0
    %123 = vmatprep.subr.mxu0 0.0
    %124 = vmatpush1.msra.mxu0 0.0
    %125 = vmatprep.subr.mxu0 0.0
    %126 = vmatpush1.msra.mxu0 0.0
    %127 = vmatprep.subr.mxu0 0.0
    %128 = vmatpush1.msra.mxu0 0.0
    %129 = vmatprep.subr.mxu0 0.0
    %130 = vmatpush1.msra.mxu0 0.0
    %131 = vmatprep.subr.mxu0 0.0
    %132 = vmatpush1.msra.mxu0 0.0
    %133 = vmatprep.subr.mxu0 0.0
    %134 = vmatpush1.msra.mxu0 0.0
    %135 = vmatprep.mubr.f32.mxu0 0.0
    %136 = vmatmul.mubr.f32.gmra.mrb[0].mxu0 %v66
    %v137 = vpop.f32.mrb[0].mxu0
    %v138 = vadd.f32 %v63, %v137
    %v139 = vpop.f32.mrb[0].mxu0
    %140 = vmatprep.mubr.f32.mxu0 0.0
    %141 = vmatmul.mubr.f32.gmra.mrb[0].mxu0 %v69
    %v142 = vpop.f32.mrb[0].mxu0
    %v143 = vadd.f32 %v63, %v142
    %v144 = vpop.f32.mrb[0].mxu0
    %145 = vdwg.mxu0
    %147 = vrot.lane.b32.xlu0 %v138, 120
    %v148 = vpop.permute.xlu0 %147
    %149 = vrot.lane.b32.xlu0 %v138, 112
    %v150 = vpop.permute.xlu0 %149
    %151 = vrot.lane.b32.xlu0 %v138, 104
    %v152 = vpop.permute.xlu0 %151
    %154 = vrot.lane.b32.xlu0 %v143, 120
    %v155 = vpop.permute.xlu0 %154
    %156 = vrot.lane.b32.xlu0 %v143, 112
    %v157 = vpop.permute.xlu0 %156
    %158 = vrot.lane.b32.xlu0 %v143, 104
    %v159 = vpop.permute.xlu0 %158
    %160 = vrot.lane.b32.xlu0 %v138, 96
    %v161 = vpop.permute.xlu0 %160
    %vm162 = vcmask 64512
    %v163 = vsel %vm162, %v138, 0
    %v165 = vsel %vm162, %v161, 0
    %167 = vmatprep.subr.mxu0 0.0
    %168 = vmatpush1.xpose.msra.mxu0 %v165
    %169 = vmatprep.subr.mxu0 0.0
    %170 = vmatpush1.xpose.msra.mxu0 0.0
    %171 = vmatprep.subr.mxu0 0.0
    %172 = vmatpush1.xpose.msra.mxu0 0.0
    %173 = vmatprep.subr.mxu0 0.0
    %174 = vmatpush1.xpose.msra.mxu0 0.0
    %175 = vmatprep.subr.mxu0 0.0
    %176 = vmatpush1.xpose.msra.mxu0 0.0
    %177 = vmatprep.subr.mxu0 0.0
    %178 = vmatpush1.xpose.msra.mxu0 0.0
    %179 = vmatprep.subr.mxu0 0.0
    %180 = vmatpush1.xpose.msra.mxu0 0.0
    %181 = vmatprep.subr.mxu0 0.0
    %182 = vmatpush1.xpose.msra.mxu0 0.0
    %183 = vmatprep.subr.mxu0 0.0
    %184 = vmatpush1.xpose.msra.mxu0 0.0
    %185 = vmatprep.subr.mxu0 0.0
    %186 = vmatpush1.xpose.msra.mxu0 0.0
    %187 = vmatprep.subr.mxu0 0.0
    %188 = vmatpush1.xpose.msra.mxu0 0.0
    %189 = vmatprep.subr.mxu0 0.0
    %190 = vmatpush1.xpose.msra.mxu0 0.0
    %191 = vmatprep.subr.mxu0 0.0
    %192 = vmatpush1.xpose.msra.mxu0 0.0
    %193 = vmatprep.subr.mxu0 0.0
    %194 = vmatpush1.xpose.msra.mxu0 0.0
    %195 = vmatprep.subr.mxu0 0.0
    %196 = vmatpush1.xpose.msra.mxu0 0.0
    %197 = vmatprep.subr.mxu0 0.0
    %198 = vmatpush1.xpose.msra.mxu0 0.0
    %199 = vmatprep.subr.mxu0 0.0
    %200 = vmatpush1.xpose.msra.mxu0 0.0
    %201 = vmatprep.subr.mxu0 0.0
    %202 = vmatpush1.xpose.msra.mxu0 0.0
    %203 = vmatprep.subr.mxu0 0.0
    %204 = vmatpush1.xpose.msra.mxu0 0.0
    %205 = vmatprep.subr.mxu0 0.0
    %206 = vmatpush1.xpose.msra.mxu0 0.0
    %207 = vmatprep.subr.mxu0 0.0
    %208 = vmatpush1.xpose.msra.mxu0 0.0
    %209 = vmatprep.subr.mxu0 0.0
    %210 = vmatpush1.xpose.msra.mxu0 0.0
    %211 = vmatprep.subr.mxu0 0.0
    %212 = vmatpush1.xpose.msra.mxu0 0.0
    %213 = vmatprep.subr.mxu0 0.0
    %214 = vmatpush1.xpose.msra.mxu0 0.0
    %215 = vmatprep.subr.mxu0 0.0
    %216 = vmatpush1.xpose.msra.mxu0 0.0
    %217 = vmatprep.subr.mxu0 0.0
    %218 = vmatpush1.xpose.msra.mxu0 0.0
    %219 = vmatprep.subr.mxu0 0.0
    %220 = vmatpush1.xpose.msra.mxu0 0.0
    %221 = vmatprep.subr.mxu0 0.0
    %222 = vmatpush1.xpose.msra.mxu0 0.0
    %223 = vmatprep.subr.mxu0 0.0
    %224 = vmatpush1.xpose.msra.mxu0 0.0
    %225 = vmatprep.subr.mxu0 0.0
    %226 = vmatpush1.xpose.msra.mxu0 0.0
    %227 = vmatprep.subr.mxu0 0.0
    %228 = vmatpush1.xpose.msra.mxu0 0.0
    %229 = vmatprep.subr.mxu0 0.0
    %230 = vmatpush1.xpose.msra.mxu0 0.0
    %231 = vmatprep.mubr.f32.mxu0 0.0
    %232 = vmatmul.mubr.f32.gmra.mrb[0].mxu0 %v163
    %v233 = vpop.f32.mrb[0].mxu0
    %v234 = vadd.f32 0.0, %v233
    %v235 = vpop.f32.mrb[0].mxu0
    %236 = vdwg.mxu0
    %237 = vrot.lane.b32.xlu0 %v148, 96
    %v238 = vpop.permute.xlu0 %237
    %v239 = vsel %vm162, %v148, 0
    %v241 = vsel %vm162, %v238, 0
    %243 = vmatprep.subr.mxu0 0.0
    %244 = vmatpush1.xpose.msra.mxu0 %v241
    %245 = vmatprep.subr.mxu0 0.0
    %246 = vmatpush1.xpose.msra.mxu0 0.0
    %247 = vmatprep.subr.mxu0 0.0
    %248 = vmatpush1.xpose.msra.mxu0 0.0
    %249 = vmatprep.subr.mxu0 0.0
    %250 = vmatpush1.xpose.msra.mxu0 0.0
    %251 = vmatprep.subr.mxu0 0.0
    %252 = vmatpush1.xpose.msra.mxu0 0.0
    %253 = vmatprep.subr.mxu0 0.0
    %254 = vmatpush1.xpose.msra.mxu0 0.0
    %255 = vmatprep.subr.mxu0 0.0
    %256 = vmatpush1.xpose.msra.mxu0 0.0
    %257 = vmatprep.subr.mxu0 0.0
    %258 = vmatpush1.xpose.msra.mxu0 0.0
    %259 = vmatprep.subr.mxu0 0.0
    %260 = vmatpush1.xpose.msra.mxu0 0.0
    %261 = vmatprep.subr.mxu0 0.0
    %262 = vmatpush1.xpose.msra.mxu0 0.0
    %263 = vmatprep.subr.mxu0 0.0
    %264 = vmatpush1.xpose.msra.mxu0 0.0
    %265 = vmatprep.subr.mxu0 0.0
    %266 = vmatpush1.xpose.msra.mxu0 0.0
    %267 = vmatprep.subr.mxu0 0.0
    %268 = vmatpush1.xpose.msra.mxu0 0.0
    %269 = vmatprep.subr.mxu0 0.0
    %270 = vmatpush1.xpose.msra.mxu0 0.0
    %271 = vmatprep.subr.mxu0 0.0
    %272 = vmatpush1.xpose.msra.mxu0 0.0
    %273 = vmatprep.subr.mxu0 0.0
    %274 = vmatpush1.xpose.msra.mxu0 0.0
    %275 = vmatprep.subr.mxu0 0.0
    %276 = vmatpush1.xpose.msra.mxu0 0.0
    %277 = vmatprep.subr.mxu0 0.0
    %278 = vmatpush1.xpose.msra.mxu0 0.0
    %279 = vmatprep.subr.mxu0 0.0
    %280 = vmatpush1.xpose.msra.mxu0 0.0
    %281 = vmatprep.subr.mxu0 0.0
    %282 = vmatpush1.xpose.msra.mxu0 0.0
    %283 = vmatprep.subr.mxu0 0.0
    %284 = vmatpush1.xpose.msra.mxu0 0.0
    %285 = vmatprep.subr.mxu0 0.0
    %286 = vmatpush1.xpose.msra.mxu0 0.0
    %287 = vmatprep.subr.mxu0 0.0
    %288 = vmatpush1.xpose.msra.mxu0 0.0
    %289 = vmatprep.subr.mxu0 0.0
    %290 = vmatpush1.xpose.msra.mxu0 0.0
    %291 = vmatprep.subr.mxu0 0.0
    %292 = vmatpush1.xpose.msra.mxu0 0.0
    %293 = vmatprep.subr.mxu0 0.0
    %294 = vmatpush1.xpose.msra.mxu0 0.0
    %295 = vmatprep.subr.mxu0 0.0
    %296 = vmatpush1.xpose.msra.mxu0 0.0
    %297 = vmatprep.subr.mxu0 0.0
    %298 = vmatpush1.xpose.msra.mxu0 0.0
    %299 = vmatprep.subr.mxu0 0.0
    %300 = vmatpush1.xpose.msra.mxu0 0.0
    %301 = vmatprep.subr.mxu0 0.0
    %302 = vmatpush1.xpose.msra.mxu0 0.0
    %303 = vmatprep.subr.mxu0 0.0
    %304 = vmatpush1.xpose.msra.mxu0 0.0
    %305 = vmatprep.subr.mxu0 0.0
    %306 = vmatpush1.xpose.msra.mxu0 0.0
    %307 = vmatprep.mubr.f32.mxu0 0.0
    %308 = vmatmul.mubr.f32.gmra.mrb[0].mxu0 %v239
    %v309 = vpop.f32.mrb[0].mxu0
    %v310 = vadd.f32 0.0, %v309
    %v311 = vpop.f32.mrb[0].mxu0
    %312 = vdwg.mxu0
    %313 = vrot.lane.b32.xlu0 %v150, 96
    %v314 = vpop.permute.xlu0 %313
    %v315 = vsel %vm162, %v150, 0
    %v317 = vsel %vm162, %v314, 0
    %319 = vmatprep.subr.mxu0 0.0
    %320 = vmatpush1.xpose.msra.mxu0 %v317
    %321 = vmatprep.subr.mxu0 0.0
    %322 = vmatpush1.xpose.msra.mxu0 0.0
    %323 = vmatprep.subr.mxu0 0.0
    %324 = vmatpush1.xpose.msra.mxu0 0.0
    %325 = vmatprep.subr.mxu0 0.0
    %326 = vmatpush1.xpose.msra.mxu0 0.0
    %327 = vmatprep.subr.mxu0 0.0
    %328 = vmatpush1.xpose.msra.mxu0 0.0
    %329 = vmatprep.subr.mxu0 0.0
    %330 = vmatpush1.xpose.msra.mxu0 0.0
    %331 = vmatprep.subr.mxu0 0.0
    %332 = vmatpush1.xpose.msra.mxu0 0.0
    %333 = vmatprep.subr.mxu0 0.0
    %334 = vmatpush1.xpose.msra.mxu0 0.0
    %335 = vmatprep.subr.mxu0 0.0
    %336 = vmatpush1.xpose.msra.mxu0 0.0
    %337 = vmatprep.subr.mxu0 0.0
    %338 = vmatpush1.xpose.msra.mxu0 0.0
    %339 = vmatprep.subr.mxu0 0.0
    %340 = vmatpush1.xpose.msra.mxu0 0.0
    %341 = vmatprep.subr.mxu0 0.0
    %342 = vmatpush1.xpose.msra.mxu0 0.0
    %343 = vmatprep.subr.mxu0 0.0
    %344 = vmatpush1.xpose.msra.mxu0 0.0
    %345 = vmatprep.subr.mxu0 0.0
    %346 = vmatpush1.xpose.msra.mxu0 0.0
    %347 = vmatprep.subr.mxu0 0.0
    %348 = vmatpush1.xpose.msra.mxu0 0.0
    %349 = vmatprep.subr.mxu0 0.0
    %350 = vmatpush1.xpose.msra.mxu0 0.0
    %351 = vmatprep.subr.mxu0 0.0
    %352 = vmatpush1.xpose.msra.mxu0 0.0
    %353 = vmatprep.subr.mxu0 0.0
    %354 = vmatpush1.xpose.msra.mxu0 0.0
    %355 = vmatprep.subr.mxu0 0.0
    %356 = vmatpush1.xpose.msra.mxu0 0.0
    %357 = vmatprep.subr.mxu0 0.0
    %358 = vmatpush1.xpose.msra.mxu0 0.0
    %359 = vmatprep.subr.mxu0 0.0
    %360 = vmatpush1.xpose.msra.mxu0 0.0
    %361 = vmatprep.subr.mxu0 0.0
    %362 = vmatpush1.xpose.msra.mxu0 0.0
    %363 = vmatprep.subr.mxu0 0.0
    %364 = vmatpush1.xpose.msra.mxu0 0.0
    %365 = vmatprep.subr.mxu0 0.0
    %366 = vmatpush1.xpose.msra.mxu0 0.0
    %367 = vmatprep.subr.mxu0 0.0
    %368 = vmatpush1.xpose.msra.mxu0 0.0
    %369 = vmatprep.subr.mxu0 0.0
    %370 = vmatpush1.xpose.msra.mxu0 0.0
    %371 = vmatprep.subr.mxu0 0.0
    %372 = vmatpush1.xpose.msra.mxu0 0.0
    %373 = vmatprep.subr.mxu0 0.0
    %374 = vmatpush1.xpose.msra.mxu0 0.0
    %375 = vmatprep.subr.mxu0 0.0
    %376 = vmatpush1.xpose.msra.mxu0 0.0
    %377 = vmatprep.subr.mxu0 0.0
    %378 = vmatpush1.xpose.msra.mxu0 0.0
    %379 = vmatprep.subr.mxu0 0.0
    %380 = vmatpush1.xpose.msra.mxu0 0.0
    %381 = vmatprep.subr.mxu0 0.0
    %382 = vmatpush1.xpose.msra.mxu0 0.0
    %383 = vmatprep.mubr.f32.mxu0 0.0
    %384 = vmatmul.mubr.f32.gmra.mrb[0].mxu0 %v315
    %v385 = vpop.f32.mrb[0].mxu0
    %v386 = vadd.f32 0.0, %v385
    %v387 = vpop.f32.mrb[0].mxu0
    %388 = vdwg.mxu0
    %389 = vrot.lane.b32.xlu0 %v152, 96
    %v390 = vpop.permute.xlu0 %389
    %v391 = vsel %vm162, %v152, 0
    %v393 = vsel %vm162, %v390, 0
    %395 = vmatprep.subr.mxu0 0.0
    %396 = vmatpush1.xpose.msra.mxu0 %v393
    %397 = vmatprep.subr.mxu0 0.0
    %398 = vmatpush1.xpose.msra.mxu0 0.0
    %399 = vmatprep.subr.mxu0 0.0
    %400 = vmatpush1.xpose.msra.mxu0 0.0
    %401 = vmatprep.subr.mxu0 0.0
    %402 = vmatpush1.xpose.msra.mxu0 0.0
    %403 = vmatprep.subr.mxu0 0.0
    %404 = vmatpush1.xpose.msra.mxu0 0.0
    %405 = vmatprep.subr.mxu0 0.0
    %406 = vmatpush1.xpose.msra.mxu0 0.0
    %407 = vmatprep.subr.mxu0 0.0
    %408 = vmatpush1.xpose.msra.mxu0 0.0
    %409 = vmatprep.subr.mxu0 0.0
    %410 = vmatpush1.xpose.msra.mxu0 0.0
    %411 = vmatprep.subr.mxu0 0.0
    %412 = vmatpush1.xpose.msra.mxu0 0.0
    %413 = vmatprep.subr.mxu0 0.0
    %414 = vmatpush1.xpose.msra.mxu0 0.0
    %415 = vmatprep.subr.mxu0 0.0
    %416 = vmatpush1.xpose.msra.mxu0 0.0
    %417 = vmatprep.subr.mxu0 0.0
    %418 = vmatpush1.xpose.msra.mxu0 0.0
    %419 = vmatprep.subr.mxu0 0.0
    %420 = vmatpush1.xpose.msra.mxu0 0.0
    %421 = vmatprep.subr.mxu0 0.0
    %422 = vmatpush1.xpose.msra.mxu0 0.0
    %423 = vmatprep.subr.mxu0 0.0
    %424 = vmatpush1.xpose.msra.mxu0 0.0
    %425 = vmatprep.subr.mxu0 0.0
    %426 = vmatpush1.xpose.msra.mxu0 0.0
    %427 = vmatprep.subr.mxu0 0.0
    %428 = vmatpush1.xpose.msra.mxu0 0.0
    %429 = vmatprep.subr.mxu0 0.0
    %430 = vmatpush1.xpose.msra.mxu0 0.0
    %431 = vmatprep.subr.mxu0 0.0
    %432 = vmatpush1.xpose.msra.mxu0 0.0
    %433 = vmatprep.subr.mxu0 0.0
    %434 = vmatpush1.xpose.msra.mxu0 0.0
    %435 = vmatprep.subr.mxu0 0.0
    %436 = vmatpush1.xpose.msra.mxu0 0.0
    %437 = vmatprep.subr.mxu0 0.0
    %438 = vmatpush1.xpose.msra.mxu0 0.0
    %439 = vmatprep.subr.mxu0 0.0
    %440 = vmatpush1.xpose.msra.mxu0 0.0
    %441 = vmatprep.subr.mxu0 0.0
    %442 = vmatpush1.xpose.msra.mxu0 0.0
    %443 = vmatprep.subr.mxu0 0.0
    %444 = vmatpush1.xpose.msra.mxu0 0.0
    %445 = vmatprep.subr.mxu0 0.0
    %446 = vmatpush1.xpose.msra.mxu0 0.0
    %447 = vmatprep.subr.mxu0 0.0
    %448 = vmatpush1.xpose.msra.mxu0 0.0
    %449 = vmatprep.subr.mxu0 0.0
    %450 = vmatpush1.xpose.msra.mxu0 0.0
    %451 = vmatprep.subr.mxu0 0.0
    %452 = vmatpush1.xpose.msra.mxu0 0.0
    %453 = vmatprep.subr.mxu0 0.0
    %454 = vmatpush1.xpose.msra.mxu0 0.0
    %455 = vmatprep.subr.mxu0 0.0
    %456 = vmatpush1.xpose.msra.mxu0 0.0
    %457 = vmatprep.subr.mxu0 0.0
    %458 = vmatpush1.xpose.msra.mxu0 0.0
    %459 = vmatprep.mubr.f32.mxu0 0.0
    %460 = vmatmul.mubr.f32.gmra.mrb[0].mxu0 %v391
    %v461 = vpop.f32.mrb[0].mxu0
    %v462 = vadd.f32 0.0, %v461
    %v463 = vpop.f32.mrb[0].mxu0
    %464 = vdwg.mxu0
    %465 = vrot.lane.b32.xlu0 %v143, 96
    %v466 = vpop.permute.xlu0 %465
    %v467 = vsel %vm162, %v143, 0
    %v469 = vsel %vm162, %v466, 0
    %471 = vmatprep.subr.mxu0 0.0
    %472 = vmatpush1.xpose.msra.mxu0 %v469
    %473 = vmatprep.subr.mxu0 0.0
    %474 = vmatpush1.xpose.msra.mxu0 0.0
    %475 = vmatprep.subr.mxu0 0.0
    %476 = vmatpush1.xpose.msra.mxu0 0.0
    %477 = vmatprep.subr.mxu0 0.0
    %478 = vmatpush1.xpose.msra.mxu0 0.0
    %479 = vmatprep.subr.mxu0 0.0
    %480 = vmatpush1.xpose.msra.mxu0 0.0
    %481 = vmatprep.subr.mxu0 0.0
    %482 = vmatpush1.xpose.msra.mxu0 0.0
    %483 = vmatprep.subr.mxu0 0.0
    %484 = vmatpush1.xpose.msra.mxu0 0.0
    %485 = vmatprep.subr.mxu0 0.0
    %486 = vmatpush1.xpose.msra.mxu0 0.0
    %487 = vmatprep.subr.mxu0 0.0
    %488 = vmatpush1.xpose.msra.mxu0 0.0
    %489 = vmatprep.subr.mxu0 0.0
    %490 = vmatpush1.xpose.msra.mxu0 0.0
    %491 = vmatprep.subr.mxu0 0.0
    %492 = vmatpush1.xpose.msra.mxu0 0.0
    %493 = vmatprep.subr.mxu0 0.0
    %494 = vmatpush1.xpose.msra.mxu0 0.0
    %495 = vmatprep.subr.mxu0 0.0
    %496 = vmatpush1.xpose.msra.mxu0 0.0
    %497 = vmatprep.subr.mxu0 0.0
    %498 = vmatpush1.xpose.msra.mxu0 0.0
    %499 = vmatprep.subr.mxu0 0.0
    %500 = vmatpush1.xpose.msra.mxu0 0.0
    %501 = vmatprep.subr.mxu0 0.0
    %502 = vmatpush1.xpose.msra.mxu0 0.0
    %503 = vmatprep.subr.mxu0 0.0
    %504 = vmatpush1.xpose.msra.mxu0 0.0
    %505 = vmatprep.subr.mxu0 0.0
    %506 = vmatpush1.xpose.msra.mxu0 0.0
    %507 = vmatprep.subr.mxu0 0.0
    %508 = vmatpush1.xpose.msra.mxu0 0.0
    %509 = vmatprep.subr.mxu0 0.0
    %510 = vmatpush1.xpose.msra.mxu0 0.0
    %511 = vmatprep.subr.mxu0 0.0
    %512 = vmatpush1.xpose.msra.mxu0 0.0
    %513 = vmatprep.subr.mxu0 0.0
    %514 = vmatpush1.xpose.msra.mxu0 0.0
    %515 = vmatprep.subr.mxu0 0.0
    %516 = vmatpush1.xpose.msra.mxu0 0.0
    %517 = vmatprep.subr.mxu0 0.0
    %518 = vmatpush1.xpose.msra.mxu0 0.0
    %519 = vmatprep.subr.mxu0 0.0
    %520 = vmatpush1.xpose.msra.mxu0 0.0
    %521 = vmatprep.subr.mxu0 0.0
    %522 = vmatpush1.xpose.msra.mxu0 0.0
    %523 = vmatprep.subr.mxu0 0.0
    %524 = vmatpush1.xpose.msra.mxu0 0.0
    %525 = vmatprep.subr.mxu0 0.0
    %526 = vmatpush1.xpose.msra.mxu0 0.0
    %527 = vmatprep.subr.mxu0 0.0
    %528 = vmatpush1.xpose.msra.mxu0 0.0
    %529 = vmatprep.subr.mxu0 0.0
    %530 = vmatpush1.xpose.msra.mxu0 0.0
    %531 = vmatprep.subr.mxu0 0.0
    %532 = vmatpush1.xpose.msra.mxu0 0.0
    %533 = vmatprep.subr.mxu0 0.0
    %534 = vmatpush1.xpose.msra.mxu0 0.0
    %535 = vmatprep.mubr.f32.mxu0 0.0
    %536 = vmatmul.mubr.f32.gmra.mrb[0].mxu0 %v467
    %v537 = vpop.f32.mrb[0].mxu0
    %v538 = vadd.f32 0.0, %v537
    %v539 = vpop.f32.mrb[0].mxu0
    %540 = vdwg.mxu0
    %541 = vrot.lane.b32.xlu0 %v155, 96
    %v542 = vpop.permute.xlu0 %541
    %v543 = vsel %vm162, %v155, 0
    %v545 = vsel %vm162, %v542, 0
    %547 = vmatprep.subr.mxu0 0.0
    %548 = vmatpush1.xpose.msra.mxu0 %v545
    %549 = vmatprep.subr.mxu0 0.0
    %550 = vmatpush1.xpose.msra.mxu0 0.0
    %551 = vmatprep.subr.mxu0 0.0
    %552 = vmatpush1.xpose.msra.mxu0 0.0
    %553 = vmatprep.subr.mxu0 0.0
    %554 = vmatpush1.xpose.msra.mxu0 0.0
    %555 = vmatprep.subr.mxu0 0.0
    %556 = vmatpush1.xpose.msra.mxu0 0.0
    %557 = vmatprep.subr.mxu0 0.0
    %558 = vmatpush1.xpose.msra.mxu0 0.0
    %559 = vmatprep.subr.mxu0 0.0
    %560 = vmatpush1.xpose.msra.mxu0 0.0
    %561 = vmatprep.subr.mxu0 0.0
    %562 = vmatpush1.xpose.msra.mxu0 0.0
    %563 = vmatprep.subr.mxu0 0.0
    %564 = vmatpush1.xpose.msra.mxu0 0.0
    %565 = vmatprep.subr.mxu0 0.0
    %566 = vmatpush1.xpose.msra.mxu0 0.0
    %567 = vmatprep.subr.mxu0 0.0
    %568 = vmatpush1.xpose.msra.mxu0 0.0
    %569 = vmatprep.subr.mxu0 0.0
    %570 = vmatpush1.xpose.msra.mxu0 0.0
    %571 = vmatprep.subr.mxu0 0.0
    %572 = vmatpush1.xpose.msra.mxu0 0.0
    %573 = vmatprep.subr.mxu0 0.0
    %574 = vmatpush1.xpose.msra.mxu0 0.0
    %575 = vmatprep.subr.mxu0 0.0
    %576 = vmatpush1.xpose.msra.mxu0 0.0
    %577 = vmatprep.subr.mxu0 0.0
    %578 = vmatpush1.xpose.msra.mxu0 0.0
    %579 = vmatprep.subr.mxu0 0.0
    %580 = vmatpush1.xpose.msra.mxu0 0.0
    %581 = vmatprep.subr.mxu0 0.0
    %582 = vmatpush1.xpose.msra.mxu0 0.0
    %583 = vmatprep.subr.mxu0 0.0
    %584 = vmatpush1.xpose.msra.mxu0 0.0
    %585 = vmatprep.subr.mxu0 0.0
    %586 = vmatpush1.xpose.msra.mxu0 0.0
    %587 = vmatprep.subr.mxu0 0.0
    %588 = vmatpush1.xpose.msra.mxu0 0.0
    %589 = vmatprep.subr.mxu0 0.0
    %590 = vmatpush1.xpose.msra.mxu0 0.0
    %591 = vmatprep.subr.mxu0 0.0
    %592 = vmatpush1.xpose.msra.mxu0 0.0
    %593 = vmatprep.subr.mxu0 0.0
    %594 = vmatpush1.xpose.msra.mxu0 0.0
    %595 = vmatprep.subr.mxu0 0.0
    %596 = vmatpush1.xpose.msra.mxu0 0.0
    %597 = vmatprep.subr.mxu0 0.0
    %598 = vmatpush1.xpose.msra.mxu0 0.0
    %599 = vmatprep.subr.mxu0 0.0
    %600 = vmatpush1.xpose.msra.mxu0 0.0
    %601 = vmatprep.subr.mxu0 0.0
    %602 = vmatpush1.xpose.msra.mxu0 0.0
    %603 = vmatprep.subr.mxu0 0.0
    %604 = vmatpush1.xpose.msra.mxu0 0.0
    %605 = vmatprep.subr.mxu0 0.0
    %606 = vmatpush1.xpose.msra.mxu0 0.0
    %607 = vmatprep.subr.mxu0 0.0
    %608 = vmatpush1.xpose.msra.mxu0 0.0
    %609 = vmatprep.subr.mxu0 0.0
    %610 = vmatpush1.xpose.msra.mxu0 0.0
    %611 = vmatprep.mubr.f32.mxu0 0.0
    %612 = vmatmul.mubr.f32.gmra.mrb[0].mxu0 %v543
    %v613 = vpop.f32.mrb[0].mxu0
    %v614 = vadd.f32 0.0, %v613
    %v615 = vpop.f32.mrb[0].mxu0
    %616 = vdwg.mxu0
    %617 = vrot.lane.b32.xlu0 %v157, 96
    %v618 = vpop.permute.xlu0 %617
    %v619 = vsel %vm162, %v157, 0
    %v621 = vsel %vm162, %v618, 0
    %623 = vmatprep.subr.mxu0 0.0
    %624 = vmatpush1.xpose.msra.mxu0 %v621
    %625 = vmatprep.subr.mxu0 0.0
    %626 = vmatpush1.xpose.msra.mxu0 0.0
    %627 = vmatprep.subr.mxu0 0.0
    %628 = vmatpush1.xpose.msra.mxu0 0.0
    %629 = vmatprep.subr.mxu0 0.0
    %630 = vmatpush1.xpose.msra.mxu0 0.0
    %631 = vmatprep.subr.mxu0 0.0
    %632 = vmatpush1.xpose.msra.mxu0 0.0
    %633 = vmatprep.subr.mxu0 0.0
    %634 = vmatpush1.xpose.msra.mxu0 0.0
    %635 = vmatprep.subr.mxu0 0.0
    %636 = vmatpush1.xpose.msra.mxu0 0.0
    %637 = vmatprep.subr.mxu0 0.0
    %638 = vmatpush1.xpose.msra.mxu0 0.0
    %639 = vmatprep.subr.mxu0 0.0
    %640 = vmatpush1.xpose.msra.mxu0 0.0
    %641 = vmatprep.subr.mxu0 0.0
    %642 = vmatpush1.xpose.msra.mxu0 0.0
    %643 = vmatprep.subr.mxu0 0.0
    %644 = vmatpush1.xpose.msra.mxu0 0.0
    %645 = vmatprep.subr.mxu0 0.0
    %646 = vmatpush1.xpose.msra.mxu0 0.0
    %647 = vmatprep.subr.mxu0 0.0
    %648 = vmatpush1.xpose.msra.mxu0 0.0
    %649 = vmatprep.subr.mxu0 0.0
    %650 = vmatpush1.xpose.msra.mxu0 0.0
    %651 = vmatprep.subr.mxu0 0.0
    %652 = vmatpush1.xpose.msra.mxu0 0.0
    %653 = vmatprep.subr.mxu0 0.0
    %654 = vmatpush1.xpose.msra.mxu0 0.0
    %655 = vmatprep.subr.mxu0 0.0
    %656 = vmatpush1.xpose.msra.mxu0 0.0
    %657 = vmatprep.subr.mxu0 0.0
    %658 = vmatpush1.xpose.msra.mxu0 0.0
    %659 = vmatprep.subr.mxu0 0.0
    %660 = vmatpush1.xpose.msra.mxu0 0.0
    %661 = vmatprep.subr.mxu0 0.0
    %662 = vmatpush1.xpose.msra.mxu0 0.0
    %663 = vmatprep.subr.mxu0 0.0
    %664 = vmatpush1.xpose.msra.mxu0 0.0
    %665 = vmatprep.subr.mxu0 0.0
    %666 = vmatpush1.xpose.msra.mxu0 0.0
    %667 = vmatprep.subr.mxu0 0.0
    %668 = vmatpush1.xpose.msra.mxu0 0.0
    %669 = vmatprep.subr.mxu0 0.0
    %670 = vmatpush1.xpose.msra.mxu0 0.0
    %671 = vmatprep.subr.mxu0 0.0
    %672 = vmatpush1.xpose.msra.mxu0 0.0
    %673 = vmatprep.subr.mxu0 0.0
    %674 = vmatpush1.xpose.msra.mxu0 0.0
    %675 = vmatprep.subr.mxu0 0.0
    %676 = vmatpush1.xpose.msra.mxu0 0.0
    %677 = vmatprep.subr.mxu0 0.0
    %678 = vmatpush1.xpose.msra.mxu0 0.0
    %679 = vmatprep.subr.mxu0 0.0
    %680 = vmatpush1.xpose.msra.mxu0 0.0
    %681 = vmatprep.subr.mxu0 0.0
    %682 = vmatpush1.xpose.msra.mxu0 0.0
    %683 = vmatprep.subr.mxu0 0.0
    %684 = vmatpush1.xpose.msra.mxu0 0.0
    %685 = vmatprep.subr.mxu0 0.0
    %686 = vmatpush1.xpose.msra.mxu0 0.0
    %687 = vmatprep.mubr.f32.mxu0 0.0
    %688 = vmatmul.mubr.f32.gmra.mrb[0].mxu0 %v619
    %v689 = vpop.f32.mrb[0].mxu0
    %v690 = vadd.f32 0.0, %v689
    %v691 = vpop.f32.mrb[0].mxu0
    %692 = vdwg.mxu0
    %693 = vrot.lane.b32.xlu0 %v159, 96
    %v694 = vpop.permute.xlu0 %693
    %v695 = vsel %vm162, %v159, 0
    %v697 = vsel %vm162, %v694, 0
    %699 = vmatprep.subr.mxu0 0.0
    %700 = vmatpush1.xpose.msra.mxu0 %v697
    %701 = vmatprep.subr.mxu0 0.0
    %702 = vmatpush1.xpose.msra.mxu0 0.0
    %703 = vmatprep.subr.mxu0 0.0
    %704 = vmatpush1.xpose.msra.mxu0 0.0
    %705 = vmatprep.subr.mxu0 0.0
    %706 = vmatpush1.xpose.msra.mxu0 0.0
    %707 = vmatprep.subr.mxu0 0.0
    %708 = vmatpush1.xpose.msra.mxu0 0.0
    %709 = vmatprep.subr.mxu0 0.0
    %710 = vmatpush1.xpose.msra.mxu0 0.0
    %711 = vmatprep.subr.mxu0 0.0
    %712 = vmatpush1.xpose.msra.mxu0 0.0
    %713 = vmatprep.subr.mxu0 0.0
    %714 = vmatpush1.xpose.msra.mxu0 0.0
    %715 = vmatprep.subr.mxu0 0.0
    %716 = vmatpush1.xpose.msra.mxu0 0.0
    %717 = vmatprep.subr.mxu0 0.0
    %718 = vmatpush1.xpose.msra.mxu0 0.0
    %719 = vmatprep.subr.mxu0 0.0
    %720 = vmatpush1.xpose.msra.mxu0 0.0
    %721 = vmatprep.subr.mxu0 0.0
    %722 = vmatpush1.xpose.msra.mxu0 0.0
    %723 = vmatprep.subr.mxu0 0.0
    %724 = vmatpush1.xpose.msra.mxu0 0.0
    %725 = vmatprep.subr.mxu0 0.0
    %726 = vmatpush1.xpose.msra.mxu0 0.0
    %727 = vmatprep.subr.mxu0 0.0
    %728 = vmatpush1.xpose.msra.mxu0 0.0
    %729 = vmatprep.subr.mxu0 0.0
    %730 = vmatpush1.xpose.msra.mxu0 0.0
    %731 = vmatprep.subr.mxu0 0.0
    %732 = vmatpush1.xpose.msra.mxu0 0.0
    %733 = vmatprep.subr.mxu0 0.0
    %734 = vmatpush1.xpose.msra.mxu0 0.0
    %735 = vmatprep.subr.mxu0 0.0
    %736 = vmatpush1.xpose.msra.mxu0 0.0
    %737 = vmatprep.subr.mxu0 0.0
    %738 = vmatpush1.xpose.msra.mxu0 0.0
    %739 = vmatprep.subr.mxu0 0.0
    %740 = vmatpush1.xpose.msra.mxu0 0.0
    %741 = vmatprep.subr.mxu0 0.0
    %742 = vmatpush1.xpose.msra.mxu0 0.0
    %743 = vmatprep.subr.mxu0 0.0
    %744 = vmatpush1.xpose.msra.mxu0 0.0
    %745 = vmatprep.subr.mxu0 0.0
    %746 = vmatpush1.xpose.msra.mxu0 0.0
    %747 = vmatprep.subr.mxu0 0.0
    %748 = vmatpush1.xpose.msra.mxu0 0.0
    %749 = vmatprep.subr.mxu0 0.0
    %750 = vmatpush1.xpose.msra.mxu0 0.0
    %751 = vmatprep.subr.mxu0 0.0
    %752 = vmatpush1.xpose.msra.mxu0 0.0
    %753 = vmatprep.subr.mxu0 0.0
    %754 = vmatpush1.xpose.msra.mxu0 0.0
    %755 = vmatprep.subr.mxu0 0.0
    %756 = vmatpush1.xpose.msra.mxu0 0.0
    %757 = vmatprep.subr.mxu0 0.0
    %758 = vmatpush1.xpose.msra.mxu0 0.0
    %759 = vmatprep.subr.mxu0 0.0
    %760 = vmatpush1.xpose.msra.mxu0 0.0
    %761 = vmatprep.subr.mxu0 0.0
    %762 = vmatpush1.xpose.msra.mxu0 0.0
    %763 = vmatprep.mubr.f32.mxu0 0.0
    %764 = vmatmul.mubr.f32.gmra.mrb[0].mxu0 %v695
    %v765 = vpop.f32.mrb[0].mxu0
    %v766 = vadd.f32 0.0, %v765
    %v767 = vpop.f32.mrb[0].mxu0
    %768 = vdwg.mxu0
    %v769 = vsel %vm162, %v234, -inf
    %770 = vmax.xlane.f32.xlu0 %v769
    %v771 = vpop.xlane.xlu0 %770
    %v772 = vsel %vm162, %v310, -inf
    %773 = vmax.xlane.f32.xlu0 %v772
    %v774 = vpop.xlane.xlu0 %773
    %v775 = vsel %vm162, %v386, -inf
    %776 = vmax.xlane.f32.xlu0 %v775
    %v777 = vpop.xlane.xlu0 %776
    %v778 = vsel %vm162, %v462, -inf
    %779 = vmax.xlane.f32.xlu0 %v778
    %v780 = vpop.xlane.xlu0 %779
    %v781 = vsel %vm162, %v538, -inf
    %782 = vmax.xlane.f32.xlu0 %v781
    %v783 = vpop.xlane.xlu0 %782
    %v784 = vsel %vm162, %v614, -inf
    %785 = vmax.xlane.f32.xlu0 %v784
    %v786 = vpop.xlane.xlu0 %785
    %v787 = vsel %vm162, %v690, -inf
    %788 = vmax.xlane.f32.xlu0 %v787
    %v789 = vpop.xlane.xlu0 %788
    %v790 = vsel %vm162, %v766, -inf
    %791 = vmax.xlane.f32.xlu0 %v790
    %v792 = vpop.xlane.xlu0 %791
    %v793 = vsub.f32 %v234, %v771
    %v794 = vsub.f32 %v310, %v774
    %v795 = vsub.f32 %v386, %v777
    %v796 = vsub.f32 %v462, %v780
    %v797 = vsub.f32 %v538, %v783
    %v798 = vsub.f32 %v614, %v786
    %v799 = vsub.f32 %v690, %v789
    %v800 = vsub.f32 %v766, %v792
    %v801 = vmul.f32 %v793, 1.442695
    %v802 = vpow.pop %v801
    %v803 = vmul.f32 %v794, 1.442695
    %v804 = vpow.pop %v803
    %v805 = vmul.f32 %v795, 1.442695
    %v806 = vpow.pop %v805
    %v807 = vmul.f32 %v796, 1.442695
    %v808 = vpow.pop %v807
    %v809 = vmul.f32 %v797, 1.442695
    %v810 = vpow.pop %v809
    %v811 = vmul.f32 %v798, 1.442695
    %v812 = vpow.pop %v811
    %v813 = vmul.f32 %v799, 1.442695
    %v814 = vpow.pop %v813
    %v815 = vmul.f32 %v800, 1.442695
    %v816 = vpow.pop %v815
    %v817 = vsel %vm162, %v802, 0.0
    %818 = vadd.xlane.f32.xlu0 %v817
    %v819 = vpop.xlane.xlu0 %818
    %v820 = vsel %vm162, %v804, 0.0
    %821 = vadd.xlane.f32.xlu0 %v820
    %v822 = vpop.xlane.xlu0 %821
    %v823 = vsel %vm162, %v806, 0.0
    %824 = vadd.xlane.f32.xlu0 %v823
    %v825 = vpop.xlane.xlu0 %824
    %v826 = vsel %vm162, %v808, 0.0
    %827 = vadd.xlane.f32.xlu0 %v826
    %v828 = vpop.xlane.xlu0 %827
    %v829 = vsel %vm162, %v810, 0.0
    %830 = vadd.xlane.f32.xlu0 %v829
    %v831 = vpop.xlane.xlu0 %830
    %v832 = vsel %vm162, %v812, 0.0
    %833 = vadd.xlane.f32.xlu0 %v832
    %v834 = vpop.xlane.xlu0 %833
    %v835 = vsel %vm162, %v814, 0.0
    %836 = vadd.xlane.f32.xlu0 %v835
    %v837 = vpop.xlane.xlu0 %836
    %v838 = vsel %vm162, %v816, 0.0
    %839 = vadd.xlane.f32.xlu0 %v838
    %v840 = vpop.xlane.xlu0 %839
    %v841 = vrcp.pop %v819
    %v842 = vrcp.pop %v822
    %v843 = vrcp.pop %v825
    %v844 = vrcp.pop %v828
    %v845 = vrcp.pop %v831
    %v846 = vrcp.pop %v834
    %v847 = vrcp.pop %v837
    %v848 = vrcp.pop %v840
    %v849 = vmul.f32 %v802, %v841
    %v850 = vmul.f32 %v804, %v842
    %v851 = vmul.f32 %v806, %v843
    %v852 = vmul.f32 %v808, %v844
    %v853 = vmul.f32 %v810, %v845
    %v854 = vmul.f32 %v812, %v846
    %v855 = vmul.f32 %v814, %v847
    %v856 = vmul.f32 %v816, %v848
    %857 = vrot.lane.b32.xlu0 %v138, 64
    %v858 = vpop.permute.xlu0 %857
    %v861 = vsel %vm162, %v849, 0
    %863 = vmatprep.subr.mxu0 0.0
    %864 = vmatpush1.msra.mxu0 %v858
    %865 = vmatprep.subr.mxu0 0.0
    %866 = vmatpush1.msra.mxu0 0.0
    %867 = vmatprep.subr.mxu0 0.0
    %868 = vmatpush1.msra.mxu0 0.0
    %869 = vmatprep.subr.mxu0 0.0
    %870 = vmatpush1.msra.mxu0 0.0
    %871 = vmatprep.subr.mxu0 0.0
    %872 = vmatpush1.msra.mxu0 0.0
    %873 = vmatprep.subr.mxu0 0.0
    %874 = vmatpush1.msra.mxu0 0.0
    %875 = vmatprep.subr.mxu0 0.0
    %876 = vmatpush1.msra.mxu0 0.0
    %877 = vmatprep.subr.mxu0 0.0
    %878 = vmatpush1.msra.mxu0 0.0
    %879 = vmatprep.subr.mxu0 0.0
    %880 = vmatpush1.msra.mxu0 0.0
    %881 = vmatprep.subr.mxu0 0.0
    %882 = vmatpush1.msra.mxu0 0.0
    %883 = vmatprep.subr.mxu0 0.0
    %884 = vmatpush1.msra.mxu0 0.0
    %885 = vmatprep.subr.mxu0 0.0
    %886 = vmatpush1.msra.mxu0 0.0
    %887 = vmatprep.subr.mxu0 0.0
    %888 = vmatpush1.msra.mxu0 0.0
    %889 = vmatprep.subr.mxu0 0.0
    %890 = vmatpush1.msra.mxu0 0.0
    %891 = vmatprep.subr.mxu0 0.0
    %892 = vmatpush1.msra.mxu0 0.0
    %893 = vmatprep.subr.mxu0 0.0
    %894 = vmatpush1.msra.mxu0 0.0
    %895 = vmatprep.subr.mxu0 0.0
    %896 = vmatpush1.msra.mxu0 0.0
    %897 = vmatprep.subr.mxu0 0.0
    %898 = vmatpush1.msra.mxu0 0.0
    %899 = vmatprep.subr.mxu0 0.0
    %900 = vmatpush1.msra.mxu0 0.0
    %901 = vmatprep.subr.mxu0 0.0
    %902 = vmatpush1.msra.mxu0 0.0
    %903 = vmatprep.subr.mxu0 0.0
    %904 = vmatpush1.msra.mxu0 0.0
    %905 = vmatprep.subr.mxu0 0.0
    %906 = vmatpush1.msra.mxu0 0.0
    %907 = vmatprep.subr.mxu0 0.0
    %908 = vmatpush1.msra.mxu0 0.0
    %909 = vmatprep.subr.mxu0 0.0
    %910 = vmatpush1.msra.mxu0 0.0
    %911 = vmatprep.subr.mxu0 0.0
    %912 = vmatpush1.msra.mxu0 0.0
    %913 = vmatprep.subr.mxu0 0.0
    %914 = vmatpush1.msra.mxu0 0.0
    %915 = vmatprep.subr.mxu0 0.0
    %916 = vmatpush1.msra.mxu0 0.0
    %917 = vmatprep.subr.mxu0 0.0
    %918 = vmatpush1.msra.mxu0 0.0
    %919 = vmatprep.subr.mxu0 0.0
    %920 = vmatpush1.msra.mxu0 0.0
    %921 = vmatprep.subr.mxu0 0.0
    %922 = vmatpush1.msra.mxu0 0.0
    %923 = vmatprep.subr.mxu0 0.0
    %924 = vmatpush1.msra.mxu0 0.0
    %925 = vmatprep.subr.mxu0 0.0
    %926 = vmatpush1.msra.mxu0 0.0
    %927 = vmatprep.mubr.f32.mxu0 0.0
    %928 = vmatmul.mubr.f32.gmra.mrb[0].mxu0 %v861
    %v929 = vpop.f32.mrb[0].mxu0
    %v930 = vadd.f32 0.0, %v929
    %v931 = vpop.f32.mrb[0].mxu0
    %932 = vdwg.mxu0
    %933 = vrot.lane.b32.xlu0 %v148, 64
    %v934 = vpop.permute.xlu0 %933
    %v937 = vsel %vm162, %v850, 0
    %939 = vmatprep.subr.mxu0 0.0
    %940 = vmatpush1.msra.mxu0 %v934
    %941 = vmatprep.subr.mxu0 0.0
    %942 = vmatpush1.msra.mxu0 0.0
    %943 = vmatprep.subr.mxu0 0.0
    %944 = vmatpush1.msra.mxu0 0.0
    %945 = vmatprep.subr.mxu0 0.0
    %946 = vmatpush1.msra.mxu0 0.0
    %947 = vmatprep.subr.mxu0 0.0
    %948 = vmatpush1.msra.mxu0 0.0
    %949 = vmatprep.subr.mxu0 0.0
    %950 = vmatpush1.msra.mxu0 0.0
    %951 = vmatprep.subr.mxu0 0.0
    %952 = vmatpush1.msra.mxu0 0.0
    %953 = vmatprep.subr.mxu0 0.0
    %954 = vmatpush1.msra.mxu0 0.0
    %955 = vmatprep.subr.mxu0 0.0
    %956 = vmatpush1.msra.mxu0 0.0
    %957 = vmatprep.subr.mxu0 0.0
    %958 = vmatpush1.msra.mxu0 0.0
    %959 = vmatprep.subr.mxu0 0.0
    %960 = vmatpush1.msra.mxu0 0.0
    %961 = vmatprep.subr.mxu0 0.0
    %962 = vmatpush1.msra.mxu0 0.0
    %963 = vmatprep.subr.mxu0 0.0
    %964 = vmatpush1.msra.mxu0 0.0
    %965 = vmatprep.subr.mxu0 0.0
    %966 = vmatpush1.msra.mxu0 0.0
    %967 = vmatprep.subr.mxu0 0.0
    %968 = vmatpush1.msra.mxu0 0.0
    %969 = vmatprep.subr.mxu0 0.0
    %970 = vmatpush1.msra.mxu0 0.0
    %971 = vmatprep.subr.mxu0 0.0
    %972 = vmatpush1.msra.mxu0 0.0
    %973 = vmatprep.subr.mxu0 0.0
    %974 = vmatpush1.msra.mxu0 0.0
    %975 = vmatprep.subr.mxu0 0.0
    %976 = vmatpush1.msra.mxu0 0.0
    %977 = vmatprep.subr.mxu0 0.0
    %978 = vmatpush1.msra.mxu0 0.0
    %979 = vmatprep.subr.mxu0 0.0
    %980 = vmatpush1.msra.mxu0 0.0
    %981 = vmatprep.subr.mxu0 0.0
    %982 = vmatpush1.msra.mxu0 0.0
    %983 = vmatprep.subr.mxu0 0.0
    %984 = vmatpush1.msra.mxu0 0.0
    %985 = vmatprep.subr.mxu0 0.0
    %986 = vmatpush1.msra.mxu0 0.0
    %987 = vmatprep.subr.mxu0 0.0
    %988 = vmatpush1.msra.mxu0 0.0
    %989 = vmatprep.subr.mxu0 0.0
    %990 = vmatpush1.msra.mxu0 0.0
    %991 = vmatprep.subr.mxu0 0.0
    %992 = vmatpush1.msra.mxu0 0.0
    %993 = vmatprep.subr.mxu0 0.0
    %994 = vmatpush1.msra.mxu0 0.0
    %995 = vmatprep.subr.mxu0 0.0
    %996 = vmatpush1.msra.mxu0 0.0
    %997 = vmatprep.subr.mxu0 0.0
    %998 = vmatpush1.msra.mxu0 0.0
    %999 = vmatprep.subr.mxu0 0.0
    %1000 = vmatpush1.msra.mxu0 0.0
    %1001 = vmatprep.subr.mxu0 0.0
    %1002 = vmatpush1.msra.mxu0 0.0
    %1003 = vmatprep.mubr.f32.mxu0 0.0
    %1004 = vmatmul.mubr.f32.gmra.mrb[0].mxu0 %v937
    %v1005 = vpop.f32.mrb[0].mxu0
    %v1006 = vadd.f32 0.0, %v1005
    %v1007 = vpop.f32.mrb[0].mxu0
    %1008 = vdwg.mxu0
    %1009 = vrot.lane.b32.xlu0 %v150, 64
    %v1010 = vpop.permute.xlu0 %1009
    %v1013 = vsel %vm162, %v851, 0
    %1015 = vmatprep.subr.mxu0 0.0
    %1016 = vmatpush1.msra.mxu0 %v1010
    %1017 = vmatprep.subr.mxu0 0.0
    %1018 = vmatpush1.msra.mxu0 0.0
    %1019 = vmatprep.subr.mxu0 0.0
    %1020 = vmatpush1.msra.mxu0 0.0
    %1021 = vmatprep.subr.mxu0 0.0
    %1022 = vmatpush1.msra.mxu0 0.0
    %1023 = vmatprep.subr.mxu0 0.0
    %1024 = vmatpush1.msra.mxu0 0.0
    %1025 = vmatprep.subr.mxu0 0.0
    %1026 = vmatpush1.msra.mxu0 0.0
    %1027 = vmatprep.subr.mxu0 0.0
    %1028 = vmatpush1.msra.mxu0 0.0
    %1029 = vmatprep.subr.mxu0 0.0
    %1030 = vmatpush1.msra.mxu0 0.0
    %1031 = vmatprep.subr.mxu0 0.0
    %1032 = vmatpush1.msra.mxu0 0.0
    %1033 = vmatprep.subr.mxu0 0.0
    %1034 = vmatpush1.msra.mxu0 0.0
    %1035 = vmatprep.subr.mxu0 0.0
    %1036 = vmatpush1.msra.mxu0 0.0
    %1037 = vmatprep.subr.mxu0 0.0
    %1038 = vmatpush1.msra.mxu0 0.0
    %1039 = vmatprep.subr.mxu0 0.0
    %1040 = vmatpush1.msra.mxu0 0.0
    %1041 = vmatprep.subr.mxu0 0.0
    %1042 = vmatpush1.msra.mxu0 0.0
    %1043 = vmatprep.subr.mxu0 0.0
    %1044 = vmatpush1.msra.mxu0 0.0
    %1045 = vmatprep.subr.mxu0 0.0
    %1046 = vmatpush1.msra.mxu0 0.0
    %1047 = vmatprep.subr.mxu0 0.0
    %1048 = vmatpush1.msra.mxu0 0.0
    %1049 = vmatprep.subr.mxu0 0.0
    %1050 = vmatpush1.msra.mxu0 0.0
    %1051 = vmatprep.subr.mxu0 0.0
    %1052 = vmatpush1.msra.mxu0 0.0
    %1053 = vmatprep.subr.mxu0 0.0
    %1054 = vmatpush1.msra.mxu0 0.0
    %1055 = vmatprep.subr.mxu0 0.0
    %1056 = vmatpush1.msra.mxu0 0.0
    %1057 = vmatprep.subr.mxu0 0.0
    %1058 = vmatpush1.msra.mxu0 0.0
    %1059 = vmatprep.subr.mxu0 0.0
    %1060 = vmatpush1.msra.mxu0 0.0
    %1061 = vmatprep.subr.mxu0 0.0
    %1062 = vmatpush1.msra.mxu0 0.0
    %1063 = vmatprep.subr.mxu0 0.0
    %1064 = vmatpush1.msra.mxu0 0.0
    %1065 = vmatprep.subr.mxu0 0.0
    %1066 = vmatpush1.msra.mxu0 0.0
    %1067 = vmatprep.subr.mxu0 0.0
    %1068 = vmatpush1.msra.mxu0 0.0
    %1069 = vmatprep.subr.mxu0 0.0
    %1070 = vmatpush1.msra.mxu0 0.0
    %1071 = vmatprep.subr.mxu0 0.0
    %1072 = vmatpush1.msra.mxu0 0.0
    %1073 = vmatprep.subr.mxu0 0.0
    %1074 = vmatpush1.msra.mxu0 0.0
    %1075 = vmatprep.subr.mxu0 0.0
    %1076 = vmatpush1.msra.mxu0 0.0
    %1077 = vmatprep.subr.mxu0 0.0
    %1078 = vmatpush1.msra.mxu0 0.0
    %1079 = vmatprep.mubr.f32.mxu0 0.0
    %1080 = vmatmul.mubr.f32.gmra.mrb[0].mxu0 %v1013
    %v1081 = vpop.f32.mrb[0].mxu0
    %v1082 = vadd.f32 0.0, %v1081
    %v1083 = vpop.f32.mrb[0].mxu0
    %1084 = vdwg.mxu0
    %1085 = vrot.lane.b32.xlu0 %v152, 64
    %v1086 = vpop.permute.xlu0 %1085
    %v1089 = vsel %vm162, %v852, 0
    %1091 = vmatprep.subr.mxu0 0.0
    %1092 = vmatpush1.msra.mxu0 %v1086
    %1093 = vmatprep.subr.mxu0 0.0
    %1094 = vmatpush1.msra.mxu0 0.0
    %1095 = vmatprep.subr.mxu0 0.0
    %1096 = vmatpush1.msra.mxu0 0.0
    %1097 = vmatprep.subr.mxu0 0.0
    %1098 = vmatpush1.msra.mxu0 0.0
    %1099 = vmatprep.subr.mxu0 0.0
    %1100 = vmatpush1.msra.mxu0 0.0
    %1101 = vmatprep.subr.mxu0 0.0
    %1102 = vmatpush1.msra.mxu0 0.0
    %1103 = vmatprep.subr.mxu0 0.0
    %1104 = vmatpush1.msra.mxu0 0.0
    %1105 = vmatprep.subr.mxu0 0.0
    %1106 = vmatpush1.msra.mxu0 0.0
    %1107 = vmatprep.subr.mxu0 0.0
    %1108 = vmatpush1.msra.mxu0 0.0
    %1109 = vmatprep.subr.mxu0 0.0
    %1110 = vmatpush1.msra.mxu0 0.0
    %1111 = vmatprep.subr.mxu0 0.0
    %1112 = vmatpush1.msra.mxu0 0.0
    %1113 = vmatprep.subr.mxu0 0.0
    %1114 = vmatpush1.msra.mxu0 0.0
    %1115 = vmatprep.subr.mxu0 0.0
    %1116 = vmatpush1.msra.mxu0 0.0
    %1117 = vmatprep.subr.mxu0 0.0
    %1118 = vmatpush1.msra.mxu0 0.0
    %1119 = vmatprep.subr.mxu0 0.0
    %1120 = vmatpush1.msra.mxu0 0.0
    %1121 = vmatprep.subr.mxu0 0.0
    %1122 = vmatpush1.msra.mxu0 0.0
    %1123 = vmatprep.subr.mxu0 0.0
    %1124 = vmatpush1.msra.mxu0 0.0
    %1125 = vmatprep.subr.mxu0 0.0
    %1126 = vmatpush1.msra.mxu0 0.0
    %1127 = vmatprep.subr.mxu0 0.0
    %1128 = vmatpush1.msra.mxu0 0.0
    %1129 = vmatprep.subr.mxu0 0.0
    %1130 = vmatpush1.msra.mxu0 0.0
    %1131 = vmatprep.subr.mxu0 0.0
    %1132 = vmatpush1.msra.mxu0 0.0
    %1133 = vmatprep.subr.mxu0 0.0
    %1134 = vmatpush1.msra.mxu0 0.0
    %1135 = vmatprep.subr.mxu0 0.0
    %1136 = vmatpush1.msra.mxu0 0.0
    %1137 = vmatprep.subr.mxu0 0.0
    %1138 = vmatpush1.msra.mxu0 0.0
    %1139 = vmatprep.subr.mxu0 0.0
    %1140 = vmatpush1.msra.mxu0 0.0
    %1141 = vmatprep.subr.mxu0 0.0
    %1142 = vmatpush1.msra.mxu0 0.0
    %1143 = vmatprep.subr.mxu0 0.0
    %1144 = vmatpush1.msra.mxu0 0.0
    %1145 = vmatprep.subr.mxu0 0.0
    %1146 = vmatpush1.msra.mxu0 0.0
    %1147 = vmatprep.subr.mxu0 0.0
    %1148 = vmatpush1.msra.mxu0 0.0
    %1149 = vmatprep.subr.mxu0 0.0
    %1150 = vmatpush1.msra.mxu0 0.0
    %1151 = vmatprep.subr.mxu0 0.0
    %1152 = vmatpush1.msra.mxu0 0.0
    %1153 = vmatprep.subr.mxu0 0.0
    %1154 = vmatpush1.msra.mxu0 0.0
    %1155 = vmatprep.mubr.f32.mxu0 0.0
    %1156 = vmatmul.mubr.f32.gmra.mrb[0].mxu0 %v1089
    %v1157 = vpop.f32.mrb[0].mxu0
    %v1158 = vadd.f32 0.0, %v1157
    %v1159 = vpop.f32.mrb[0].mxu0
    %1160 = vdwg.mxu0
    %1161 = vrot.lane.b32.xlu0 %v143, 64
    %v1162 = vpop.permute.xlu0 %1161
    %v1165 = vsel %vm162, %v853, 0
    %1167 = vmatprep.subr.mxu0 0.0
    %1168 = vmatpush1.msra.mxu0 %v1162
    %1169 = vmatprep.subr.mxu0 0.0
    %1170 = vmatpush1.msra.mxu0 0.0
    %1171 = vmatprep.subr.mxu0 0.0
    %1172 = vmatpush1.msra.mxu0 0.0
    %1173 = vmatprep.subr.mxu0 0.0
    %1174 = vmatpush1.msra.mxu0 0.0
    %1175 = vmatprep.subr.mxu0 0.0
    %1176 = vmatpush1.msra.mxu0 0.0
    %1177 = vmatprep.subr.mxu0 0.0
    %1178 = vmatpush1.msra.mxu0 0.0
    %1179 = vmatprep.subr.mxu0 0.0
    %1180 = vmatpush1.msra.mxu0 0.0
    %1181 = vmatprep.subr.mxu0 0.0
    %1182 = vmatpush1.msra.mxu0 0.0
    %1183 = vmatprep.subr.mxu0 0.0
    %1184 = vmatpush1.msra.mxu0 0.0
    %1185 = vmatprep.subr.mxu0 0.0
    %1186 = vmatpush1.msra.mxu0 0.0
    %1187 = vmatprep.subr.mxu0 0.0
    %1188 = vmatpush1.msra.mxu0 0.0
    %1189 = vmatprep.subr.mxu0 0.0
    %1190 = vmatpush1.msra.mxu0 0.0
    %1191 = vmatprep.subr.mxu0 0.0
    %1192 = vmatpush1.msra.mxu0 0.0
    %1193 = vmatprep.subr.mxu0 0.0
    %1194 = vmatpush1.msra.mxu0 0.0
    %1195 = vmatprep.subr.mxu0 0.0
    %1196 = vmatpush1.msra.mxu0 0.0
    %1197 = vmatprep.subr.mxu0 0.0
    %1198 = vmatpush1.msra.mxu0 0.0
    %1199 = vmatprep.subr.mxu0 0.0
    %1200 = vmatpush1.msra.mxu0 0.0
    %1201 = vmatprep.subr.mxu0 0.0
    %1202 = vmatpush1.msra.mxu0 0.0
    %1203 = vmatprep.subr.mxu0 0.0
    %1204 = vmatpush1.msra.mxu0 0.0
    %1205 = vmatprep.subr.mxu0 0.0
    %1206 = vmatpush1.msra.mxu0 0.0
    %1207 = vmatprep.subr.mxu0 0.0
    %1208 = vmatpush1.msra.mxu0 0.0
    %1209 = vmatprep.subr.mxu0 0.0
    %1210 = vmatpush1.msra.mxu0 0.0
    %1211 = vmatprep.subr.mxu0 0.0
    %1212 = vmatpush1.msra.mxu0 0.0
    %1213 = vmatprep.subr.mxu0 0.0
    %1214 = vmatpush1.msra.mxu0 0.0
    %1215 = vmatprep.subr.mxu0 0.0
    %1216 = vmatpush1.msra.mxu0 0.0
    %1217 = vmatprep.subr.mxu0 0.0
    %1218 = vmatpush1.msra.mxu0 0.0
    %1219 = vmatprep.subr.mxu0 0.0
    %1220 = vmatpush1.msra.mxu0 0.0
    %1221 = vmatprep.subr.mxu0 0.0
    %1222 = vmatpush1.msra.mxu0 0.0
    %1223 = vmatprep.subr.mxu0 0.0
    %1224 = vmatpush1.msra.mxu0 0.0
    %1225 = vmatprep.subr.mxu0 0.0
    %1226 = vmatpush1.msra.mxu0 0.0
    %1227 = vmatprep.subr.mxu0 0.0
    %1228 = vmatpush1.msra.mxu0 0.0
    %1229 = vmatprep.subr.mxu0 0.0
    %1230 = vmatpush1.msra.mxu0 0.0
    %1231 = vmatprep.mubr.f32.mxu0 0.0
    %1232 = vmatmul.mubr.f32.gmra.mrb[0].mxu0 %v1165
    %v1233 = vpop.f32.mrb[0].mxu0
    %v1234 = vadd.f32 0.0, %v1233
    %v1235 = vpop.f32.mrb[0].mxu0
    %1236 = vdwg.mxu0
    %1237 = vrot.lane.b32.xlu0 %v155, 64
    %v1238 = vpop.permute.xlu0 %1237
    %v1241 = vsel %vm162, %v854, 0
    %1243 = vmatprep.subr.mxu0 0.0
    %1244 = vmatpush1.msra.mxu0 %v1238
    %1245 = vmatprep.subr.mxu0 0.0
    %1246 = vmatpush1.msra.mxu0 0.0
    %1247 = vmatprep.subr.mxu0 0.0
    %1248 = vmatpush1.msra.mxu0 0.0
    %1249 = vmatprep.subr.mxu0 0.0
    %1250 = vmatpush1.msra.mxu0 0.0
    %1251 = vmatprep.subr.mxu0 0.0
    %1252 = vmatpush1.msra.mxu0 0.0
    %1253 = vmatprep.subr.mxu0 0.0
    %1254 = vmatpush1.msra.mxu0 0.0
    %1255 = vmatprep.subr.mxu0 0.0
    %1256 = vmatpush1.msra.mxu0 0.0
    %1257 = vmatprep.subr.mxu0 0.0
    %1258 = vmatpush1.msra.mxu0 0.0
    %1259 = vmatprep.subr.mxu0 0.0
    %1260 = vmatpush1.msra.mxu0 0.0
    %1261 = vmatprep.subr.mxu0 0.0
    %1262 = vmatpush1.msra.mxu0 0.0
    %1263 = vmatprep.subr.mxu0 0.0
    %1264 = vmatpush1.msra.mxu0 0.0
    %1265 = vmatprep.subr.mxu0 0.0
    %1266 = vmatpush1.msra.mxu0 0.0
    %1267 = vmatprep.subr.mxu0 0.0
    %1268 = vmatpush1.msra.mxu0 0.0
    %1269 = vmatprep.subr.mxu0 0.0
    %1270 = vmatpush1.msra.mxu0 0.0
    %1271 = vmatprep.subr.mxu0 0.0
    %1272 = vmatpush1.msra.mxu0 0.0
    %1273 = vmatprep.subr.mxu0 0.0
    %1274 = vmatpush1.msra.mxu0 0.0
    %1275 = vmatprep.subr.mxu0 0.0
    %1276 = vmatpush1.msra.mxu0 0.0
    %1277 = vmatprep.subr.mxu0 0.0
    %1278 = vmatpush1.msra.mxu0 0.0
    %1279 = vmatprep.subr.mxu0 0.0
    %1280 = vmatpush1.msra.mxu0 0.0
    %1281 = vmatprep.subr.mxu0 0.0
    %1282 = vmatpush1.msra.mxu0 0.0
    %1283 = vmatprep.subr.mxu0 0.0
    %1284 = vmatpush1.msra.mxu0 0.0
    %1285 = vmatprep.subr.mxu0 0.0
    %1286 = vmatpush1.msra.mxu0 0.0
    %1287 = vmatprep.subr.mxu0 0.0
    %1288 = vmatpush1.msra.mxu0 0.0
    %1289 = vmatprep.subr.mxu0 0.0
    %1290 = vmatpush1.msra.mxu0 0.0
    %1291 = vmatprep.subr.mxu0 0.0
    %1292 = vmatpush1.msra.mxu0 0.0
    %1293 = vmatprep.subr.mxu0 0.0
    %1294 = vmatpush1.msra.mxu0 0.0
    %1295 = vmatprep.subr.mxu0 0.0
    %1296 = vmatpush1.msra.mxu0 0.0
    %1297 = vmatprep.subr.mxu0 0.0
    %1298 = vmatpush1.msra.mxu0 0.0
    %1299 = vmatprep.subr.mxu0 0.0
    %1300 = vmatpush1.msra.mxu0 0.0
    %1301 = vmatprep.subr.mxu0 0.0
    %1302 = vmatpush1.msra.mxu0 0.0
    %1303 = vmatprep.subr.mxu0 0.0
    %1304 = vmatpush1.msra.mxu0 0.0
    %1305 = vmatprep.subr.mxu0 0.0
    %1306 = vmatpush1.msra.mxu0 0.0
    %1307 = vmatprep.mubr.f32.mxu0 0.0
    %1308 = vmatmul.mubr.f32.gmra.mrb[0].mxu0 %v1241
    %v1309 = vpop.f32.mrb[0].mxu0
    %v1310 = vadd.f32 0.0, %v1309
    %v1311 = vpop.f32.mrb[0].mxu0
    %1312 = vdwg.mxu0
    %1313 = vrot.lane.b32.xlu0 %v157, 64
    %v1314 = vpop.permute.xlu0 %1313
    %v1317 = vsel %vm162, %v855, 0
    %1319 = vmatprep.subr.mxu0 0.0
    %1320 = vmatpush1.msra.mxu0 %v1314
    %1321 = vmatprep.subr.mxu0 0.0
    %1322 = vmatpush1.msra.mxu0 0.0
    %1323 = vmatprep.subr.mxu0 0.0
    %1324 = vmatpush1.msra.mxu0 0.0
    %1325 = vmatprep.subr.mxu0 0.0
    %1326 = vmatpush1.msra.mxu0 0.0
    %1327 = vmatprep.subr.mxu0 0.0
    %1328 = vmatpush1.msra.mxu0 0.0
    %1329 = vmatprep.subr.mxu0 0.0
    %1330 = vmatpush1.msra.mxu0 0.0
    %1331 = vmatprep.subr.mxu0 0.0
    %1332 = vmatpush1.msra.mxu0 0.0
    %1333 = vmatprep.subr.mxu0 0.0
    %1334 = vmatpush1.msra.mxu0 0.0
    %1335 = vmatprep.subr.mxu0 0.0
    %1336 = vmatpush1.msra.mxu0 0.0
    %1337 = vmatprep.subr.mxu0 0.0
    %1338 = vmatpush1.msra.mxu0 0.0
    %1339 = vmatprep.subr.mxu0 0.0
    %1340 = vmatpush1.msra.mxu0 0.0
    %1341 = vmatprep.subr.mxu0 0.0
    %1342 = vmatpush1.msra.mxu0 0.0
    %1343 = vmatprep.subr.mxu0 0.0
    %1344 = vmatpush1.msra.mxu0 0.0
    %1345 = vmatprep.subr.mxu0 0.0
    %1346 = vmatpush1.msra.mxu0 0.0
    %1347 = vmatprep.subr.mxu0 0.0
    %1348 = vmatpush1.msra.mxu0 0.0
    %1349 = vmatprep.subr.mxu0 0.0
    %1350 = vmatpush1.msra.mxu0 0.0
    %1351 = vmatprep.subr.mxu0 0.0
    %1352 = vmatpush1.msra.mxu0 0.0
    %1353 = vmatprep.subr.mxu0 0.0
    %1354 = vmatpush1.msra.mxu0 0.0
    %1355 = vmatprep.subr.mxu0 0.0
    %1356 = vmatpush1.msra.mxu0 0.0
    %1357 = vmatprep.subr.mxu0 0.0
    %1358 = vmatpush1.msra.mxu0 0.0
    %1359 = vmatprep.subr.mxu0 0.0
    %1360 = vmatpush1.msra.mxu0 0.0
    %1361 = vmatprep.subr.mxu0 0.0
    %1362 = vmatpush1.msra.mxu0 0.0
    %1363 = vmatprep.subr.mxu0 0.0
    %1364 = vmatpush1.msra.mxu0 0.0
    %1365 = vmatprep.subr.mxu0 0.0
    %1366 = vmatpush1.msra.mxu0 0.0
    %1367 = vmatprep.subr.mxu0 0.0
    %1368 = vmatpush1.msra.mxu0 0.0
    %1369 = vmatprep.subr.mxu0 0.0
    %1370 = vmatpush1.msra.mxu0 0.0
    %1371 = vmatprep.subr.mxu0 0.0
    %1372 = vmatpush1.msra.mxu0 0.0
    %1373 = vmatprep.subr.mxu0 0.0
    %1374 = vmatpush1.msra.mxu0 0.0
    %1375 = vmatprep.subr.mxu0 0.0
    %1376 = vmatpush1.msra.mxu0 0.0
    %1377 = vmatprep.subr.mxu0 0.0
    %1378 = vmatpush1.msra.mxu0 0.0
    %1379 = vmatprep.subr.mxu0 0.0
    %1380 = vmatpush1.msra.mxu0 0.0
    %1381 = vmatprep.subr.mxu0 0.0
    %1382 = vmatpush1.msra.mxu0 0.0
    %1383 = vmatprep.mubr.f32.mxu0 0.0
    %1384 = vmatmul.mubr.f32.gmra.mrb[0].mxu0 %v1317
    %v1385 = vpop.f32.mrb[0].mxu0
    %v1386 = vadd.f32 0.0, %v1385
    %v1387 = vpop.f32.mrb[0].mxu0
    %1388 = vdwg.mxu0
    %1389 = vrot.lane.b32.xlu0 %v159, 64
    %v1390 = vpop.permute.xlu0 %1389
    %v1393 = vsel %vm162, %v856, 0
    %1395 = vmatprep.subr.mxu0 0.0
    %1396 = vmatpush1.msra.mxu0 %v1390
    %1397 = vmatprep.subr.mxu0 0.0
    %1398 = vmatpush1.msra.mxu0 0.0
    %1399 = vmatprep.subr.mxu0 0.0
    %1400 = vmatpush1.msra.mxu0 0.0
    %1401 = vmatprep.subr.mxu0 0.0
    %1402 = vmatpush1.msra.mxu0 0.0
    %1403 = vmatprep.subr.mxu0 0.0
    %1404 = vmatpush1.msra.mxu0 0.0
    %1405 = vmatprep.subr.mxu0 0.0
    %1406 = vmatpush1.msra.mxu0 0.0
    %1407 = vmatprep.subr.mxu0 0.0
    %1408 = vmatpush1.msra.mxu0 0.0
    %1409 = vmatprep.subr.mxu0 0.0
    %1410 = vmatpush1.msra.mxu0 0.0
    %1411 = vmatprep.subr.mxu0 0.0
    %1412 = vmatpush1.msra.mxu0 0.0
    %1413 = vmatprep.subr.mxu0 0.0
    %1414 = vmatpush1.msra.mxu0 0.0
    %1415 = vmatprep.subr.mxu0 0.0
    %1416 = vmatpush1.msra.mxu0 0.0
    %1417 = vmatprep.subr.mxu0 0.0
    %1418 = vmatpush1.msra.mxu0 0.0
    %1419 = vmatprep.subr.mxu0 0.0
    %1420 = vmatpush1.msra.mxu0 0.0
    %1421 = vmatprep.subr.mxu0 0.0
    %1422 = vmatpush1.msra.mxu0 0.0
    %1423 = vmatprep.subr.mxu0 0.0
    %1424 = vmatpush1.msra.mxu0 0.0
    %1425 = vmatprep.subr.mxu0 0.0
    %1426 = vmatpush1.msra.mxu0 0.0
    %1427 = vmatprep.subr.mxu0 0.0
    %1428 = vmatpush1.msra.mxu0 0.0
    %1429 = vmatprep.subr.mxu0 0.0
    %1430 = vmatpush1.msra.mxu0 0.0
    %1431 = vmatprep.subr.mxu0 0.0
    %1432 = vmatpush1.msra.mxu0 0.0
    %1433 = vmatprep.subr.mxu0 0.0
    %1434 = vmatpush1.msra.mxu0 0.0
    %1435 = vmatprep.subr.mxu0 0.0
    %1436 = vmatpush1.msra.mxu0 0.0
    %1437 = vmatprep.subr.mxu0 0.0
    %1438 = vmatpush1.msra.mxu0 0.0
    %1439 = vmatprep.subr.mxu0 0.0
    %1440 = vmatpush1.msra.mxu0 0.0
    %1441 = vmatprep.subr.mxu0 0.0
    %1442 = vmatpush1.msra.mxu0 0.0
    %1443 = vmatprep.subr.mxu0 0.0
    %1444 = vmatpush1.msra.mxu0 0.0
    %1445 = vmatprep.subr.mxu0 0.0
    %1446 = vmatpush1.msra.mxu0 0.0
    %1447 = vmatprep.subr.mxu0 0.0
    %1448 = vmatpush1.msra.mxu0 0.0
    %1449 = vmatprep.subr.mxu0 0.0
    %1450 = vmatpush1.msra.mxu0 0.0
    %1451 = vmatprep.subr.mxu0 0.0
    %1452 = vmatpush1.msra.mxu0 0.0
    %1453 = vmatprep.subr.mxu0 0.0
    %1454 = vmatpush1.msra.mxu0 0.0
    %1455 = vmatprep.subr.mxu0 0.0
    %1456 = vmatpush1.msra.mxu0 0.0
    %1457 = vmatprep.subr.mxu0 0.0
    %1458 = vmatpush1.msra.mxu0 0.0
    %1459 = vmatprep.mubr.f32.mxu0 0.0
    %1460 = vmatmul.mubr.f32.gmra.mrb[0].mxu0 %v1393
    %v1461 = vpop.f32.mrb[0].mxu0
    %v1462 = vadd.f32 0.0, %v1461
    %v1463 = vpop.f32.mrb[0].mxu0
    %1464 = vdwg.mxu0
    %1466 = vrot.lane.b32.xlu0 %v1006, 8
    %v1467 = vpop.permute.xlu0 %1466
    %1470 = vrot.lane.b32.xlu0 %v1082, 16
    %v1471 = vpop.permute.xlu0 %1470
    %1474 = vrot.lane.b32.xlu0 %v1158, 24
    %v1475 = vpop.permute.xlu0 %1474
    %v1477 = vsel %vm162, %v930, %v1467
    %vm1478 = vcmask 130048
    %v1479 = vsel %vm1478, %v1477, %v1471
    %vm1480 = vcmask 195584
    %v1481 = vsel %vm1480, %v1479, %v1475
    %1483 = vrot.lane.b32.xlu0 %v1310, 8
    %v1484 = vpop.permute.xlu0 %1483
    %1487 = vrot.lane.b32.xlu0 %v1386, 16
    %v1488 = vpop.permute.xlu0 %1487
    %1491 = vrot.lane.b32.xlu0 %v1462, 24
    %v1492 = vpop.permute.xlu0 %1491
    %v1494 = vsel %vm162, %v1234, %v1484
    %v1495 = vsel %vm1478, %v1494, %v1488
    %v1496 = vsel %vm1480, %v1495, %v1492
    %1501 = vrot.lane.b32.xlu0 %v43, 32
    %v1502 = vpop.permute.xlu0 %1501
    %1503 = vrot.lane.b32.xlu0 %v44, 32
    %v1504 = vpop.permute.xlu0 %1503
    %1505 = vrot.lane.b32.xlu0 %v45, 32
    %v1506 = vpop.permute.xlu0 %1505
    %1507 = vrot.lane.b32.xlu0 %v46, 32
    %v1508 = vpop.permute.xlu0 %1507
    %1514 = vrot.lane.b32.xlu0 %v63, 32
    %v1515 = vpop.permute.xlu0 %1514
    %v1518 = vsel %vm64, %v1481, 0
    %v1521 = vsel %vm64, %v1496, 0
    %1523 = vmatprep.subr.mxu0 0.0
    %1524 = vmatpush1.msra.mxu0 %v1502
    %1525 = vmatprep.subr.mxu0 0.0
    %1526 = vmatpush1.msra.mxu0 %v1504
    %1527 = vmatprep.subr.mxu0 0.0
    %1528 = vmatpush1.msra.mxu0 %v1506
    %1529 = vmatprep.subr.mxu0 0.0
    %1530 = vmatpush1.msra.mxu0 %v1508
    %1531 = vmatprep.subr.mxu0 0.0
    %1532 = vmatpush1.msra.mxu0 0.0
    %1533 = vmatprep.subr.mxu0 0.0
    %1534 = vmatpush1.msra.mxu0 0.0
    %1535 = vmatprep.subr.mxu0 0.0
    %1536 = vmatpush1.msra.mxu0 0.0
    %1537 = vmatprep.subr.mxu0 0.0
    %1538 = vmatpush1.msra.mxu0 0.0
    %1539 = vmatprep.subr.mxu0 0.0
    %1540 = vmatpush1.msra.mxu0 0.0
    %1541 = vmatprep.subr.mxu0 0.0
    %1542 = vmatpush1.msra.mxu0 0.0
    %1543 = vmatprep.subr.mxu0 0.0
    %1544 = vmatpush1.msra.mxu0 0.0
    %1545 = vmatprep.subr.mxu0 0.0
    %1546 = vmatpush1.msra.mxu0 0.0
    %1547 = vmatprep.subr.mxu0 0.0
    %1548 = vmatpush1.msra.mxu0 0.0
    %1549 = vmatprep.subr.mxu0 0.0
    %1550 = vmatpush1.msra.mxu0 0.0
    %1551 = vmatprep.subr.mxu0 0.0
    %1552 = vmatpush1.msra.mxu0 0.0
    %1553 = vmatprep.subr.mxu0 0.0
    %1554 = vmatpush1.msra.mxu0 0.0
    %1555 = vmatprep.subr.mxu0 0.0
    %1556 = vmatpush1.msra.mxu0 0.0
    %1557 = vmatprep.subr.mxu0 0.0
    %1558 = vmatpush1.msra.mxu0 0.0
    %1559 = vmatprep.subr.mxu0 0.0
    %1560 = vmatpush1.msra.mxu0 0.0
    %1561 = vmatprep.subr.mxu0 0.0
    %1562 = vmatpush1.msra.mxu0 0.0
    %1563 = vmatprep.subr.mxu0 0.0
    %1564 = vmatpush1.msra.mxu0 0.0
    %1565 = vmatprep.subr.mxu0 0.0
    %1566 = vmatpush1.msra.mxu0 0.0
    %1567 = vmatprep.subr.mxu0 0.0
    %1568 = vmatpush1.msra.mxu0 0.0
    %1569 = vmatprep.subr.mxu0 0.0
    %1570 = vmatpush1.msra.mxu0 0.0
    %1571 = vmatprep.subr.mxu0 0.0
    %1572 = vmatpush1.msra.mxu0 0.0
    %1573 = vmatprep.subr.mxu0 0.0
    %1574 = vmatpush1.msra.mxu0 0.0
    %1575 = vmatprep.subr.mxu0 0.0
    %1576 = vmatpush1.msra.mxu0 0.0
    %1577 = vmatprep.subr.mxu0 0.0
    %1578 = vmatpush1.msra.mxu0 0.0
    %1579 = vmatprep.subr.mxu0 0.0
    %1580 = vmatpush1.msra.mxu0 0.0
    %1581 = vmatprep.subr.mxu0 0.0
    %1582 = vmatpush1.msra.mxu0 0.0
    %1583 = vmatprep.subr.mxu0 0.0
    %1584 = vmatpush1.msra.mxu0 0.0
    %1585 = vmatprep.subr.mxu0 0.0
    %1586 = vmatpush1.msra.mxu0 0.0
    %1587 = vmatprep.mubr.f32.mxu0 0.0
    %1588 = vmatmul.mubr.f32.gmra.mrb[0].mxu0 %v1518
    %v1589 = vpop.f32.mrb[0].mxu0
    %v1590 = vadd.f32 %v1515, %v1589
    %v1591 = vpop.f32.mrb[0].mxu0
    %1592 = vmatprep.mubr.f32.mxu0 0.0
    %1593 = vmatmul.mubr.f32.gmra.mrb[0].mxu0 %v1521
    %v1594 = vpop.f32.mrb[0].mxu0
    %v1595 = vadd.f32 %v1515, %v1594
    %v1596 = vpop.f32.mrb[0].mxu0
    %1597 = vdwg.mxu0
    %v1598 = vadd.f32 %v40, %v1590
    %v1599 = vadd.f32 %v41, %v1595
    %v1600 = vsel %vm64, %v1598, 0.0
    %1601 = vadd.xlane.f32.xlu0 %v1600
    %v1602 = vpop.xlane.xlu0 %1601
    %v1603 = vsel %vm64, %v1599, 0.0
    %1604 = vadd.xlane.f32.xlu0 %v1603
    %v1605 = vpop.xlane.xlu0 %1604
    %v1606 = vrcp.pop 32.0
    %v1607 = vmul.f32 %v1602, %v1606
    %v1608 = vmul.f32 %v1605, %v1606
    %v1609 = vsub.f32 %v1598, %v1607
    %v1610 = vsub.f32 %v1599, %v1608
    %v1611 = vmul.f32 %v1609, %v1609
    %v1612 = vmul.f32 %v1610, %v1610
    %v1613 = vsel %vm64, %v1611, 0.0
    %1614 = vadd.xlane.f32.xlu0 %v1613
    %v1615 = vpop.xlane.xlu0 %1614
    %v1616 = vsel %vm64, %v1612, 0.0
    %1617 = vadd.xlane.f32.xlu0 %v1616
    %v1618 = vpop.xlane.xlu0 %1617
    %v1619 = vmul.f32 %v1615, %v1606
    %v1620 = vmul.f32 %v1618, %v1606
    %v1621 = vadd.f32 %v1619, 1e-05
    %v1622 = vadd.f32 %v1620, 1e-05
    %v1623 = vrsqrt.pop %v1621
    %v1624 = vrsqrt.pop %v1622
    %v1625 = vmul.f32 %v1609, %v1623
    %v1626 = vmul.f32 %v1610, %v1624
    %v1627 = vlaneseq
    %v1628 = vshrl.u32 %v1627, 7
    %v1629 = vsub.s32 1, %v1628
    %v1630 = vrot.slane %v59, %v1629
    %v1631 = vmul.f32 %v1625, %v1630
    %v1632 = vmul.f32 %v1626, %v1630
    %1634 = vrot.lane.b32.xlu0 %v1630, 96
    %v1635 = vpop.permute.xlu0 %1634
    %v1637 = vadd.f32 %v1631, %v1635
    %v1638 = vadd.f32 %v1632, %v1635
    %v1639 = vlaneseq
    %v1640 = vshrl.u32 %v1639, 7
    %v1641 = vsub.s32 2, %v1640
    %v1642 = vrot.slane %v59, %v1641
    %v1644 = vsel %vm64, %v1637, 0
    %v1647 = vsel %vm64, %v1638, 0
    %1649 = vmatprep.subr.mxu0 0.0
    %1650 = vmatpush1.msra.mxu0 %v47
    %1651 = vmatprep.subr.mxu0 0.0
    %1652 = vmatpush1.msra.mxu0 %v48
    %1653 = vmatprep.subr.mxu0 0.0
    %1654 = vmatpush1.msra.mxu0 %v49
    %1655 = vmatprep.subr.mxu0 0.0
    %1656 = vmatpush1.msra.mxu0 %v50
    %1657 = vmatprep.subr.mxu0 0.0
    %1658 = vmatpush1.msra.mxu0 0.0
    %1659 = vmatprep.subr.mxu0 0.0
    %1660 = vmatpush1.msra.mxu0 0.0
    %1661 = vmatprep.subr.mxu0 0.0
    %1662 = vmatpush1.msra.mxu0 0.0
    %1663 = vmatprep.subr.mxu0 0.0
    %1664 = vmatpush1.msra.mxu0 0.0
    %1665 = vmatprep.subr.mxu0 0.0
    %1666 = vmatpush1.msra.mxu0 0.0
    %1667 = vmatprep.subr.mxu0 0.0
    %1668 = vmatpush1.msra.mxu0 0.0
    %1669 = vmatprep.subr.mxu0 0.0
    %1670 = vmatpush1.msra.mxu0 0.0
    %1671 = vmatprep.subr.mxu0 0.0
    %1672 = vmatpush1.msra.mxu0 0.0
    %1673 = vmatprep.subr.mxu0 0.0
    %1674 = vmatpush1.msra.mxu0 0.0
    %1675 = vmatprep.subr.mxu0 0.0
    %1676 = vmatpush1.msra.mxu0 0.0
    %1677 = vmatprep.subr.mxu0 0.0
    %1678 = vmatpush1.msra.mxu0 0.0
    %1679 = vmatprep.subr.mxu0 0.0
    %1680 = vmatpush1.msra.mxu0 0.0
    %1681 = vmatprep.subr.mxu0 0.0
    %1682 = vmatpush1.msra.mxu0 0.0
    %1683 = vmatprep.subr.mxu0 0.0
    %1684 = vmatpush1.msra.mxu0 0.0
    %1685 = vmatprep.subr.mxu0 0.0
    %1686 = vmatpush1.msra.mxu0 0.0
    %1687 = vmatprep.subr.mxu0 0.0
    %1688 = vmatpush1.msra.mxu0 0.0
    %1689 = vmatprep.subr.mxu0 0.0
    %1690 = vmatpush1.msra.mxu0 0.0
    %1691 = vmatprep.subr.mxu0 0.0
    %1692 = vmatpush1.msra.mxu0 0.0
    %1693 = vmatprep.subr.mxu0 0.0
    %1694 = vmatpush1.msra.mxu0 0.0
    %1695 = vmatprep.subr.mxu0 0.0
    %1696 = vmatpush1.msra.mxu0 0.0
    %1697 = vmatprep.subr.mxu0 0.0
    %1698 = vmatpush1.msra.mxu0 0.0
    %1699 = vmatprep.subr.mxu0 0.0
    %1700 = vmatpush1.msra.mxu0 0.0
    %1701 = vmatprep.subr.mxu0 0.0
    %1702 = vmatpush1.msra.mxu0 0.0
    %1703 = vmatprep.subr.mxu0 0.0
    %1704 = vmatpush1.msra.mxu0 0.0
    %1705 = vmatprep.subr.mxu0 0.0
    %1706 = vmatpush1.msra.mxu0 0.0
    %1707 = vmatprep.subr.mxu0 0.0
    %1708 = vmatpush1.msra.mxu0 0.0
    %1709 = vmatprep.subr.mxu0 0.0
    %1710 = vmatpush1.msra.mxu0 0.0
    %1711 = vmatprep.subr.mxu0 0.0
    %1712 = vmatpush1.msra.mxu0 0.0
    %1713 = vmatprep.mubr.f32.mxu0 0.0
    %1714 = vmatmul.mubr.f32.gmra.mrb[0].mxu0 %v1644
    %v1715 = vpop.f32.mrb[0].mxu0
    %v1716 = vadd.f32 %v1642, %v1715
    %v1717 = vpop.f32.mrb[0].mxu0
    %1718 = vmatprep.mubr.f32.mxu0 0.0
    %1719 = vmatmul.mubr.f32.gmra.mrb[0].mxu0 %v1647
    %v1720 = vpop.f32.mrb[0].mxu0
    %v1721 = vadd.f32 %v1642, %v1720
    %v1722 = vpop.f32.mrb[0].mxu0
    %1723 = vdwg.mxu0
    %v1724 = vmax.f32 %v1716, 0.0
    %v1725 = vmax.f32 %v1721, 0.0
    %1727 = vrot.lane.b32.xlu0 %v1642, 64
    %v1728 = vpop.permute.xlu0 %1727
    %vm1730 = vcmask 523264
    %v1732 = vsel %vm1730, %v1724, 0
    %v1735 = vsel %vm1730, %v1725, 0
    %1737 = vmatprep.subr.mxu0 0.0
    %1738 = vmatpush1.msra.mxu0 %v51
    %1739 = vmatprep.subr.mxu0 0.0
    %1740 = vmatpush1.msra.mxu0 %v52
    %1741 = vmatprep.subr.mxu0 0.0
    %1742 = vmatpush1.msra.mxu0 %v53
    %1743 = vmatprep.subr.mxu0 0.0
    %1744 = vmatpush1.msra.mxu0 %v54
    %1745 = vmatprep.subr.mxu0 0.0
    %1746 = vmatpush1.msra.mxu0 %v55
    %1747 = vmatprep.subr.mxu0 0.0
    %1748 = vmatpush1.msra.mxu0 %v56
    %1749 = vmatprep.subr.mxu0 0.0
    %1750 = vmatpush1.msra.mxu0 %v57
    %1751 = vmatprep.subr.mxu0 0.0
    %1752 = vmatpush1.msra.mxu0 %v58
    %1753 = vmatprep.subr.mxu0 0.0
    %1754 = vmatpush1.msra.mxu0 0.0
    %1755 = vmatprep.subr.mxu0 0.0
    %1756 = vmatpush1.msra.mxu0 0.0
    %1757 = vmatprep.subr.mxu0 0.0
    %1758 = vmatpush1.msra.mxu0 0.0
    %1759 = vmatprep.subr.mxu0 0.0
    %1760 = vmatpush1.msra.mxu0 0.0
    %1761 = vmatprep.subr.mxu0 0.0
    %1762 = vmatpush1.msra.mxu0 0.0
    %1763 = vmatprep.subr.mxu0 0.0
    %1764 = vmatpush1.msra.mxu0 0.0
    %1765 = vmatprep.subr.mxu0 0.0
    %1766 = vmatpush1.msra.mxu0 0.0
    %1767 = vmatprep.subr.mxu0 0.0
    %1768 = vmatpush1.msra.mxu0 0.0
    %1769 = vmatprep.subr.mxu0 0.0
    %1770 = vmatpush1.msra.mxu0 0.0
    %1771 = vmatprep.subr.mxu0 0.0
    %1772 = vmatpush1.msra.mxu0 0.0
    %1773 = vmatprep.subr.mxu0 0.0
    %1774 = vmatpush1.msra.mxu0 0.0
    %1775 = vmatprep.subr.mxu0 0.0
    %1776 = vmatpush1.msra.mxu0 0.0
    %1777 = vmatprep.subr.mxu0 0.0
    %1778 = vmatpush1.msra.mxu0 0.0
    %1779 = vmatprep.subr.mxu0 0.0
    %1780 = vmatpush1.msra.mxu0 0.0
    %1781 = vmatprep.subr.mxu0 0.0
    %1782 = vmatpush1.msra.mxu0 0.0
    %1783 = vmatprep.subr.mxu0 0.0
    %1784 = vmatpush1.msra.mxu0 0.0
    %1785 = vmatprep.subr.mxu0 0.0
    %1786 = vmatpush1.msra.mxu0 0.0
    %1787 = vmatprep.subr.mxu0 0.0
    %1788 = vmatpush1.msra.mxu0 0.0
    %1789 = vmatprep.subr.mxu0 0.0
    %1790 = vmatpush1.msra.mxu0 0.0
    %1791 = vmatprep.subr.mxu0 0.0
    %1792 = vmatpush1.msra.mxu0 0.0
    %1793 = vmatprep.subr.mxu0 0.0
    %1794 = vmatpush1.msra.mxu0 0.0
    %1795 = vmatprep.subr.mxu0 0.0
    %1796 = vmatpush1.msra.mxu0 0.0
    %1797 = vmatprep.subr.mxu0 0.0
    %1798 = vmatpush1.msra.mxu0 0.0
    %1799 = vmatprep.subr.mxu0 0.0
    %1800 = vmatpush1.msra.mxu0 0.0
    %1801 = vmatprep.mubr.f32.mxu0 0.0
    %1802 = vmatmul.mubr.f32.gmra.mrb[0].mxu0 %v1732
    %v1803 = vpop.f32.mrb[0].mxu0
    %v1804 = vadd.f32 %v1728, %v1803
    %v1805 = vpop.f32.mrb[0].mxu0
    %1806 = vmatprep.mubr.f32.mxu0 0.0
    %1807 = vmatmul.mubr.f32.gmra.mrb[0].mxu0 %v1735
    %v1808 = vpop.f32.mrb[0].mxu0
    %v1809 = vadd.f32 %v1728, %v1808
    %v1810 = vpop.f32.mrb[0].mxu0
    %1811 = vdwg.mxu0
    %v1812 = vadd.f32 %v1637, %v1804
    %v1813 = vadd.f32 %v1638, %v1809
    %v1814 = vsel %vm64, %v1812, 0.0
    %1815 = vadd.xlane.f32.xlu0 %v1814
    %v1816 = vpop.xlane.xlu0 %1815
    %v1817 = vsel %vm64, %v1813, 0.0
    %1818 = vadd.xlane.f32.xlu0 %v1817
    %v1819 = vpop.xlane.xlu0 %1818
    %v1820 = vmul.f32 %v1816, %v1606
    %v1821 = vmul.f32 %v1819, %v1606
    %v1822 = vsub.f32 %v1812, %v1820
    %v1823 = vsub.f32 %v1813, %v1821
    %v1824 = vmul.f32 %v1822, %v1822
    %v1825 = vmul.f32 %v1823, %v1823
    %v1826 = vsel %vm64, %v1824, 0.0
    %1827 = vadd.xlane.f32.xlu0 %v1826
    %v1828 = vpop.xlane.xlu0 %1827
    %v1829 = vsel %vm64, %v1825, 0.0
    %1830 = vadd.xlane.f32.xlu0 %v1829
    %v1831 = vpop.xlane.xlu0 %1830
    %v1832 = vmul.f32 %v1828, %v1606
    %v1833 = vmul.f32 %v1831, %v1606
    %v1834 = vadd.f32 %v1832, 1e-05
    %v1835 = vadd.f32 %v1833, 1e-05
    %v1836 = vrsqrt.pop %v1834
    %v1837 = vrsqrt.pop %v1835
    %v1838 = vmul.f32 %v1822, %v1836
    %v1839 = vmul.f32 %v1823, %v1837
    %1840 = vrot.lane.b32.xlu0 %v1630, 64
    %v1841 = vpop.permute.xlu0 %1840
    %v1843 = vmul.f32 %v1838, %v1841
    %v1844 = vmul.f32 %v1839, %v1841
    %1845 = vrot.lane.b32.xlu0 %v1630, 32
    %v1846 = vpop.permute.xlu0 %1845
    %v1848 = vadd.f32 %v1843, %v1846
    %v1849 = vadd.f32 %v1844, %v1846
    %v1850 = vadd.f32 %v40, %v1848
    %v1851 = vadd.f32 %v41, %v1849
    %v1852 = vsel %vm64, %v1850, 0.0
    %1853 = vadd.xlane.f32.xlu0 %v1852
    %v1854 = vpop.xlane.xlu0 %1853
    %v1855 = vsel %vm64, %v1851, 0.0
    %1856 = vadd.xlane.f32.xlu0 %v1855
    %v1857 = vpop.xlane.xlu0 %1856
    %v1858 = vmul.f32 %v1854, %v1606
    %v1859 = vmul.f32 %v1857, %v1606
    %v1860 = vsub.f32 %v1850, %v1858
    %v1861 = vsub.f32 %v1851, %v1859
    %v1862 = vmul.f32 %v1860, %v1860
    %v1863 = vmul.f32 %v1861, %v1861
    %v1864 = vsel %vm64, %v1862, 0.0
    %1865 = vadd.xlane.f32.xlu0 %v1864
    %v1866 = vpop.xlane.xlu0 %1865
    %v1867 = vsel %vm64, %v1863, 0.0
    %1868 = vadd.xlane.f32.xlu0 %v1867
    %v1869 = vpop.xlane.xlu0 %1868
    %v1870 = vmul.f32 %v1866, %v1606
    %v1871 = vmul.f32 %v1869, %v1606
    %v1872 = vadd.f32 %v1870, 1e-05
    %v1873 = vadd.f32 %v1871, 1e-05
    %v1874 = vrsqrt.pop %v1872
    %v1875 = vrsqrt.pop %v1873
    %v1876 = vmul.f32 %v1860, %v1874
    %v1877 = vmul.f32 %v1861, %v1875
    %v1878 = vlaneseq
    %v1879 = vshrl.u32 %v1878, 7
    %v1880 = vsub.s32 0, %v1879
    %v1881 = vrot.slane %v42, %v1880
    %v1882 = vmul.f32 %v1876, %v1881
    %v1883 = vmul.f32 %v1877, %v1881
    %1885 = vrot.lane.b32.xlu0 %v1881, 96
    %v1886 = vpop.permute.xlu0 %1885
    %v1888 = vadd.f32 %v1882, %v1886
    %v1889 = vadd.f32 %v1883, %v1886
    %v1890 = vld [vmem:[#allocation5 + $0x88] sm:$0xff]
    %v1891 = vld [vmem:[#allocation5 + $0x90] sm:$0xff]
    %v1892 = vld [vmem:[#allocation5 + $0x98] sm:$0xff]
    %v1893 = vld [vmem:[#allocation5 + $0xa0] sm:$0xff]
    %v1894 = vld [vmem:[#allocation5 + $0xa8] sm:$0xff]
    %v1895 = vld [vmem:[#allocation5 + $0xb0] sm:$0xff]
    %v1896 = vld [vmem:[#allocation5 + $0xb8] sm:$0xff]
    %v1897 = vld [vmem:[#allocation5 + $0xc0] sm:$0xff]
    %v1898 = vld [vmem:[#allocation5 + $0xc8] sm:$0xff]
    %v1899 = vld [vmem:[#allocation5 + $0xd0] sm:$0xff]
    %v1900 = vld [vmem:[#allocation5 + $0xd8] sm:$0xff]
    %v1901 = vld [vmem:[#allocation5 + $0xe0] sm:$0xff]
    %v1902 = vld [vmem:[#allocation5 + $0xe8] sm:$0xff]
    %v1903 = vld [vmem:[#allocation5 + $0xf0] sm:$0xff]
    %v1904 = vld [vmem:[#allocation5 + $0xf8] sm:$0xff]
    %v1905 = vld [vmem:[#allocation5 + $0x100] sm:$0xff]
    %v1906 = vld [vmem:[#allocation5 + $0x108] sm:$0xff]
    %v1907 = vlaneseq
    %v1908 = vshrl.u32 %v1907, 7
    %v1909 = vsub.s32 0, %v1908
    %v1910 = vrot.slane %v1906, %v1909
    %v1912 = vsel %vm64, %v1888, 0
    %v1915 = vsel %vm64, %v1889, 0
    %1917 = vmatprep.subr.mxu0 0.0
    %1918 = vmatpush1.msra.mxu0 %v1890
    %1919 = vmatprep.subr.mxu0 0.0
    %1920 = vmatpush1.msra.mxu0 %v1891
    %1921 = vmatprep.subr.mxu0 0.0
    %1922 = vmatpush1.msra.mxu0 %v1892
    %1923 = vmatprep.subr.mxu0 0.0
    %1924 = vmatpush1.msra.mxu0 %v1893
    %1925 = vmatprep.subr.mxu0 0.0
    %1926 = vmatpush1.msra.mxu0 0.0
    %1927 = vmatprep.subr.mxu0 0.0
    %1928 = vmatpush1.msra.mxu0 0.0
    %1929 = vmatprep.subr.mxu0 0.0
    %1930 = vmatpush1.msra.mxu0 0.0
    %1931 = vmatprep.subr.mxu0 0.0
    %1932 = vmatpush1.msra.mxu0 0.0
    %1933 = vmatprep.subr.mxu0 0.0
    %1934 = vmatpush1.msra.mxu0 0.0
    %1935 = vmatprep.subr.mxu0 0.0
    %1936 = vmatpush1.msra.mxu0 0.0
    %1937 = vmatprep.subr.mxu0 0.0
    %1938 = vmatpush1.msra.mxu0 0.0
    %1939 = vmatprep.subr.mxu0 0.0
    %1940 = vmatpush1.msra.mxu0 0.0
    %1941 = vmatprep.subr.mxu0 0.0
    %1942 = vmatpush1.msra.mxu0 0.0
    %1943 = vmatprep.subr.mxu0 0.0
    %1944 = vmatpush1.msra.mxu0 0.0
    %1945 = vmatprep.subr.mxu0 0.0
    %1946 = vmatpush1.msra.mxu0 0.0
    %1947 = vmatprep.subr.mxu0 0.0
    %1948 = vmatpush1.msra.mxu0 0.0
    %1949 = vmatprep.subr.mxu0 0.0
    %1950 = vmatpush1.msra.mxu0 0.0
    %1951 = vmatprep.subr.mxu0 0.0
    %1952 = vmatpush1.msra.mxu0 0.0
    %1953 = vmatprep.subr.mxu0 0.0
    %1954 = vmatpush1.msra.mxu0 0.0
    %1955 = vmatprep.subr.mxu0 0.0
    %1956 = vmatpush1.msra.mxu0 0.0
    %1957 = vmatprep.subr.mxu0 0.0
    %1958 = vmatpush1.msra.mxu0 0.0
    %1959 = vmatprep.subr.mxu0 0.0
    %1960 = vmatpush1.msra.mxu0 0.0
    %1961 = vmatprep.subr.mxu0 0.0
    %1962 = vmatpush1.msra.mxu0 0.0
    %1963 = vmatprep.subr.mxu0 0.0
    %1964 = vmatpush1.msra.mxu0 0.0
    %1965 = vmatprep.subr.mxu0 0.0
    %1966 = vmatpush1.msra.mxu0 0.0
    %1967 = vmatprep.subr.mxu0 0.0
    %1968 = vmatpush1.msra.mxu0 0.0
    %1969 = vmatprep.subr.mxu0 0.0
    %1970 = vmatpush1.msra.mxu0 0.0
    %1971 = vmatprep.subr.mxu0 0.0
    %1972 = vmatpush1.msra.mxu0 0.0
    %1973 = vmatprep.subr.mxu0 0.0
    %1974 = vmatpush1.msra.mxu0 0.0
    %1975 = vmatprep.subr.mxu0 0.0
    %1976 = vmatpush1.msra.mxu0 0.0
    %1977 = vmatprep.subr.mxu0 0.0
    %1978 = vmatpush1.msra.mxu0 0.0
    %1979 = vmatprep.subr.mxu0 0.0
    %1980 = vmatpush1.msra.mxu0 0.0
    %1981 = vmatprep.mubr.f32.mxu0 0.0
    %1982 = vmatmul.mubr.f32.gmra.mrb[0].mxu0 %v1912
    %v1983 = vpop.f32.mrb[0].mxu0
    %v1984 = vadd.f32 %v1910, %v1983
    %v1985 = vpop.f32.mrb[0].mxu0
    %1986 = vmatprep.mubr.f32.mxu0 0.0
    %1987 = vmatmul.mubr.f32.gmra.mrb[0].mxu0 %v1915
    %v1988 = vpop.f32.mrb[0].mxu0
    %v1989 = vadd.f32 %v1910, %v1988
    %v1990 = vpop.f32.mrb[0].mxu0
    %1991 = vdwg.mxu0
    %1993 = vrot.lane.b32.xlu0 %v1984, 120
    %v1994 = vpop.permute.xlu0 %1993
    %1995 = vrot.lane.b32.xlu0 %v1984, 112
    %v1996 = vpop.permute.xlu0 %1995
    %1997 = vrot.lane.b32.xlu0 %v1984, 104
    %v1998 = vpop.permute.xlu0 %1997
    %2000 = vrot.lane.b32.xlu0 %v1989, 120
    %v2001 = vpop.permute.xlu0 %2000
    %2002 = vrot.lane.b32.xlu0 %v1989, 112
    %v2003 = vpop.permute.xlu0 %2002
    %2004 = vrot.lane.b32.xlu0 %v1989, 104
    %v2005 = vpop.permute.xlu0 %2004
    %2006 = vrot.lane.b32.xlu0 %v1984, 96
    %v2007 = vpop.permute.xlu0 %2006
    %v2008 = vsel %vm162, %v1984, 0
    %v2010 = vsel %vm162, %v2007, 0
    %2012 = vmatprep.subr.mxu0 0.0
    %2013 = vmatpush1.xpose.msra.mxu0 %v2010
    %2014 = vmatprep.subr.mxu0 0.0
    %2015 = vmatpush1.xpose.msra.mxu0 0.0
    %2016 = vmatprep.subr.mxu0 0.0
    %2017 = vmatpush1.xpose.msra.mxu0 0.0
    %2018 = vmatprep.subr.mxu0 0.0
    %2019 = vmatpush1.xpose.msra.mxu0 0.0
    %2020 = vmatprep.subr.mxu0 0.0
    %2021 = vmatpush1.xpose.msra.mxu0 0.0
    %2022 = vmatprep.subr.mxu0 0.0
    %2023 = vmatpush1.xpose.msra.mxu0 0.0
    %2024 = vmatprep.subr.mxu0 0.0
    %2025 = vmatpush1.xpose.msra.mxu0 0.0
    %2026 = vmatprep.subr.mxu0 0.0
    %2027 = vmatpush1.xpose.msra.mxu0 0.0
    %2028 = vmatprep.subr.mxu0 0.0
    %2029 = vmatpush1.xpose.msra.mxu0 0.0
    %2030 = vmatprep.subr.mxu0 0.0
    %2031 = vmatpush1.xpose.msra.mxu0 0.0
    %2032 = vmatprep.subr.mxu0 0.0
    %2033 = vmatpush1.xpose.msra.mxu0 0.0
    %2034 = vmatprep.subr.mxu0 0.0
    %2035 = vmatpush1.xpose.msra.mxu0 0.0
    %2036 = vmatprep.subr.mxu0 0.0
    %2037 = vmatpush1.xpose.msra.mxu0 0.0
    %2038 = vmatprep.subr.mxu0 0.0
    %2039 = vmatpush1.xpose.msra.mxu0 0.0
    %2040 = vmatprep.subr.mxu0 0.0
    %2041 = vmatpush1.xpose.msra.mxu0 0.0
    %2042 = vmatprep.subr.mxu0 0.0
    %2043 = vmatpush1.xpose.msra.mxu0 0.0
    %2044 = vmatprep.subr.mxu0 0.0
    %2045 = vmatpush1.xpose.msra.mxu0 0.0
    %2046 = vmatprep.subr.mxu0 0.0
    %2047 = vmatpush1.xpose.msra.mxu0 0.0
    %2048 = vmatprep.subr.mxu0 0.0
    %2049 = vmatpush1.xpose.msra.mxu0 0.0
    %2050 = vmatprep.subr.mxu0 0.0
    %2051 = vmatpush1.xpose.msra.mxu0 0.0
    %2052 = vmatprep.subr.mxu0 0.0
    %2053 = vmatpush1.xpose.msra.mxu0 0.0
    %2054 = vmatprep.subr.mxu0 0.0
    %2055 = vmatpush1.xpose.msra.mxu0 0.0
    %2056 = vmatprep.subr.mxu0 0.0
    %2057 = vmatpush1.xpose.msra.mxu0 0.0
    %2058 = vmatprep.subr.mxu0 0.0
    %2059 = vmatpush1.xpose.msra.mxu0 0.0
    %2060 = vmatprep.subr.mxu0 0.0
    %2061 = vmatpush1.xpose.msra.mxu0 0.0
    %2062 = vmatprep.subr.mxu0 0.0
    %2063 = vmatpush1.xpose.msra.mxu0 0.0
    %2064 = vmatprep.subr.mxu0 0.0
    %2065 = vmatpush1.xpose.msra.mxu0 0.0
    %2066 = vmatprep.subr.mxu0 0.0
    %2067 = vmatpush1.xpose.msra.mxu0 0.0
    %2068 = vmatprep.subr.mxu0 0.0
    %2069 = vmatpush1.xpose.msra.mxu0 0.0
    %2070 = vmatprep.subr.mxu0 0.0
    %2071 = vmatpush1.xpose.msra.mxu0 0.0
    %2072 = vmatprep.subr.mxu0 0.0
    %2073 = vmatpush1.xpose.msra.mxu0 0.0
    %2074 = vmatprep.subr.mxu0 0.0
    %2075 = vmatpush1.xpose.msra.mxu0 0.0
    %2076 = vmatprep.mubr.f32.mxu0 0.0
    %2077 = vmatmul.mubr.f32.gmra.mrb[0].mxu0 %v2008
    %v2078 = vpop.f32.mrb[0].mxu0
    %v2079 = vadd.f32 0.0, %v2078
    %v2080 = vpop.f32.mrb[0].mxu0
    %2081 = vdwg.mxu0
    %2082 = vrot.lane.b32.xlu0 %v1994, 96
    %v2083 = vpop.permute.xlu0 %2082
    %v2084 = vsel %vm162, %v1994, 0
    %v2086 = vsel %vm162, %v2083, 0
    %2088 = vmatprep.subr.mxu0 0.0
    %2089 = vmatpush1.xpose.msra.mxu0 %v2086
    %2090 = vmatprep.subr.mxu0 0.0
    %2091 = vmatpush1.xpose.msra.mxu0 0.0
    %2092 = vmatprep.subr.mxu0 0.0
    %2093 = vmatpush1.xpose.msra.mxu0 0.0
    %2094 = vmatprep.subr.mxu0 0.0
    %2095 = vmatpush1.xpose.msra.mxu0 0.0
    %2096 = vmatprep.subr.mxu0 0.0
    %2097 = vmatpush1.xpose.msra.mxu0 0.0
    %2098 = vmatprep.subr.mxu0 0.0
    %2099 = vmatpush1.xpose.msra.mxu0 0.0
    %2100 = vmatprep.subr.mxu0 0.0
    %2101 = vmatpush1.xpose.msra.mxu0 0.0
    %2102 = vmatprep.subr.mxu0 0.0
    %2103 = vmatpush1.xpose.msra.mxu0 0.0
    %2104 = vmatprep.subr.mxu0 0.0
    %2105 = vmatpush1.xpose.msra.mxu0 0.0
    %2106 = vmatprep.subr.mxu0 0.0
    %2107 = vmatpush1.xpose.msra.mxu0 0.0
    %2108 = vmatprep.subr.mxu0 0.0
    %2109 = vmatpush1.xpose.msra.mxu0 0.0
    %2110 = vmatprep.subr.mxu0 0.0
    %2111 = vmatpush1.xpose.msra.mxu0 0.0
    %2112 = vmatprep.subr.mxu0 0.0
    %2113 = vmatpush1.xpose.msra.mxu0 0.0
    %2114 = vmatprep.subr.mxu0 0.0
    %2115 = vmatpush1.xpose.msra.mxu0 0.0
    %2116 = vmatprep.subr.mxu0 0.0
    %2117 = vmatpush1.xpose.msra.mxu0 0.0
    %2118 = vmatprep.subr.mxu0 0.0
    %2119 = vmatpush1.xpose.msra.mxu0 0.0
    %2120 = vmatprep.subr.mxu0 0.0
    %2121 = vmatpush1.xpose.msra.mxu0 0.0
    %2122 = vmatprep.subr.mxu0 0.0
    %2123 = vmatpush1.xpose.msra.mxu0 0.0
    %2124 = vmatprep.subr.mxu0 0.0
    %2125 = vmatpush1.xpose.msra.mxu0 0.0
    %2126 = vmatprep.subr.mxu0 0.0
    %2127 = vmatpush1.xpose.msra.mxu0 0.0
    %2128 = vmatprep.subr.mxu0 0.0
    %2129 = vmatpush1.xpose.msra.mxu0 0.0
    %2130 = vmatprep.subr.mxu0 0.0
    %2131 = vmatpush1.xpose.msra.mxu0 0.0
    %2132 = vmatprep.subr.mxu0 0.0
    %2133 = vmatpush1.xpose.msra.mxu0 0.0
    %2134 = vmatprep.subr.mxu0 0.0
    %2135 = vmatpush1.xpose.msra.mxu0 0.0
    %2136 = vmatprep.subr.mxu0 0.0
    %2137 = vmatpush1.xpose.msra.mxu0 0.0
    %2138 = vmatprep.subr.mxu0 0.0
    %2139 = vmatpush1.xpose.msra.mxu0 0.0
    %2140 = vmatprep.subr.mxu0 0.0
    %2141 = vmatpush1.xpose.msra.mxu0 0.0
    %2142 = vmatprep.subr.mxu0 0.0
    %2143 = vmatpush1.xpose.msra.mxu0 0.0
    %2144 = vmatprep.subr.mxu0 0.0
    %2145 = vmatpush1.xpose.msra.mxu0 0.0
    %2146 = vmatprep.subr.mxu0 0.0
    %2147 = vmatpush1.xpose.msra.mxu0 0.0
    %2148 = vmatprep.subr.mxu0 0.0
    %2149 = vmatpush1.xpose.msra.mxu0 0.0
    %2150 = vmatprep.subr.mxu0 0.0
    %2151 = vmatpush1.xpose.msra.mxu0 0.0
    %2152 = vmatprep.mubr.f32.mxu0 0.0
    %2153 = vmatmul.mubr.f32.gmra.mrb[0].mxu0 %v2084
    %v2154 = vpop.f32.mrb[0].mxu0
    %v2155 = vadd.f32 0.0, %v2154
    %v2156 = vpop.f32.mrb[0].mxu0
    %2157 = vdwg.mxu0
    %2158 = vrot.lane.b32.xlu0 %v1996, 96
    %v2159 = vpop.permute.xlu0 %2158
    %v2160 = vsel %vm162, %v1996, 0
    %v2162 = vsel %vm162, %v2159, 0
    %2164 = vmatprep.subr.mxu0 0.0
    %2165 = vmatpush1.xpose.msra.mxu0 %v2162
    %2166 = vmatprep.subr.mxu0 0.0
    %2167 = vmatpush1.xpose.msra.mxu0 0.0
    %2168 = vmatprep.subr.mxu0 0.0
    %2169 = vmatpush1.xpose.msra.mxu0 0.0
    %2170 = vmatprep.subr.mxu0 0.0
    %2171 = vmatpush1.xpose.msra.mxu0 0.0
    %2172 = vmatprep.subr.mxu0 0.0
    %2173 = vmatpush1.xpose.msra.mxu0 0.0
    %2174 = vmatprep.subr.mxu0 0.0
    %2175 = vmatpush1.xpose.msra.mxu0 0.0
    %2176 = vmatprep.subr.mxu0 0.0
    %2177 = vmatpush1.xpose.msra.mxu0 0.0
    %2178 = vmatprep.subr.mxu0 0.0
    %2179 = vmatpush1.xpose.msra.mxu0 0.0
    %2180 = vmatprep.subr.mxu0 0.0
    %2181 = vmatpush1.xpose.msra.mxu0 0.0
    %2182 = vmatprep.subr.mxu0 0.0
    %2183 = vmatpush1.xpose.msra.mxu0 0.0
    %2184 = vmatprep.subr.mxu0 0.0
    %2185 = vmatpush1.xpose.msra.mxu0 0.0
    %2186 = vmatprep.subr.mxu0 0.0
    %2187 = vmatpush1.xpose.msra.mxu0 0.0
    %2188 = vmatprep.subr.mxu0 0.0
    %2189 = vmatpush1.xpose.msra.mxu0 0.0
    %2190 = vmatprep.subr.mxu0 0.0
    %2191 = vmatpush1.xpose.msra.mxu0 0.0
    %2192 = vmatprep.subr.mxu0 0.0
    %2193 = vmatpush1.xpose.msra.mxu0 0.0
    %2194 = vmatprep.subr.mxu0 0.0
    %2195 = vmatpush1.xpose.msra.mxu0 0.0
    %2196 = vmatprep.subr.mxu0 0.0
    %2197 = vmatpush1.xpose.msra.mxu0 0.0
    %2198 = vmatprep.subr.mxu0 0.0
    %2199 = vmatpush1.xpose.msra.mxu0 0.0
    %2200 = vmatprep.subr.mxu0 0.0
    %2201 = vmatpush1.xpose.msra.mxu0 0.0
    %2202 = vmatprep.subr.mxu0 0.0
    %2203 = vmatpush1.xpose.msra.mxu0 0.0
    %2204 = vmatprep.subr.mxu0 0.0
    %2205 = vmatpush1.xpose.msra.mxu0 0.0
    %2206 = vmatprep.subr.mxu0 0.0
    %2207 = vmatpush1.xpose.msra.mxu0 0.0
    %2208 = vmatprep.subr.mxu0 0.0
    %2209 = vmatpush1.xpose.msra.mxu0 0.0
    %2210 = vmatprep.subr.mxu0 0.0
    %2211 = vmatpush1.xpose.msra.mxu0 0.0
    %2212 = vmatprep.subr.mxu0 0.0
    %2213 = vmatpush1.xpose.msra.mxu0 0.0
    %2214 = vmatprep.subr.mxu0 0.0
    %2215 = vmatpush1.xpose.msra.mxu0 0.0
    %2216 = vmatprep.subr.mxu0 0.0
    %2217 = vmatpush1.xpose.msra.mxu0 0.0
    %2218 = vmatprep.subr.mxu0 0.0
    %2219 = vmatpush1.xpose.msra.mxu0 0.0
    %2220 = vmatprep.subr.mxu0 0.0
    %2221 = vmatpush1.xpose.msra.mxu0 0.0
    %2222 = vmatprep.subr.mxu0 0.0
    %2223 = vmatpush1.xpose.msra.mxu0 0.0
    %2224 = vmatprep.subr.mxu0 0.0
    %2225 = vmatpush1.xpose.msra.mxu0 0.0
    %2226 = vmatprep.subr.mxu0 0.0
    %2227 = vmatpush1.xpose.msra.mxu0 0.0
    %2228 = vmatprep.mubr.f32.mxu0 0.0
    %2229 = vmatmul.mubr.f32.gmra.mrb[0].mxu0 %v2160
    %v2230 = vpop.f32.mrb[0].mxu0
    %v2231 = vadd.f32 0.0, %v2230
    %v2232 = vpop.f32.mrb[0].mxu0
    %2233 = vdwg.mxu0
    %2234 = vrot.lane.b32.xlu0 %v1998, 96
    %v2235 = vpop.permute.xlu0 %2234
    %v2236 = vsel %vm162, %v1998, 0
    %v2238 = vsel %vm162, %v2235, 0
    %2240 = vmatprep.subr.mxu0 0.0
    %2241 = vmatpush1.xpose.msra.mxu0 %v2238
    %2242 = vmatprep.subr.mxu0 0.0
    %2243 = vmatpush1.xpose.msra.mxu0 0.0
    %2244 = vmatprep.subr.mxu0 0.0
    %2245 = vmatpush1.xpose.msra.mxu0 0.0
    %2246 = vmatprep.subr.mxu0 0.0
    %2247 = vmatpush1.xpose.msra.mxu0 0.0
    %2248 = vmatprep.subr.mxu0 0.0
    %2249 = vmatpush1.xpose.msra.mxu0 0.0
    %2250 = vmatprep.subr.mxu0 0.0
    %2251 = vmatpush1.xpose.msra.mxu0 0.0
    %2252 = vmatprep.subr.mxu0 0.0
    %2253 = vmatpush1.xpose.msra.mxu0 0.0
    %2254 = vmatprep.subr.mxu0 0.0
    %2255 = vmatpush1.xpose.msra.mxu0 0.0
    %2256 = vmatprep.subr.mxu0 0.0
    %2257 = vmatpush1.xpose.msra.mxu0 0.0
    %2258 = vmatprep.subr.mxu0 0.0
    %2259 = vmatpush1.xpose.msra.mxu0 0.0
    %2260 = vmatprep.subr.mxu0 0.0
    %2261 = vmatpush1.xpose.msra.mxu0 0.0
    %2262 = vmatprep.subr.mxu0 0.0
    %2263 = vmatpush1.xpose.msra.mxu0 0.0
    %2264 = vmatprep.subr.mxu0 0.0
    %2265 = vmatpush1.xpose.msra.mxu0 0.0
    %2266 = vmatprep.subr.mxu0 0.0
    %2267 = vmatpush1.xpose.msra.mxu0 0.0
    %2268 = vmatprep.subr.mxu0 0.0
    %2269 = vmatpush1.xpose.msra.mxu0 0.0
    %2270 = vmatprep.subr.mxu0 0.0
    %2271 = vmatpush1.xpose.msra.mxu0 0.0
    %2272 = vmatprep.subr.mxu0 0.0
    %2273 = vmatpush1.xpose.msra.mxu0 0.0
    %2274 = vmatprep.subr.mxu0 0.0
    %2275 = vmatpush1.xpose.msra.mxu0 0.0
    %2276 = vmatprep.subr.mxu0 0.0
    %2277 = vmatpush1.xpose.msra.mxu0 0.0
    %2278 = vmatprep.subr.mxu0 0.0
    %2279 = vmatpush1.xpose.msra.mxu0 0.0
    %2280 = vmatprep.subr.mxu0 0.0
    %2281 = vmatpush1.xpose.msra.mxu0 0.0
    %2282 = vmatprep.subr.mxu0 0.0
    %2283 = vmatpush1.xpose.msra.mxu0 0.0
    %2284 = vmatprep.subr.mxu0 0.0
    %2285 = vmatpush1.xpose.msra.mxu0 0.0
    %2286 = vmatprep.subr.mxu0 0.0
    %2287 = vmatpush1.xpose.msra.mxu0 0.0
    %2288 = vmatprep.subr.mxu0 0.0
    %2289 = vmatpush1.xpose.msra.mxu0 0.0
    %2290 = vmatprep.subr.mxu0 0.0
    %2291 = vmatpush1.xpose.msra.mxu0 0.0
    %2292 = vmatprep.subr.mxu0 0.0
    %2293 = vmatpush1.xpose.msra.mxu0 0.0
    %2294 = vmatprep.subr.mxu0 0.0
    %2295 = vmatpush1.xpose.msra.mxu0 0.0
    %2296 = vmatprep.subr.mxu0 0.0
    %2297 = vmatpush1.xpose.msra.mxu0 0.0
    %2298 = vmatprep.subr.mxu0 0.0
    %2299 = vmatpush1.xpose.msra.mxu0 0.0
    %2300 = vmatprep.subr.mxu0 0.0
    %2301 = vmatpush1.xpose.msra.mxu0 0.0
    %2302 = vmatprep.subr.mxu0 0.0
    %2303 = vmatpush1.xpose.msra.mxu0 0.0
    %2304 = vmatprep.mubr.f32.mxu0 0.0
    %2305 = vmatmul.mubr.f32.gmra.mrb[0].mxu0 %v2236
    %v2306 = vpop.f32.mrb[0].mxu0
    %v2307 = vadd.f32 0.0, %v2306
    %v2308 = vpop.f32.mrb[0].mxu0
    %2309 = vdwg.mxu0
    %2310 = vrot.lane.b32.xlu0 %v1989, 96
    %v2311 = vpop.permute.xlu0 %2310
    %v2312 = vsel %vm162, %v1989, 0
    %v2314 = vsel %vm162, %v2311, 0
    %2316 = vmatprep.subr.mxu0 0.0
    %2317 = vmatpush1.xpose.msra.mxu0 %v2314
    %2318 = vmatprep.subr.mxu0 0.0
    %2319 = vmatpush1.xpose.msra.mxu0 0.0
    %2320 = vmatprep.subr.mxu0 0.0
    %2321 = vmatpush1.xpose.msra.mxu0 0.0
    %2322 = vmatprep.subr.mxu0 0.0
    %2323 = vmatpush1.xpose.msra.mxu0 0.0
    %2324 = vmatprep.subr.mxu0 0.0
    %2325 = vmatpush1.xpose.msra.mxu0 0.0
    %2326 = vmatprep.subr.mxu0 0.0
    %2327 = vmatpush1.xpose.msra.mxu0 0.0
    %2328 = vmatprep.subr.mxu0 0.0
    %2329 = vmatpush1.xpose.msra.mxu0 0.0
    %2330 = vmatprep.subr.mxu0 0.0
    %2331 = vmatpush1.xpose.msra.mxu0 0.0
    %2332 = vmatprep.subr.mxu0 0.0
    %2333 = vmatpush1.xpose.msra.mxu0 0.0
    %2334 = vmatprep.subr.mxu0 0.0
    %2335 = vmatpush1.xpose.msra.mxu0 0.0
    %2336 = vmatprep.subr.mxu0 0.0
    %2337 = vmatpush1.xpose.msra.mxu0 0.0
    %2338 = vmatprep.subr.mxu0 0.0
    %2339 = vmatpush1.xpose.msra.mxu0 0.0
    %2340 = vmatprep.subr.mxu0 0.0
    %2341 = vmatpush1.xpose.msra.mxu0 0.0
    %2342 = vmatprep.subr.mxu0 0.0
    %2343 = vmatpush1.xpose.msra.mxu0 0.0
    %2344 = vmatprep.subr.mxu0 0.0
    %2345 = vmatpush1.xpose.msra.mxu0 0.0
    %2346 = vmatprep.subr.mxu0 0.0
    %2347 = vmatpush1.xpose.msra.mxu0 0.0
    %2348 = vmatprep.subr.mxu0 0.0
    %2349 = vmatpush1.xpose.msra.mxu0 0.0
    %2350 = vmatprep.subr.mxu0 0.0
    %2351 = vmatpush1.xpose.msra.mxu0 0.0
    %2352 = vmatprep.subr.mxu0 0.0
    %2353 = vmatpush1.xpose.msra.mxu0 0.0
    %2354 = vmatprep.subr.mxu0 0.0
    %2355 = vmatpush1.xpose.msra.mxu0 0.0
    %2356 = vmatprep.subr.mxu0 0.0
    %2357 = vmatpush1.xpose.msra.mxu0 0.0
    %2358 = vmatprep.subr.mxu0 0.0
    %2359 = vmatpush1.xpose.msra.mxu0 0.0
    %2360 = vmatprep.subr.mxu0 0.0
    %2361 = vmatpush1.xpose.msra.mxu0 0.0
    %2362 = vmatprep.subr.mxu0 0.0
    %2363 = vmatpush1.xpose.msra.mxu0 0.0
    %2364 = vmatprep.subr.mxu0 0.0
    %2365 = vmatpush1.xpose.msra.mxu0 0.0
    %2366 = vmatprep.subr.mxu0 0.0
    %2367 = vmatpush1.xpose.msra.mxu0 0.0
    %2368 = vmatprep.subr.mxu0 0.0
    %2369 = vmatpush1.xpose.msra.mxu0 0.0
    %2370 = vmatprep.subr.mxu0 0.0
    %2371 = vmatpush1.xpose.msra.mxu0 0.0
    %2372 = vmatprep.subr.mxu0 0.0
    %2373 = vmatpush1.xpose.msra.mxu0 0.0
    %2374 = vmatprep.subr.mxu0 0.0
    %2375 = vmatpush1.xpose.msra.mxu0 0.0
    %2376 = vmatprep.subr.mxu0 0.0
    %2377 = vmatpush1.xpose.msra.mxu0 0.0
    %2378 = vmatprep.subr.mxu0 0.0
    %2379 = vmatpush1.xpose.msra.mxu0 0.0
    %2380 = vmatprep.mubr.f32.mxu0 0.0
    %2381 = vmatmul.mubr.f32.gmra.mrb[0].mxu0 %v2312
    %v2382 = vpop.f32.mrb[0].mxu0
    %v2383 = vadd.f32 0.0, %v2382
    %v2384 = vpop.f32.mrb[0].mxu0
    %2385 = vdwg.mxu0
    %2386 = vrot.lane.b32.xlu0 %v2001, 96
    %v2387 = vpop.permute.xlu0 %2386
    %v2388 = vsel %vm162, %v2001, 0
    %v2390 = vsel %vm162, %v2387, 0
    %2392 = vmatprep.subr.mxu0 0.0
    %2393 = vmatpush1.xpose.msra.mxu0 %v2390
    %2394 = vmatprep.subr.mxu0 0.0
    %2395 = vmatpush1.xpose.msra.mxu0 0.0
    %2396 = vmatprep.subr.mxu0 0.0
    %2397 = vmatpush1.xpose.msra.mxu0 0.0
    %2398 = vmatprep.subr.mxu0 0.0
    %2399 = vmatpush1.xpose.msra.mxu0 0.0
    %2400 = vmatprep.subr.mxu0 0.0
    %2401 = vmatpush1.xpose.msra.mxu0 0.0
    %2402 = vmatprep.subr.mxu0 0.0
    %2403 = vmatpush1.xpose.msra.mxu0 0.0
    %2404 = vmatprep.subr.mxu0 0.0
    %2405 = vmatpush1.xpose.msra.mxu0 0.0
    %2406 = vmatprep.subr.mxu0 0.0
    %2407 = vmatpush1.xpose.msra.mxu0 0.0
    %2408 = vmatprep.subr.mxu0 0.0
    %2409 = vmatpush1.xpose.msra.mxu0 0.0
    %2410 = vmatprep.subr.mxu0 0.0
    %2411 = vmatpush1.xpose.msra.mxu0 0.0
    %2412 = vmatprep.subr.mxu0 0.0
    %2413 = vmatpush1.xpose.msra.mxu0 0.0
    %2414 = vmatprep.subr.mxu0 0.0
    %2415 = vmatpush1.xpose.msra.mxu0 0.0
    %2416 = vmatprep.subr.mxu0 0.0
    %2417 = vmatpush1.xpose.msra.mxu0 0.0
    %2418 = vmatprep.subr.mxu0 0.0
    %2419 = vmatpush1.xpose.msra.mxu0 0.0
    %2420 = vmatprep.subr.mxu0 0.0
    %2421 = vmatpush1.xpose.msra.mxu0 0.0
    %2422 = vmatprep.subr.mxu0 0.0
    %2423 = vmatpush1.xpose.msra.mxu0 0.0
    %2424 = vmatprep.subr.mxu0 0.0
    %2425 = vmatpush1.xpose.msra.mxu0 0.0
    %2426 = vmatprep.subr.mxu0 0.0
    %2427 = vmatpush1.xpose.msra.mxu0 0.0
    %2428 = vmatprep.subr.mxu0 0.0
    %2429 = vmatpush1.xpose.msra.mxu0 0.0
    %2430 = vmatprep.subr.mxu0 0.0
    %2431 = vmatpush1.xpose.msra.mxu0 0.0
    %2432 = vmatprep.subr.mxu0 0.0
    %2433 = vmatpush1.xpose.msra.mxu0 0.0
    %2434 = vmatprep.subr.mxu0 0.0
    %2435 = vmatpush1.xpose.msra.mxu0 0.0
    %2436 = vmatprep.subr.mxu0 0.0
    %2437 = vmatpush1.xpose.msra.mxu0 0.0
    %2438 = vmatprep.subr.mxu0 0.0
    %2439 = vmatpush1.xpose.msra.mxu0 0.0
    %2440 = vmatprep.subr.mxu0 0.0
    %2441 = vmatpush1.xpose.msra.mxu0 0.0
    %2442 = vmatprep.subr.mxu0 0.0
    %2443 = vmatpush1.xpose.msra.mxu0 0.0
    %2444 = vmatprep.subr.mxu0 0.0
    %2445 = vmatpush1.xpose.msra.mxu0 0.0
    %2446 = vmatprep.subr.mxu0 0.0
    %2447 = vmatpush1.xpose.msra.mxu0 0.0
    %2448 = vmatprep.subr.mxu0 0.0
    %2449 = vmatpush1.xpose.msra.mxu0 0.0
    %2450 = vmatprep.subr.mxu0 0.0
    %2451 = vmatpush1.xpose.msra.mxu0 0.0
    %2452 = vmatprep.subr.mxu0 0.0
    %2453 = vmatpush1.xpose.msra.mxu0 0.0
    %2454 = vmatprep.subr.mxu0 0.0
    %2455 = vmatpush1.xpose.msra.mxu0 0.0
    %2456 = vmatprep.mubr.f32.mxu0 0.0
    %2457 = vmatmul.mubr.f32.gmra.mrb[0].mxu0 %v2388
    %v2458 = vpop.f32.mrb[0].mxu0
    %v2459 = vadd.f32 0.0, %v2458
    %v2460 = vpop.f32.mrb[0].mxu0
    %2461 = vdwg.mxu0
    %2462 = vrot.lane.b32.xlu0 %v2003, 96
    %v2463 = vpop.permute.xlu0 %2462
    %v2464 = vsel %vm162, %v2003, 0
    %v2466 = vsel %vm162, %v2463, 0
    %2468 = vmatprep.subr.mxu0 0.0
    %2469 = vmatpush1.xpose.msra.mxu0 %v2466
    %2470 = vmatprep.subr.mxu0 0.0
    %2471 = vmatpush1.xpose.msra.mxu0 0.0
    %2472 = vmatprep.subr.mxu0 0.0
    %2473 = vmatpush1.xpose.msra.mxu0 0.0
    %2474 = vmatprep.subr.mxu0 0.0
    %2475 = vmatpush1.xpose.msra.mxu0 0.0
    %2476 = vmatprep.subr.mxu0 0.0
    %2477 = vmatpush1.xpose.msra.mxu0 0.0
    %2478 = vmatprep.subr.mxu0 0.0
    %2479 = vmatpush1.xpose.msra.mxu0 0.0
    %2480 = vmatprep.subr.mxu0 0.0
    %2481 = vmatpush1.xpose.msra.mxu0 0.0
    %2482 = vmatprep.subr.mxu0 0.0
    %2483 = vmatpush1.xpose.msra.mxu0 0.0
    %2484 = vmatprep.subr.mxu0 0.0
    %2485 = vmatpush1.xpose.msra.mxu0 0.0
    %2486 = vmatprep.subr.mxu0 0.0
    %2487 = vmatpush1.xpose.msra.mxu0 0.0
    %2488 = vmatprep.subr.mxu0 0.0
    %2489 = vmatpush1.xpose.msra.mxu0 0.0
    %2490 = vmatprep.subr.mxu0 0.0
    %2491 = vmatpush1.xpose.msra.mxu0 0.0
    %2492 = vmatprep.subr.mxu0 0.0
    %2493 = vmatpush1.xpose.msra.mxu0 0.0
    %2494 = vmatprep.subr.mxu0 0.0
    %2495 = vmatpush1.xpose.msra.mxu0 0.0
    %2496 = vmatprep.subr.mxu0 0.0
    %2497 = vmatpush1.xpose.msra.mxu0 0.0
    %2498 = vmatprep.subr.mxu0 0.0
    %2499 = vmatpush1.xpose.msra.mxu0 0.0
    %2500 = vmatprep.subr.mxu0 0.0
    %2501 = vmatpush1.xpose.msra.mxu0 0.0
    %2502 = vmatprep.subr.mxu0 0.0
    %2503 = vmatpush1.xpose.msra.mxu0 0.0
    %2504 = vmatprep.subr.mxu0 0.0
    %2505 = vmatpush1.xpose.msra.mxu0 0.0
    %2506 = vmatprep.subr.mxu0 0.0
    %2507 = vmatpush1.xpose.msra.mxu0 0.0
    %2508 = vmatprep.subr.mxu0 0.0
    %2509 = vmatpush1.xpose.msra.mxu0 0.0
    %2510 = vmatprep.subr.mxu0 0.0
    %2511 = vmatpush1.xpose.msra.mxu0 0.0
    %2512 = vmatprep.subr.mxu0 0.0
    %2513 = vmatpush1.xpose.msra.mxu0 0.0
    %2514 = vmatprep.subr.mxu0 0.0
    %2515 = vmatpush1.xpose.msra.mxu0 0.0
    %2516 = vmatprep.subr.mxu0 0.0
    %2517 = vmatpush1.xpose.msra.mxu0 0.0
    %2518 = vmatprep.subr.mxu0 0.0
    %2519 = vmatpush1.xpose.msra.mxu0 0.0
    %2520 = vmatprep.subr.mxu0 0.0
    %2521 = vmatpush1.xpose.msra.mxu0 0.0
    %2522 = vmatprep.subr.mxu0 0.0
    %2523 = vmatpush1.xpose.msra.mxu0 0.0
    %2524 = vmatprep.subr.mxu0 0.0
    %2525 = vmatpush1.xpose.msra.mxu0 0.0
    %2526 = vmatprep.subr.mxu0 0.0
    %2527 = vmatpush1.xpose.msra.mxu0 0.0
    %2528 = vmatprep.subr.mxu0 0.0
    %2529 = vmatpush1.xpose.msra.mxu0 0.0
    %2530 = vmatprep.subr.mxu0 0.0
    %2531 = vmatpush1.xpose.msra.mxu0 0.0
    %2532 = vmatprep.mubr.f32.mxu0 0.0
    %2533 = vmatmul.mubr.f32.gmra.mrb[0].mxu0 %v2464
    %v2534 = vpop.f32.mrb[0].mxu0
    %v2535 = vadd.f32 0.0, %v2534
    %v2536 = vpop.f32.mrb[0].mxu0
    %2537 = vdwg.mxu0
    %2538 = vrot.lane.b32.xlu0 %v2005, 96
    %v2539 = vpop.permute.xlu0 %2538
    %v2540 = vsel %vm162, %v2005, 0
    %v2542 = vsel %vm162, %v2539, 0
    %2544 = vmatprep.subr.mxu0 0.0
    %2545 = vmatpush1.xpose.msra.mxu0 %v2542
    %2546 = vmatprep.subr.mxu0 0.0
    %2547 = vmatpush1.xpose.msra.mxu0 0.0
    %2548 = vmatprep.subr.mxu0 0.0
    %2549 = vmatpush1.xpose.msra.mxu0 0.0
    %2550 = vmatprep.subr.mxu0 0.0
    %2551 = vmatpush1.xpose.msra.mxu0 0.0
    %2552 = vmatprep.subr.mxu0 0.0
    %2553 = vmatpush1.xpose.msra.mxu0 0.0
    %2554 = vmatprep.subr.mxu0 0.0
    %2555 = vmatpush1.xpose.msra.mxu0 0.0
    %2556 = vmatprep.subr.mxu0 0.0
    %2557 = vmatpush1.xpose.msra.mxu0 0.0
    %2558 = vmatprep.subr.mxu0 0.0
    %2559 = vmatpush1.xpose.msra.mxu0 0.0
    %2560 = vmatprep.subr.mxu0 0.0
    %2561 = vmatpush1.xpose.msra.mxu0 0.0
    %2562 = vmatprep.subr.mxu0 0.0
    %2563 = vmatpush1.xpose.msra.mxu0 0.0
    %2564 = vmatprep.subr.mxu0 0.0
    %2565 = vmatpush1.xpose.msra.mxu0 0.0
    %2566 = vmatprep.subr.mxu0 0.0
    %2567 = vmatpush1.xpose.msra.mxu0 0.0
    %2568 = vmatprep.subr.mxu0 0.0
    %2569 = vmatpush1.xpose.msra.mxu0 0.0
    %2570 = vmatprep.subr.mxu0 0.0
    %2571 = vmatpush1.xpose.msra.mxu0 0.0
    %2572 = vmatprep.subr.mxu0 0.0
    %2573 = vmatpush1.xpose.msra.mxu0 0.0
    %2574 = vmatprep.subr.mxu0 0.0
    %2575 = vmatpush1.xpose.msra.mxu0 0.0
    %2576 = vmatprep.subr.mxu0 0.0
    %2577 = vmatpush1.xpose.msra.mxu0 0.0
    %2578 = vmatprep.subr.mxu0 0.0
    %2579 = vmatpush1.xpose.msra.mxu0 0.0
    %2580 = vmatprep.subr.mxu0 0.0
    %2581 = vmatpush1.xpose.msra.mxu0 0.0
    %2582 = vmatprep.subr.mxu0 0.0
    %2583 = vmatpush1.xpose.msra.mxu0 0.0
    %2584 = vmatprep.subr.mxu0 0.0
    %2585 = vmatpush1.xpose.msra.mxu0 0.0
    %2586 = vmatprep.subr.mxu0 0.0
    %2587 = vmatpush1.xpose.msra.mxu0 0.0
    %2588 = vmatprep.subr.mxu0 0.0
    %2589 = vmatpush1.xpose.msra.mxu0 0.0
    %2590 = vmatprep.subr.mxu0 0.0
    %2591 = vmatpush1.xpose.msra.mxu0 0.0
    %2592 = vmatprep.subr.mxu0 0.0
    %2593 = vmatpush1.xpose.msra.mxu0 0.0
    %2594 = vmatprep.subr.mxu0 0.0
    %2595 = vmatpush1.xpose.msra.mxu0 0.0
    %2596 = vmatprep.subr.mxu0 0.0
    %2597 = vmatpush1.xpose.msra.mxu0 0.0
    %2598 = vmatprep.subr.mxu0 0.0
    %2599 = vmatpush1.xpose.msra.mxu0 0.0
    %2600 = vmatprep.subr.mxu0 0.0
    %2601 = vmatpush1.xpose.msra.mxu0 0.0
    %2602 = vmatprep.subr.mxu0 0.0
    %2603 = vmatpush1.xpose.msra.mxu0 0.0
    %2604 = vmatprep.subr.mxu0 0.0
    %2605 = vmatpush1.xpose.msra.mxu0 0.0
    %2606 = vmatprep.subr.mxu0 0.0
    %2607 = vmatpush1.xpose.msra.mxu0 0.0
    %2608 = vmatprep.mubr.f32.mxu0 0.0
    %2609 = vmatmul.mubr.f32.gmra.mrb[0].mxu0 %v2540
    %v2610 = vpop.f32.mrb[0].mxu0
    %v2611 = vadd.f32 0.0, %v2610
    %v2612 = vpop.f32.mrb[0].mxu0
    %2613 = vdwg.mxu0
    %v2614 = vsel %vm162, %v2079, -inf
    %2615 = vmax.xlane.f32.xlu0 %v2614
    %v2616 = vpop.xlane.xlu0 %2615
    %v2617 = vsel %vm162, %v2155, -inf
    %2618 = vmax.xlane.f32.xlu0 %v2617
    %v2619 = vpop.xlane.xlu0 %2618
    %v2620 = vsel %vm162, %v2231, -inf
    %2621 = vmax.xlane.f32.xlu0 %v2620
    %v2622 = vpop.xlane.xlu0 %2621
    %v2623 = vsel %vm162, %v2307, -inf
    %2624 = vmax.xlane.f32.xlu0 %v2623
    %v2625 = vpop.xlane.xlu0 %2624
    %v2626 = vsel %vm162, %v2383, -inf
    %2627 = vmax.xlane.f32.xlu0 %v2626
    %v2628 = vpop.xlane.xlu0 %2627
    %v2629 = vsel %vm162, %v2459, -inf
    %2630 = vmax.xlane.f32.xlu0 %v2629
    %v2631 = vpop.xlane.xlu0 %2630
    %v2632 = vsel %vm162, %v2535, -inf
    %2633 = vmax.xlane.f32.xlu0 %v2632
    %v2634 = vpop.xlane.xlu0 %2633
    %v2635 = vsel %vm162, %v2611, -inf
    %2636 = vmax.xlane.f32.xlu0 %v2635
    %v2637 = vpop.xlane.xlu0 %2636
    %v2638 = vsub.f32 %v2079, %v2616
    %v2639 = vsub.f32 %v2155, %v2619
    %v2640 = vsub.f32 %v2231, %v2622
    %v2641 = vsub.f32 %v2307, %v2625
    %v2642 = vsub.f32 %v2383, %v2628
    %v2643 = vsub.f32 %v2459, %v2631
    %v2644 = vsub.f32 %v2535, %v2634
    %v2645 = vsub.f32 %v2611, %v2637
    %v2646 = vmul.f32 %v2638, 1.442695
    %v2647 = vpow.pop %v2646
    %v2648 = vmul.f32 %v2639, 1.442695
    %v2649 = vpow.pop %v2648
    %v2650 = vmul.f32 %v2640, 1.442695
    %v2651 = vpow.pop %v2650
    %v2652 = vmul.f32 %v2641, 1.442695
    %v2653 = vpow.pop %v2652
    %v2654 = vmul.f32 %v2642, 1.442695
    %v2655 = vpow.pop %v2654
    %v2656 = vmul.f32 %v2643, 1.442695
    %v2657 = vpow.pop %v2656
    %v2658 = vmul.f32 %v2644, 1.442695
    %v2659 = vpow.pop %v2658
    %v2660 = vmul.f32 %v2645, 1.442695
    %v2661 = vpow.pop %v2660
    %v2662 = vsel %vm162, %v2647, 0.0
    %2663 = vadd.xlane.f32.xlu0 %v2662
    %v2664 = vpop.xlane.xlu0 %2663
    %v2665 = vsel %vm162, %v2649, 0.0
    %2666 = vadd.xlane.f32.xlu0 %v2665
    %v2667 = vpop.xlane.xlu0 %2666
    %v2668 = vsel %vm162, %v2651, 0.0
    %2669 = vadd.xlane.f32.xlu0 %v2668
    %v2670 = vpop.xlane.xlu0 %2669
    %v2671 = vsel %vm162, %v2653, 0.0
    %2672 = vadd.xlane.f32.xlu0 %v2671
    %v2673 = vpop.xlane.xlu0 %2672
    %v2674 = vsel %vm162, %v2655, 0.0
    %2675 = vadd.xlane.f32.xlu0 %v2674
    %v2676 = vpop.xlane.xlu0 %2675
    %v2677 = vsel %vm162, %v2657, 0.0
    %2678 = vadd.xlane.f32.xlu0 %v2677
    %v2679 = vpop.xlane.xlu0 %2678
    %v2680 = vsel %vm162, %v2659, 0.0
    %2681 = vadd.xlane.f32.xlu0 %v2680
    %v2682 = vpop.xlane.xlu0 %2681
    %v2683 = vsel %vm162, %v2661, 0.0
    %2684 = vadd.xlane.f32.xlu0 %v2683
    %v2685 = vpop.xlane.xlu0 %2684
    %v2686 = vrcp.pop %v2664
    %v2687 = vrcp.pop %v2667
    %v2688 = vrcp.pop %v2670
    %v2689 = vrcp.pop %v2673
    %v2690 = vrcp.pop %v2676
    %v2691 = vrcp.pop %v2679
    %v2692 = vrcp.pop %v2682
    %v2693 = vrcp.pop %v2685
    %v2694 = vmul.f32 %v2647, %v2686
    %v2695 = vmul.f32 %v2649, %v2687
    %v2696 = vmul.f32 %v2651, %v2688
    %v2697 = vmul.f32 %v2653, %v2689
    %v2698 = vmul.f32 %v2655, %v2690
    %v2699 = vmul.f32 %v2657, %v2691
    %v2700 = vmul.f32 %v2659, %v2692
    %v2701 = vmul.f32 %v2661, %v2693
    %2702 = vrot.lane.b32.xlu0 %v1984, 64
    %v2703 = vpop.permute.xlu0 %2702
    %v2706 = vsel %vm162, %v2694, 0
    %2708 = vmatprep.subr.mxu0 0.0
    %2709 = vmatpush1.msra.mxu0 %v2703
    %2710 = vmatprep.subr.mxu0 0.0
    %2711 = vmatpush1.msra.mxu0 0.0
    %2712 = vmatprep.subr.mxu0 0.0
    %2713 = vmatpush1.msra.mxu0 0.0
    %2714 = vmatprep.subr.mxu0 0.0
    %2715 = vmatpush1.msra.mxu0 0.0
    %2716 = vmatprep.subr.mxu0 0.0
    %2717 = vmatpush1.msra.mxu0 0.0
    %2718 = vmatprep.subr.mxu0 0.0
    %2719 = vmatpush1.msra.mxu0 0.0
    %2720 = vmatprep.subr.mxu0 0.0
    %2721 = vmatpush1.msra.mxu0 0.0
    %2722 = vmatprep.subr.mxu0 0.0
    %2723 = vmatpush1.msra.mxu0 0.0
    %2724 = vmatprep.subr.mxu0 0.0
    %2725 = vmatpush1.msra.mxu0 0.0
    %2726 = vmatprep.subr.mxu0 0.0
    %2727 = vmatpush1.msra.mxu0 0.0
    %2728 = vmatprep.subr.mxu0 0.0
    %2729 = vmatpush1.msra.mxu0 0.0
    %2730 = vmatprep.subr.mxu0 0.0
    %2731 = vmatpush1.msra.mxu0 0.0
    %2732 = vmatprep.subr.mxu0 0.0
    %2733 = vmatpush1.msra.mxu0 0.0
    %2734 = vmatprep.subr.mxu0 0.0
    %2735 = vmatpush1.msra.mxu0 0.0
    %2736 = vmatprep.subr.mxu0 0.0
    %2737 = vmatpush1.msra.mxu0 0.0
    %2738 = vmatprep.subr.mxu0 0.0
    %2739 = vmatpush1.msra.mxu0 0.0
    %2740 = vmatprep.subr.mxu0 0.0
    %2741 = vmatpush1.msra.mxu0 0.0
    %2742 = vmatprep.subr.mxu0 0.0
    %2743 = vmatpush1.msra.mxu0 0.0
    %2744 = vmatprep.subr.mxu0 0.0
    %2745 = vmatpush1.msra.mxu0 0.0
    %2746 = vmatprep.subr.mxu0 0.0
    %2747 = vmatpush1.msra.mxu0 0.0
    %2748 = vmatprep.subr.mxu0 0.0
    %2749 = vmatpush1.msra.mxu0 0.0
    %2750 = vmatprep.subr.mxu0 0.0
    %2751 = vmatpush1.msra.mxu0 0.0
    %2752 = vmatprep.subr.mxu0 0.0
    %2753 = vmatpush1.msra.mxu0 0.0
    %2754 = vmatprep.subr.mxu0 0.0
    %2755 = vmatpush1.msra.mxu0 0.0
    %2756 = vmatprep.subr.mxu0 0.0
    %2757 = vmatpush1.msra.mxu0 0.0
    %2758 = vmatprep.subr.mxu0 0.0
    %2759 = vmatpush1.msra.mxu0 0.0
    %2760 = vmatprep.subr.mxu0 0.0
    %2761 = vmatpush1.msra.mxu0 0.0
    %2762 = vmatprep.subr.mxu0 0.0
    %2763 = vmatpush1.msra.mxu0 0.0
    %2764 = vmatprep.subr.mxu0 0.0
    %2765 = vmatpush1.msra.mxu0 0.0
    %2766 = vmatprep.subr.mxu0 0.0
    %2767 = vmatpush1.msra.mxu0 0.0
    %2768 = vmatprep.subr.mxu0 0.0
    %2769 = vmatpush1.msra.mxu0 0.0
    %2770 = vmatprep.subr.mxu0 0.0
    %2771 = vmatpush1.msra.mxu0 0.0
    %2772 = vmatprep.mubr.f32.mxu0 0.0
    %2773 = vmatmul.mubr.f32.gmra.mrb[0].mxu0 %v2706
    %v2774 = vpop.f32.mrb[0].mxu0
    %v2775 = vadd.f32 0.0, %v2774
    %v2776 = vpop.f32.mrb[0].mxu0
    %2777 = vdwg.mxu0
    %2778 = vrot.lane.b32.xlu0 %v1994, 64
    %v2779 = vpop.permute.xlu0 %2778
    %v2782 = vsel %vm162, %v2695, 0
    %2784 = vmatprep.subr.mxu0 0.0
    %2785 = vmatpush1.msra.mxu0 %v2779
    %2786 = vmatprep.subr.mxu0 0.0
    %2787 = vmatpush1.msra.mxu0 0.0
    %2788 = vmatprep.subr.mxu0 0.0
    %2789 = vmatpush1.msra.mxu0 0.0
    %2790 = vmatprep.subr.mxu0 0.0
    %2791 = vmatpush1.msra.mxu0 0.0
    %2792 = vmatprep.subr.mxu0 0.0
    %2793 = vmatpush1.msra.mxu0 0.0
    %2794 = vmatprep.subr.mxu0 0.0
    %2795 = vmatpush1.msra.mxu0 0.0
    %2796 = vmatprep.subr.mxu0 0.0
    %2797 = vmatpush1.msra.mxu0 0.0
    %2798 = vmatprep.subr.mxu0 0.0
    %2799 = vmatpush1.msra.mxu0 0.0
    %2800 = vmatprep.subr.mxu0 0.0
    %2801 = vmatpush1.msra.mxu0 0.0
    %2802 = vmatprep.subr.mxu0 0.0
    %2803 = vmatpush1.msra.mxu0 0.0
    %2804 = vmatprep.subr.mxu0 0.0
    %2805 = vmatpush1.msra.mxu0 0.0
    %2806 = vmatprep.subr.mxu0 0.0
    %2807 = vmatpush1.msra.mxu0 0.0
    %2808 = vmatprep.subr.mxu0 0.0
    %2809 = vmatpush1.msra.mxu0 0.0
    %2810 = vmatprep.subr.mxu0 0.0
    %2811 = vmatpush1.msra.mxu0 0.0
    %2812 = vmatprep.subr.mxu0 0.0
    %2813 = vmatpush1.msra.mxu0 0.0
    %2814 = vmatprep.subr.mxu0 0.0
    %2815 = vmatpush1.msra.mxu0 0.0
    %2816 = vmatprep.subr.mxu0 0.0
    %2817 = vmatpush1.msra.mxu0 0.0
    %2818 = vmatprep.subr.mxu0 0.0
    %2819 = vmatpush1.msra.mxu0 0.0
    %2820 = vmatprep.subr.mxu0 0.0
    %2821 = vmatpush1.msra.mxu0 0.0
    %2822 = vmatprep.subr.mxu0 0.0
    %2823 = vmatpush1.msra.mxu0 0.0
    %2824 = vmatprep.subr.mxu0 0.0
    %2825 = vmatpush1.msra.mxu0 0.0
    %2826 = vmatprep.subr.mxu0 0.0
    %2827 = vmatpush1.msra.mxu0 0.0
    %2828 = vmatprep.subr.mxu0 0.0
    %2829 = vmatpush1.msra.mxu0 0.0
    %2830 = vmatprep.subr.mxu0 0.0
    %2831 = vmatpush1.msra.mxu0 0.0
    %2832 = vmatprep.subr.mxu0 0.0
    %2833 = vmatpush1.msra.mxu0 0.0
    %2834 = vmatprep.subr.mxu0 0.0
    %2835 = vmatpush1.msra.mxu0 0.0
    %2836 = vmatprep.subr.mxu0 0.0
    %2837 = vmatpush1.msra.mxu0 0.0
    %2838 = vmatprep.subr.mxu0 0.0
    %2839 = vmatpush1.msra.mxu0 0.0
    %2840 = vmatprep.subr.mxu0 0.0
    %2841 = vmatpush1.msra.mxu0 0.0
    %2842 = vmatprep.subr.mxu0 0.0
    %2843 = vmatpush1.msra.mxu0 0.0
    %2844 = vmatprep.subr.mxu0 0.0
    %2845 = vmatpush1.msra.mxu0 0.0
    %2846 = vmatprep.subr.mxu0 0.0
    %2847 = vmatpush1.msra.mxu0 0.0
    %2848 = vmatprep.mubr.f32.mxu0 0.0
    %2849 = vmatmul.mubr.f32.gmra.mrb[0].mxu0 %v2782
    %v2850 = vpop.f32.mrb[0].mxu0
    %v2851 = vadd.f32 0.0, %v2850
    %v2852 = vpop.f32.mrb[0].mxu0
    %2853 = vdwg.mxu0
    %2854 = vrot.lane.b32.xlu0 %v1996, 64
    %v2855 = vpop.permute.xlu0 %2854
    %v2858 = vsel %vm162, %v2696, 0
    %2860 = vmatprep.subr.mxu0 0.0
    %2861 = vmatpush1.msra.mxu0 %v2855
    %2862 = vmatprep.subr.mxu0 0.0
    %2863 = vmatpush1.msra.mxu0 0.0
    %2864 = vmatprep.subr.mxu0 0.0
    %2865 = vmatpush1.msra.mxu0 0.0
    %2866 = vmatprep.subr.mxu0 0.0
    %2867 = vmatpush1.msra.mxu0 0.0
    %2868 = vmatprep.subr.mxu0 0.0
    %2869 = vmatpush1.msra.mxu0 0.0
    %2870 = vmatprep.subr.mxu0 0.0
    %2871 = vmatpush1.msra.mxu0 0.0
    %2872 = vmatprep.subr.mxu0 0.0
    %2873 = vmatpush1.msra.mxu0 0.0
    %2874 = vmatprep.subr.mxu0 0.0
    %2875 = vmatpush1.msra.mxu0 0.0
    %2876 = vmatprep.subr.mxu0 0.0
    %2877 = vmatpush1.msra.mxu0 0.0
    %2878 = vmatprep.subr.mxu0 0.0
    %2879 = vmatpush1.msra.mxu0 0.0
    %2880 = vmatprep.subr.mxu0 0.0
    %2881 = vmatpush1.msra.mxu0 0.0
    %2882 = vmatprep.subr.mxu0 0.0
    %2883 = vmatpush1.msra.mxu0 0.0
    %2884 = vmatprep.subr.mxu0 0.0
    %2885 = vmatpush1.msra.mxu0 0.0
    %2886 = vmatprep.subr.mxu0 0.0
    %2887 = vmatpush1.msra.mxu0 0.0
    %2888 = vmatprep.subr.mxu0 0.0
    %2889 = vmatpush1.msra.mxu0 0.0
    %2890 = vmatprep.subr.mxu0 0.0
    %2891 = vmatpush1.msra.mxu0 0.0
    %2892 = vmatprep.subr.mxu0 0.0
    %2893 = vmatpush1.msra.mxu0 0.0
    %2894 = vmatprep.subr.mxu0 0.0
    %2895 = vmatpush1.msra.mxu0 0.0
    %2896 = vmatprep.subr.mxu0 0.0
    %2897 = vmatpush1.msra.mxu0 0.0
    %2898 = vmatprep.subr.mxu0 0.0
    %2899 = vmatpush1.msra.mxu0 0.0
    %2900 = vmatprep.subr.mxu0 0.0
    %2901 = vmatpush1.msra.mxu0 0.0
    %2902 = vmatprep.subr.mxu0 0.0
    %2903 = vmatpush1.msra.mxu0 0.0
    %2904 = vmatprep.subr.mxu0 0.0
    %2905 = vmatpush1.msra.mxu0 0.0
    %2906 = vmatprep.subr.mxu0 0.0
    %2907 = vmatpush1.msra.mxu0 0.0
    %2908 = vmatprep.subr.mxu0 0.0
    %2909 = vmatpush1.msra.mxu0 0.0
    %2910 = vmatprep.subr.mxu0 0.0
    %2911 = vmatpush1.msra.mxu0 0.0
    %2912 = vmatprep.subr.mxu0 0.0
    %2913 = vmatpush1.msra.mxu0 0.0
    %2914 = vmatprep.subr.mxu0 0.0
    %2915 = vmatpush1.msra.mxu0 0.0
    %2916 = vmatprep.subr.mxu0 0.0
    %2917 = vmatpush1.msra.mxu0 0.0
    %2918 = vmatprep.subr.mxu0 0.0
    %2919 = vmatpush1.msra.mxu0 0.0
    %2920 = vmatprep.subr.mxu0 0.0
    %2921 = vmatpush1.msra.mxu0 0.0
    %2922 = vmatprep.subr.mxu0 0.0
    %2923 = vmatpush1.msra.mxu0 0.0
    %2924 = vmatprep.mubr.f32.mxu0 0.0
    %2925 = vmatmul.mubr.f32.gmra.mrb[0].mxu0 %v2858
    %v2926 = vpop.f32.mrb[0].mxu0
    %v2927 = vadd.f32 0.0, %v2926
    %v2928 = vpop.f32.mrb[0].mxu0
    %2929 = vdwg.mxu0
    %2930 = vrot.lane.b32.xlu0 %v1998, 64
    %v2931 = vpop.permute.xlu0 %2930
    %v2934 = vsel %vm162, %v2697, 0
    %2936 = vmatprep.subr.mxu0 0.0
    %2937 = vmatpush1.msra.mxu0 %v2931
    %2938 = vmatprep.subr.mxu0 0.0
    %2939 = vmatpush1.msra.mxu0 0.0
    %2940 = vmatprep.subr.mxu0 0.0
    %2941 = vmatpush1.msra.mxu0 0.0
    %2942 = vmatprep.subr.mxu0 0.0
    %2943 = vmatpush1.msra.mxu0 0.0
    %2944 = vmatprep.subr.mxu0 0.0
    %2945 = vmatpush1.msra.mxu0 0.0
    %2946 = vmatprep.subr.mxu0 0.0
    %2947 = vmatpush1.msra.mxu0 0.0
    %2948 = vmatprep.subr.mxu0 0.0
    %2949 = vmatpush1.msra.mxu0 0.0
    %2950 = vmatprep.subr.mxu0 0.0
    %2951 = vmatpush1.msra.mxu0 0.0
    %2952 = vmatprep.subr.mxu0 0.0
    %2953 = vmatpush1.msra.mxu0 0.0
    %2954 = vmatprep.subr.mxu0 0.0
    %2955 = vmatpush1.msra.mxu0 0.0
    %2956 = vmatprep.subr.mxu0 0.0
    %2957 = vmatpush1.msra.mxu0 0.0
    %2958 = vmatprep.subr.mxu0 0.0
    %2959 = vmatpush1.msra.mxu0 0.0
    %2960 = vmatprep.subr.mxu0 0.0
    %2961 = vmatpush1.msra.mxu0 0.0
    %2962 = vmatprep.subr.mxu0 0.0
    %2963 = vmatpush1.msra.mxu0 0.0
    %2964 = vmatprep.subr.mxu0 0.0
    %2965 = vmatpush1.msra.mxu0 0.0
    %2966 = vmatprep.subr.mxu0 0.0
    %2967 = vmatpush1.msra.mxu0 0.0
    %2968 = vmatprep.subr.mxu0 0.0
    %2969 = vmatpush1.msra.mxu0 0.0
    %2970 = vmatprep.subr.mxu0 0.0
    %2971 = vmatpush1.msra.mxu0 0.0
    %2972 = vmatprep.subr.mxu0 0.0
    %2973 = vmatpush1.msra.mxu0 0.0
    %2974 = vmatprep.subr.mxu0 0.0
    %2975 = vmatpush1.msra.mxu0 0.0
    %2976 = vmatprep.subr.mxu0 0.0
    %2977 = vmatpush1.msra.mxu0 0.0
    %2978 = vmatprep.subr.mxu0 0.0
    %2979 = vmatpush1.msra.mxu0 0.0
    %2980 = vmatprep.subr.mxu0 0.0
    %2981 = vmatpush1.msra.mxu0 0.0
    %2982 = vmatprep.subr.mxu0 0.0
    %2983 = vmatpush1.msra.mxu0 0.0
    %2984 = vmatprep.subr.mxu0 0.0
    %2985 = vmatpush1.msra.mxu0 0.0
    %2986 = vmatprep.subr.mxu0 0.0
    %2987 = vmatpush1.msra.mxu0 0.0
    %2988 = vmatprep.subr.mxu0 0.0
    %2989 = vmatpush1.msra.mxu0 0.0
    %2990 = vmatprep.subr.mxu0 0.0
    %2991 = vmatpush1.msra.mxu0 0.0
    %2992 = vmatprep.subr.mxu0 0.0
    %2993 = vmatpush1.msra.mxu0 0.0
    %2994 = vmatprep.subr.mxu0 0.0
    %2995 = vmatpush1.msra.mxu0 0.0
    %2996 = vmatprep.subr.mxu0 0.0
    %2997 = vmatpush1.msra.mxu0 0.0
    %2998 = vmatprep.subr.mxu0 0.0
    %2999 = vmatpush1.msra.mxu0 0.0
    %3000 = vmatprep.mubr.f32.mxu0 0.0
    %3001 = vmatmul.mubr.f32.gmra.mrb[0].mxu0 %v2934
    %v3002 = vpop.f32.mrb[0].mxu0
    %v3003 = vadd.f32 0.0, %v3002
    %v3004 = vpop.f32.mrb[0].mxu0
    %3005 = vdwg.mxu0
    %3006 = vrot.lane.b32.xlu0 %v1989, 64
    %v3007 = vpop.permute.xlu0 %3006
    %v3010 = vsel %vm162, %v2698, 0
    %3012 = vmatprep.subr.mxu0 0.0
    %3013 = vmatpush1.msra.mxu0 %v3007
    %3014 = vmatprep.subr.mxu0 0.0
    %3015 = vmatpush1.msra.mxu0 0.0
    %3016 = vmatprep.subr.mxu0 0.0
    %3017 = vmatpush1.msra.mxu0 0.0
    %3018 = vmatprep.subr.mxu0 0.0
    %3019 = vmatpush1.msra.mxu0 0.0
    %3020 = vmatprep.subr.mxu0 0.0
    %3021 = vmatpush1.msra.mxu0 0.0
    %3022 = vmatprep.subr.mxu0 0.0
    %3023 = vmatpush1.msra.mxu0 0.0
    %3024 = vmatprep.subr.mxu0 0.0
    %3025 = vmatpush1.msra.mxu0 0.0
    %3026 = vmatprep.subr.mxu0 0.0
    %3027 = vmatpush1.msra.mxu0 0.0
    %3028 = vmatprep.subr.mxu0 0.0
    %3029 = vmatpush1.msra.mxu0 0.0
    %3030 = vmatprep.subr.mxu0 0.0
    %3031 = vmatpush1.msra.mxu0 0.0
    %3032 = vmatprep.subr.mxu0 0.0
    %3033 = vmatpush1.msra.mxu0 0.0
    %3034 = vmatprep.subr.mxu0 0.0
    %3035 = vmatpush1.msra.mxu0 0.0
    %3036 = vmatprep.subr.mxu0 0.0
    %3037 = vmatpush1.msra.mxu0 0.0
    %3038 = vmatprep.subr.mxu0 0.0
    %3039 = vmatpush1.msra.mxu0 0.0
    %3040 = vmatprep.subr.mxu0 0.0
    %3041 = vmatpush1.msra.mxu0 0.0
    %3042 = vmatprep.subr.mxu0 0.0
    %3043 = vmatpush1.msra.mxu0 0.0
    %3044 = vmatprep.subr.mxu0 0.0
    %3045 = vmatpush1.msra.mxu0 0.0
    %3046 = vmatprep.subr.mxu0 0.0
    %3047 = vmatpush1.msra.mxu0 0.0
    %3048 = vmatprep.subr.mxu0 0.0
    %3049 = vmatpush1.msra.mxu0 0.0
    %3050 = vmatprep.subr.mxu0 0.0
    %3051 = vmatpush1.msra.mxu0 0.0
    %3052 = vmatprep.subr.mxu0 0.0
    %3053 = vmatpush1.msra.mxu0 0.0
    %3054 = vmatprep.subr.mxu0 0.0
    %3055 = vmatpush1.msra.mxu0 0.0
    %3056 = vmatprep.subr.mxu0 0.0
    %3057 = vmatpush1.msra.mxu0 0.0
    %3058 = vmatprep.subr.mxu0 0.0
    %3059 = vmatpush1.msra.mxu0 0.0
    %3060 = vmatprep.subr.mxu0 0.0
    %3061 = vmatpush1.msra.mxu0 0.0
    %3062 = vmatprep.subr.mxu0 0.0
    %3063 = vmatpush1.msra.mxu0 0.0
    %3064 = vmatprep.subr.mxu0 0.0
    %3065 = vmatpush1.msra.mxu0 0.0
    %3066 = vmatprep.subr.mxu0 0.0
    %3067 = vmatpush1.msra.mxu0 0.0
    %3068 = vmatprep.subr.mxu0 0.0
    %3069 = vmatpush1.msra.mxu0 0.0
    %3070 = vmatprep.subr.mxu0 0.0
    %3071 = vmatpush1.msra.mxu0 0.0
    %3072 = vmatprep.subr.mxu0 0.0
    %3073 = vmatpush1.msra.mxu0 0.0
    %3074 = vmatprep.subr.mxu0 0.0
    %3075 = vmatpush1.msra.mxu0 0.0
    %3076 = vmatprep.mubr.f32.mxu0 0.0
    %3077 = vmatmul.mubr.f32.gmra.mrb[0].mxu0 %v3010
    %v3078 = vpop.f32.mrb[0].mxu0
    %v3079 = vadd.f32 0.0, %v3078
    %v3080 = vpop.f32.mrb[0].mxu0
    %3081 = vdwg.mxu0
    %3082 = vrot.lane.b32.xlu0 %v2001, 64
    %v3083 = vpop.permute.xlu0 %3082
    %v3086 = vsel %vm162, %v2699, 0
    %3088 = vmatprep.subr.mxu0 0.0
    %3089 = vmatpush1.msra.mxu0 %v3083
    %3090 = vmatprep.subr.mxu0 0.0
    %3091 = vmatpush1.msra.mxu0 0.0
    %3092 = vmatprep.subr.mxu0 0.0
    %3093 = vmatpush1.msra.mxu0 0.0
    %3094 = vmatprep.subr.mxu0 0.0
    %3095 = vmatpush1.msra.mxu0 0.0
    %3096 = vmatprep.subr.mxu0 0.0
    %3097 = vmatpush1.msra.mxu0 0.0
    %3098 = vmatprep.subr.mxu0 0.0
    %3099 = vmatpush1.msra.mxu0 0.0
    %3100 = vmatprep.subr.mxu0 0.0
    %3101 = vmatpush1.msra.mxu0 0.0
    %3102 = vmatprep.subr.mxu0 0.0
    %3103 = vmatpush1.msra.mxu0 0.0
    %3104 = vmatprep.subr.mxu0 0.0
    %3105 = vmatpush1.msra.mxu0 0.0
    %3106 = vmatprep.subr.mxu0 0.0
    %3107 = vmatpush1.msra.mxu0 0.0
    %3108 = vmatprep.subr.mxu0 0.0
    %3109 = vmatpush1.msra.mxu0 0.0
    %3110 = vmatprep.subr.mxu0 0.0
    %3111 = vmatpush1.msra.mxu0 0.0
    %3112 = vmatprep.subr.mxu0 0.0
    %3113 = vmatpush1.msra.mxu0 0.0
    %3114 = vmatprep.subr.mxu0 0.0
    %3115 = vmatpush1.msra.mxu0 0.0
    %3116 = vmatprep.subr.mxu0 0.0
    %3117 = vmatpush1.msra.mxu0 0.0
    %3118 = vmatprep.subr.mxu0 0.0
    %3119 = vmatpush1.msra.mxu0 0.0
    %3120 = vmatprep.subr.mxu0 0.0
    %3121 = vmatpush1.msra.mxu0 0.0
    %3122 = vmatprep.subr.mxu0 0.0
    %3123 = vmatpush1.msra.mxu0 0.0
    %3124 = vmatprep.subr.mxu0 0.0
    %3125 = vmatpush1.msra.mxu0 0.0
    %3126 = vmatprep.subr.mxu0 0.0
    %3127 = vmatpush1.msra.mxu0 0.0
    %3128 = vmatprep.subr.mxu0 0.0
    %3129 = vmatpush1.msra.mxu0 0.0
    %3130 = vmatprep.subr.mxu0 0.0
    %3131 = vmatpush1.msra.mxu0 0.0
    %3132 = vmatprep.subr.mxu0 0.0
    %3133 = vmatpush1.msra.mxu0 0.0
    %3134 = vmatprep.subr.mxu0 0.0
    %3135 = vmatpush1.msra.mxu0 0.0
    %3136 = vmatprep.subr.mxu0 0.0
    %3137 = vmatpush1.msra.mxu0 0.0
    %3138 = vmatprep.subr.mxu0 0.0
    %3139 = vmatpush1.msra.mxu0 0.0
    %3140 = vmatprep.subr.mxu0 0.0
    %3141 = vmatpush1.msra.mxu0 0.0
    %3142 = vmatprep.subr.mxu0 0.0
    %3143 = vmatpush1.msra.mxu0 0.0
    %3144 = vmatprep.subr.mxu0 0.0
    %3145 = vmatpush1.msra.mxu0 0.0
    %3146 = vmatprep.subr.mxu0 0.0
    %3147 = vmatpush1.msra.mxu0 0.0
    %3148 = vmatprep.subr.mxu0 0.0
    %3149 = vmatpush1.msra.mxu0 0.0
    %3150 = vmatprep.subr.mxu0 0.0
    %3151 = vmatpush1.msra.mxu0 0.0
    %3152 = vmatprep.mubr.f32.mxu0 0.0
    %3153 = vmatmul.mubr.f32.gmra.mrb[0].mxu0 %v3086
    %v3154 = vpop.f32.mrb[0].mxu0
    %v3155 = vadd.f32 0.0, %v3154
    %v3156 = vpop.f32.mrb[0].mxu0
    %3157 = vdwg.mxu0
    %3158 = vrot.lane.b32.xlu0 %v2003, 64
    %v3159 = vpop.permute.xlu0 %3158
    %v3162 = vsel %vm162, %v2700, 0
    %3164 = vmatprep.subr.mxu0 0.0
    %3165 = vmatpush1.msra.mxu0 %v3159
    %3166 = vmatprep.subr.mxu0 0.0
    %3167 = vmatpush1.msra.mxu0 0.0
    %3168 = vmatprep.subr.mxu0 0.0
    %3169 = vmatpush1.msra.mxu0 0.0
    %3170 = vmatprep.subr.mxu0 0.0
    %3171 = vmatpush1.msra.mxu0 0.0
    %3172 = vmatprep.subr.mxu0 0.0
    %3173 = vmatpush1.msra.mxu0 0.0
    %3174 = vmatprep.subr.mxu0 0.0
    %3175 = vmatpush1.msra.mxu0 0.0
    %3176 = vmatprep.subr.mxu0 0.0
    %3177 = vmatpush1.msra.mxu0 0.0
    %3178 = vmatprep.subr.mxu0 0.0
    %3179 = vmatpush1.msra.mxu0 0.0
    %3180 = vmatprep.subr.mxu0 0.0
    %3181 = vmatpush1.msra.mxu0 0.0
    %3182 = vmatprep.subr.mxu0 0.0
    %3183 = vmatpush1.msra.mxu0 0.0
    %3184 = vmatprep.subr.mxu0 0.0
    %3185 = vmatpush1.msra.mxu0 0.0
    %3186 = vmatprep.subr.mxu0 0.0
    %3187 = vmatpush1.msra.mxu0 0.0
    %3188 = vmatprep.subr.mxu0 0.0
    %3189 = vmatpush1.msra.mxu0 0.0
    %3190 = vmatprep.subr.mxu0 0.0
    %3191 = vmatpush1.msra.mxu0 0.0
    %3192 = vmatprep.subr.mxu0 0.0
    %3193 = vmatpush1.msra.mxu0 0.0
    %3194 = vmatprep.subr.mxu0 0.0
    %3195 = vmatpush1.msra.mxu0 0.0
    %3196 = vmatprep.subr.mxu0 0.0
    %3197 = vmatpush1.msra.mxu0 0.0
    %3198 = vmatprep.subr.mxu0 0.0
    %3199 = vmatpush1.msra.mxu0 0.0
    %3200 = vmatprep.subr.mxu0 0.0
    %3201 = vmatpush1.msra.mxu0 0.0
    %3202 = vmatprep.subr.mxu0 0.0
    %3203 = vmatpush1.msra.mxu0 0.0
    %3204 = vmatprep.subr.mxu0 0.0
    %3205 = vmatpush1.msra.mxu0 0.0
    %3206 = vmatprep.subr.mxu0 0.0
    %3207 = vmatpush1.msra.mxu0 0.0
    %3208 = vmatprep.subr.mxu0 0.0
    %3209 = vmatpush1.msra.mxu0 0.0
    %3210 = vmatprep.subr.mxu0 0.0
    %3211 = vmatpush1.msra.mxu0 0.0
    %3212 = vmatprep.subr.mxu0 0.0
    %3213 = vmatpush1.msra.mxu0 0.0
    %3214 = vmatprep.subr.mxu0 0.0
    %3215 = vmatpush1.msra.mxu0 0.0
    %3216 = vmatprep.subr.mxu0 0.0
    %3217 = vmatpush1.msra.mxu0 0.0
    %3218 = vmatprep.subr.mxu0 0.0
    %3219 = vmatpush1.msra.mxu0 0.0
    %3220 = vmatprep.subr.mxu0 0.0
    %3221 = vmatpush1.msra.mxu0 0.0
    %3222 = vmatprep.subr.mxu0 0.0
    %3223 = vmatpush1.msra.mxu0 0.0
    %3224 = vmatprep.subr.mxu0 0.0
    %3225 = vmatpush1.msra.mxu0 0.0
    %3226 = vmatprep.subr.mxu0 0.0
    %3227 = vmatpush1.msra.mxu0 0.0
    %3228 = vmatprep.mubr.f32.mxu0 0.0
    %3229 = vmatmul.mubr.f32.gmra.mrb[0].mxu0 %v3162
    %v3230 = vpop.f32.mrb[0].mxu0
    %v3231 = vadd.f32 0.0, %v3230
    %v3232 = vpop.f32.mrb[0].mxu0
    %3233 = vdwg.mxu0
    %3234 = vrot.lane.b32.xlu0 %v2005, 64
    %v3235 = vpop.permute.xlu0 %3234
    %v3238 = vsel %vm162, %v2701, 0
    %3240 = vmatprep.subr.mxu0 0.0
    %3241 = vmatpush1.msra.mxu0 %v3235
    %3242 = vmatprep.subr.mxu0 0.0
    %3243 = vmatpush1.msra.mxu0 0.0
    %3244 = vmatprep.subr.mxu0 0.0
    %3245 = vmatpush1.msra.mxu0 0.0
    %3246 = vmatprep.subr.mxu0 0.0
    %3247 = vmatpush1.msra.mxu0 0.0
    %3248 = vmatprep.subr.mxu0 0.0
    %3249 = vmatpush1.msra.mxu0 0.0
    %3250 = vmatprep.subr.mxu0 0.0
    %3251 = vmatpush1.msra.mxu0 0.0
    %3252 = vmatprep.subr.mxu0 0.0
    %3253 = vmatpush1.msra.mxu0 0.0
    %3254 = vmatprep.subr.mxu0 0.0
    %3255 = vmatpush1.msra.mxu0 0.0
    %3256 = vmatprep.subr.mxu0 0.0
    %3257 = vmatpush1.msra.mxu0 0.0
    %3258 = vmatprep.subr.mxu0 0.0
    %3259 = vmatpush1.msra.mxu0 0.0
    %3260 = vmatprep.subr.mxu0 0.0
    %3261 = vmatpush1.msra.mxu0 0.0
    %3262 = vmatprep.subr.mxu0 0.0
    %3263 = vmatpush1.msra.mxu0 0.0
    %3264 = vmatprep.subr.mxu0 0.0
    %3265 = vmatpush1.msra.mxu0 0.0
    %3266 = vmatprep.subr.mxu0 0.0
    %3267 = vmatpush1.msra.mxu0 0.0
    %3268 = vmatprep.subr.mxu0 0.0
    %3269 = vmatpush1.msra.mxu0 0.0
    %3270 = vmatprep.subr.mxu0 0.0
    %3271 = vmatpush1.msra.mxu0 0.0
    %3272 = vmatprep.subr.mxu0 0.0
    %3273 = vmatpush1.msra.mxu0 0.0
    %3274 = vmatprep.subr.mxu0 0.0
    %3275 = vmatpush1.msra.mxu0 0.0
    %3276 = vmatprep.subr.mxu0 0.0
    %3277 = vmatpush1.msra.mxu0 0.0
    %3278 = vmatprep.subr.mxu0 0.0
    %3279 = vmatpush1.msra.mxu0 0.0
    %3280 = vmatprep.subr.mxu0 0.0
    %3281 = vmatpush1.msra.mxu0 0.0
    %3282 = vmatprep.subr.mxu0 0.0
    %3283 = vmatpush1.msra.mxu0 0.0
    %3284 = vmatprep.subr.mxu0 0.0
    %3285 = vmatpush1.msra.mxu0 0.0
    %3286 = vmatprep.subr.mxu0 0.0
    %3287 = vmatpush1.msra.mxu0 0.0
    %3288 = vmatprep.subr.mxu0 0.0
    %3289 = vmatpush1.msra.mxu0 0.0
    %3290 = vmatprep.subr.mxu0 0.0
    %3291 = vmatpush1.msra.mxu0 0.0
    %3292 = vmatprep.subr.mxu0 0.0
    %3293 = vmatpush1.msra.mxu0 0.0
    %3294 = vmatprep.subr.mxu0 0.0
    %3295 = vmatpush1.msra.mxu0 0.0
    %3296 = vmatprep.subr.mxu0 0.0
    %3297 = vmatpush1.msra.mxu0 0.0
    %3298 = vmatprep.subr.mxu0 0.0
    %3299 = vmatpush1.msra.mxu0 0.0
    %3300 = vmatprep.subr.mxu0 0.0
    %3301 = vmatpush1.msra.mxu0 0.0
    %3302 = vmatprep.subr.mxu0 0.0
    %3303 = vmatpush1.msra.mxu0 0.0
    %3304 = vmatprep.mubr.f32.mxu0 0.0
    %3305 = vmatmul.mubr.f32.gmra.mrb[0].mxu0 %v3238
    %v3306 = vpop.f32.mrb[0].mxu0
    %v3307 = vadd.f32 0.0, %v3306
    %v3308 = vpop.f32.mrb[0].mxu0
    %3309 = vdwg.mxu0
    %3311 = vrot.lane.b32.xlu0 %v2851, 8
    %v3312 = vpop.permute.xlu0 %3311
    %3315 = vrot.lane.b32.xlu0 %v2927, 16
    %v3316 = vpop.permute.xlu0 %3315
    %3319 = vrot.lane.b32.xlu0 %v3003, 24
    %v3320 = vpop.permute.xlu0 %3319
    %v3322 = vsel %vm162, %v2775, %v3312
    %v3323 = vsel %vm1478, %v3322, %v3316
    %v3324 = vsel %vm1480, %v3323, %v3320
    %3326 = vrot.lane.b32.xlu0 %v3155, 8
    %v3327 = vpop.permute.xlu0 %3326
    %3330 = vrot.lane.b32.xlu0 %v3231, 16
    %v3331 = vpop.permute.xlu0 %3330
    %3334 = vrot.lane.b32.xlu0 %v3307, 24
    %v3335 = vpop.permute.xlu0 %3334
    %v3337 = vsel %vm162, %v3079, %v3327
    %v3338 = vsel %vm1478, %v3337, %v3331
    %v3339 = vsel %vm1480, %v3338, %v3335
    %3344 = vrot.lane.b32.xlu0 %v1890, 32
    %v3345 = vpop.permute.xlu0 %3344
    %3346 = vrot.lane.b32.xlu0 %v1891, 32
    %v3347 = vpop.permute.xlu0 %3346
    %3348 = vrot.lane.b32.xlu0 %v1892, 32
    %v3349 = vpop.permute.xlu0 %3348
    %3350 = vrot.lane.b32.xlu0 %v1893, 32
    %v3351 = vpop.permute.xlu0 %3350
    %3357 = vrot.lane.b32.xlu0 %v1910, 32
    %v3358 = vpop.permute.xlu0 %3357
    %v3361 = vsel %vm64, %v3324, 0
    %v3364 = vsel %vm64, %v3339, 0
    %3366 = vmatprep.subr.mxu0 0.0
    %3367 = vmatpush1.msra.mxu0 %v3345
    %3368 = vmatprep.subr.mxu0 0.0
    %3369 = vmatpush1.msra.mxu0 %v3347
    %3370 = vmatprep.subr.mxu0 0.0
    %3371 = vmatpush1.msra.mxu0 %v3349
    %3372 = vmatprep.subr.mxu0 0.0
    %3373 = vmatpush1.msra.mxu0 %v3351
    %3374 = vmatprep.subr.mxu0 0.0
    %3375 = vmatpush1.msra.mxu0 0.0
    %3376 = vmatprep.subr.mxu0 0.0
    %3377 = vmatpush1.msra.mxu0 0.0
    %3378 = vmatprep.subr.mxu0 0.0
    %3379 = vmatpush1.msra.mxu0 0.0
    %3380 = vmatprep.subr.mxu0 0.0
    %3381 = vmatpush1.msra.mxu0 0.0
    %3382 = vmatprep.subr.mxu0 0.0
    %3383 = vmatpush1.msra.mxu0 0.0
    %3384 = vmatprep.subr.mxu0 0.0
    %3385 = vmatpush1.msra.mxu0 0.0
    %3386 = vmatprep.subr.mxu0 0.0
    %3387 = vmatpush1.msra.mxu0 0.0
    %3388 = vmatprep.subr.mxu0 0.0
    %3389 = vmatpush1.msra.mxu0 0.0
    %3390 = vmatprep.subr.mxu0 0.0
    %3391 = vmatpush1.msra.mxu0 0.0
    %3392 = vmatprep.subr.mxu0 0.0
    %3393 = vmatpush1.msra.mxu0 0.0
    %3394 = vmatprep.subr.mxu0 0.0
    %3395 = vmatpush1.msra.mxu0 0.0
    %3396 = vmatprep.subr.mxu0 0.0
    %3397 = vmatpush1.msra.mxu0 0.0
    %3398 = vmatprep.subr.mxu0 0.0
    %3399 = vmatpush1.msra.mxu0 0.0
    %3400 = vmatprep.subr.mxu0 0.0
    %3401 = vmatpush1.msra.mxu0 0.0
    %3402 = vmatprep.subr.mxu0 0.0
    %3403 = vmatpush1.msra.mxu0 0.0
    %3404 = vmatprep.subr.mxu0 0.0
    %3405 = vmatpush1.msra.mxu0 0.0
    %3406 = vmatprep.subr.mxu0 0.0
    %3407 = vmatpush1.msra.mxu0 0.0
    %3408 = vmatprep.subr.mxu0 0.0
    %3409 = vmatpush1.msra.mxu0 0.0
    %3410 = vmatprep.subr.mxu0 0.0
    %3411 = vmatpush1.msra.mxu0 0.0
    %3412 = vmatprep.subr.mxu0 0.0
    %3413 = vmatpush1.msra.mxu0 0.0
    %3414 = vmatprep.subr.mxu0 0.0
    %3415 = vmatpush1.msra.mxu0 0.0
    %3416 = vmatprep.subr.mxu0 0.0
    %3417 = vmatpush1.msra.mxu0 0.0
    %3418 = vmatprep.subr.mxu0 0.0
    %3419 = vmatpush1.msra.mxu0 0.0
    %3420 = vmatprep.subr.mxu0 0.0
    %3421 = vmatpush1.msra.mxu0 0.0
    %3422 = vmatprep.subr.mxu0 0.0
    %3423 = vmatpush1.msra.mxu0 0.0
    %3424 = vmatprep.subr.mxu0 0.0
    %3425 = vmatpush1.msra.mxu0 0.0
    %3426 = vmatprep.subr.mxu0 0.0
    %3427 = vmatpush1.msra.mxu0 0.0
    %3428 = vmatprep.subr.mxu0 0.0
    %3429 = vmatpush1.msra.mxu0 0.0
    %3430 = vmatprep.mubr.f32.mxu0 0.0
    %3431 = vmatmul.mubr.f32.gmra.mrb[0].mxu0 %v3361
    %v3432 = vpop.f32.mrb[0].mxu0
    %v3433 = vadd.f32 %v3358, %v3432
    %v3434 = vpop.f32.mrb[0].mxu0
    %3435 = vmatprep.mubr.f32.mxu0 0.0
    %3436 = vmatmul.mubr.f32.gmra.mrb[0].mxu0 %v3364
    %v3437 = vpop.f32.mrb[0].mxu0
    %v3438 = vadd.f32 %v3358, %v3437
    %v3439 = vpop.f32.mrb[0].mxu0
    %3440 = vdwg.mxu0
    %v3441 = vadd.f32 %v1888, %v3433
    %v3442 = vadd.f32 %v1889, %v3438
    %v3443 = vsel %vm64, %v3441, 0.0
    %3444 = vadd.xlane.f32.xlu0 %v3443
    %v3445 = vpop.xlane.xlu0 %3444
    %v3446 = vsel %vm64, %v3442, 0.0
    %3447 = vadd.xlane.f32.xlu0 %v3446
    %v3448 = vpop.xlane.xlu0 %3447
    %v3449 = vmul.f32 %v3445, %v1606
    %v3450 = vmul.f32 %v3448, %v1606
    %v3451 = vsub.f32 %v3441, %v3449
    %v3452 = vsub.f32 %v3442, %v3450
    %v3453 = vmul.f32 %v3451, %v3451
    %v3454 = vmul.f32 %v3452, %v3452
    %v3455 = vsel %vm64, %v3453, 0.0
    %3456 = vadd.xlane.f32.xlu0 %v3455
    %v3457 = vpop.xlane.xlu0 %3456
    %v3458 = vsel %vm64, %v3454, 0.0
    %3459 = vadd.xlane.f32.xlu0 %v3458
    %v3460 = vpop.xlane.xlu0 %3459
    %v3461 = vmul.f32 %v3457, %v1606
    %v3462 = vmul.f32 %v3460, %v1606
    %v3463 = vadd.f32 %v3461, 1e-05
    %v3464 = vadd.f32 %v3462, 1e-05
    %v3465 = vrsqrt.pop %v3463
    %v3466 = vrsqrt.pop %v3464
    %v3467 = vmul.f32 %v3451, %v3465
    %v3468 = vmul.f32 %v3452, %v3466
    %v3469 = vlaneseq
    %v3470 = vshrl.u32 %v3469, 7
    %v3471 = vsub.s32 1, %v3470
    %v3472 = vrot.slane %v1906, %v3471
    %v3473 = vmul.f32 %v3467, %v3472
    %v3474 = vmul.f32 %v3468, %v3472
    %3476 = vrot.lane.b32.xlu0 %v3472, 96
    %v3477 = vpop.permute.xlu0 %3476
    %v3479 = vadd.f32 %v3473, %v3477
    %v3480 = vadd.f32 %v3474, %v3477
    %v3481 = vlaneseq
    %v3482 = vshrl.u32 %v3481, 7
    %v3483 = vsub.s32 2, %v3482
    %v3484 = vrot.slane %v1906, %v3483
    %v3486 = vsel %vm64, %v3479, 0
    %v3489 = vsel %vm64, %v3480, 0
    %3491 = vmatprep.subr.mxu0 0.0
    %3492 = vmatpush1.msra.mxu0 %v1894
    %3493 = vmatprep.subr.mxu0 0.0
    %3494 = vmatpush1.msra.mxu0 %v1895
    %3495 = vmatprep.subr.mxu0 0.0
    %3496 = vmatpush1.msra.mxu0 %v1896
    %3497 = vmatprep.subr.mxu0 0.0
    %3498 = vmatpush1.msra.mxu0 %v1897
    %3499 = vmatprep.subr.mxu0 0.0
    %3500 = vmatpush1.msra.mxu0 0.0
    %3501 = vmatprep.subr.mxu0 0.0
    %3502 = vmatpush1.msra.mxu0 0.0
    %3503 = vmatprep.subr.mxu0 0.0
    %3504 = vmatpush1.msra.mxu0 0.0
    %3505 = vmatprep.subr.mxu0 0.0
    %3506 = vmatpush1.msra.mxu0 0.0
    %3507 = vmatprep.subr.mxu0 0.0
    %3508 = vmatpush1.msra.mxu0 0.0
    %3509 = vmatprep.subr.mxu0 0.0
    %3510 = vmatpush1.msra.mxu0 0.0
    %3511 = vmatprep.subr.mxu0 0.0
    %3512 = vmatpush1.msra.mxu0 0.0
    %3513 = vmatprep.subr.mxu0 0.0
    %3514 = vmatpush1.msra.mxu0 0.0
    %3515 = vmatprep.subr.mxu0 0.0
    %3516 = vmatpush1.msra.mxu0 0.0
    %3517 = vmatprep.subr.mxu0 0.0
    %3518 = vmatpush1.msra.mxu0 0.0
    %3519 = vmatprep.subr.mxu0 0.0
    %3520 = vmatpush1.msra.mxu0 0.0
    %3521 = vmatprep.subr.mxu0 0.0
    %3522 = vmatpush1.msra.mxu0 0.0
    %3523 = vmatprep.subr.mxu0 0.0
    %3524 = vmatpush1.msra.mxu0 0.0
    %3525 = vmatprep.subr.mxu0 0.0
    %3526 = vmatpush1.msra.mxu0 0.0
    %3527 = vmatprep.subr.mxu0 0.0
    %3528 = vmatpush1.msra.mxu0 0.0
    %3529 = vmatprep.subr.mxu0 0.0
    %3530 = vmatpush1.msra.mxu0 0.0
    %3531 = vmatprep.subr.mxu0 0.0
    %3532 = vmatpush1.msra.mxu0 0.0
    %3533 = vmatprep.subr.mxu0 0.0
    %3534 = vmatpush1.msra.mxu0 0.0
    %3535 = vmatprep.subr.mxu0 0.0
    %3536 = vmatpush1.msra.mxu0 0.0
    %3537 = vmatprep.subr.mxu0 0.0
    %3538 = vmatpush1.msra.mxu0 0.0
    %3539 = vmatprep.subr.mxu0 0.0
    %3540 = vmatpush1.msra.mxu0 0.0
    %3541 = vmatprep.subr.mxu0 0.0
    %3542 = vmatpush1.msra.mxu0 0.0
    %3543 = vmatprep.subr.mxu0 0.0
    %3544 = vmatpush1.msra.mxu0 0.0
    %3545 = vmatprep.subr.mxu0 0.0
    %3546 = vmatpush1.msra.mxu0 0.0
    %3547 = vmatprep.subr.mxu0 0.0
    %3548 = vmatpush1.msra.mxu0 0.0
    %3549 = vmatprep.subr.mxu0 0.0
    %3550 = vmatpush1.msra.mxu0 0.0
    %3551 = vmatprep.subr.mxu0 0.0
    %3552 = vmatpush1.msra.mxu0 0.0
    %3553 = vmatprep.subr.mxu0 0.0
    %3554 = vmatpush1.msra.mxu0 0.0
    %3555 = vmatprep.mubr.f32.mxu0 0.0
    %3556 = vmatmul.mubr.f32.gmra.mrb[0].mxu0 %v3486
    %v3557 = vpop.f32.mrb[0].mxu0
    %v3558 = vadd.f32 %v3484, %v3557
    %v3559 = vpop.f32.mrb[0].mxu0
    %3560 = vmatprep.mubr.f32.mxu0 0.0
    %3561 = vmatmul.mubr.f32.gmra.mrb[0].mxu0 %v3489
    %v3562 = vpop.f32.mrb[0].mxu0
    %v3563 = vadd.f32 %v3484, %v3562
    %v3564 = vpop.f32.mrb[0].mxu0
    %3565 = vdwg.mxu0
    %v3566 = vmax.f32 %v3558, 0.0
    %v3567 = vmax.f32 %v3563, 0.0
    %3569 = vrot.lane.b32.xlu0 %v3484, 64
    %v3570 = vpop.permute.xlu0 %3569
    %v3573 = vsel %vm1730, %v3566, 0
    %v3576 = vsel %vm1730, %v3567, 0
    %3578 = vmatprep.subr.mxu0 0.0
    %3579 = vmatpush1.msra.mxu0 %v1898
    %3580 = vmatprep.subr.mxu0 0.0
    %3581 = vmatpush1.msra.mxu0 %v1899
    %3582 = vmatprep.subr.mxu0 0.0
    %3583 = vmatpush1.msra.mxu0 %v1900
    %3584 = vmatprep.subr.mxu0 0.0
    %3585 = vmatpush1.msra.mxu0 %v1901
    %3586 = vmatprep.subr.mxu0 0.0
    %3587 = vmatpush1.msra.mxu0 %v1902
    %3588 = vmatprep.subr.mxu0 0.0
    %3589 = vmatpush1.msra.mxu0 %v1903
    %3590 = vmatprep.subr.mxu0 0.0
    %3591 = vmatpush1.msra.mxu0 %v1904
    %3592 = vmatprep.subr.mxu0 0.0
    %3593 = vmatpush1.msra.mxu0 %v1905
    %3594 = vmatprep.subr.mxu0 0.0
    %3595 = vmatpush1.msra.mxu0 0.0
    %3596 = vmatprep.subr.mxu0 0.0
    %3597 = vmatpush1.msra.mxu0 0.0
    %3598 = vmatprep.subr.mxu0 0.0
    %3599 = vmatpush1.msra.mxu0 0.0
    %3600 = vmatprep.subr.mxu0 0.0
    %3601 = vmatpush1.msra.mxu0 0.0
    %3602 = vmatprep.subr.mxu0 0.0
    %3603 = vmatpush1.msra.mxu0 0.0
    %3604 = vmatprep.subr.mxu0 0.0
    %3605 = vmatpush1.msra.mxu0 0.0
    %3606 = vmatprep.subr.mxu0 0.0
    %3607 = vmatpush1.msra.mxu0 0.0
    %3608 = vmatprep.subr.mxu0 0.0
    %3609 = vmatpush1.msra.mxu0 0.0
    %3610 = vmatprep.subr.mxu0 0.0
    %3611 = vmatpush1.msra.mxu0 0.0
    %3612 = vmatprep.subr.mxu0 0.0
    %3613 = vmatpush1.msra.mxu0 0.0
    %3614 = vmatprep.subr.mxu0 0.0
    %3615 = vmatpush1.msra.mxu0 0.0
    %3616 = vmatprep.subr.mxu0 0.0
    %3617 = vmatpush1.msra.mxu0 0.0
    %3618 = vmatprep.subr.mxu0 0.0
    %3619 = vmatpush1.msra.mxu0 0.0
    %3620 = vmatprep.subr.mxu0 0.0
    %3621 = vmatpush1.msra.mxu0 0.0
    %3622 = vmatprep.subr.mxu0 0.0
    %3623 = vmatpush1.msra.mxu0 0.0
    %3624 = vmatprep.subr.mxu0 0.0
    %3625 = vmatpush1.msra.mxu0 0.0
    %3626 = vmatprep.subr.mxu0 0.0
    %3627 = vmatpush1.msra.mxu0 0.0
    %3628 = vmatprep.subr.mxu0 0.0
    %3629 = vmatpush1.msra.mxu0 0.0
    %3630 = vmatprep.subr.mxu0 0.0
    %3631 = vmatpush1.msra.mxu0 0.0
    %3632 = vmatprep.subr.mxu0 0.0
    %3633 = vmatpush1.msra.mxu0 0.0
    %3634 = vmatprep.subr.mxu0 0.0
    %3635 = vmatpush1.msra.mxu0 0.0
    %3636 = vmatprep.subr.mxu0 0.0
    %3637 = vmatpush1.msra.mxu0 0.0
    %3638 = vmatprep.subr.mxu0 0.0
    %3639 = vmatpush1.msra.mxu0 0.0
    %3640 = vmatprep.subr.mxu0 0.0
    %3641 = vmatpush1.msra.mxu0 0.0
    %3642 = vmatprep.mubr.f32.mxu0 0.0
    %3643 = vmatmul.mubr.f32.gmra.mrb[0].mxu0 %v3573
    %v3644 = vpop.f32.mrb[0].mxu0
    %v3645 = vadd.f32 %v3570, %v3644
    %v3646 = vpop.f32.mrb[0].mxu0
    %3647 = vmatprep.mubr.f32.mxu0 0.0
    %3648 = vmatmul.mubr.f32.gmra.mrb[0].mxu0 %v3576
    %v3649 = vpop.f32.mrb[0].mxu0
    %v3650 = vadd.f32 %v3570, %v3649
    %v3651 = vpop.f32.mrb[0].mxu0
    %3652 = vdwg.mxu0
    %v3653 = vadd.f32 %v3479, %v3645
    %v3654 = vadd.f32 %v3480, %v3650
    %v3655 = vsel %vm64, %v3653, 0.0
    %3656 = vadd.xlane.f32.xlu0 %v3655
    %v3657 = vpop.xlane.xlu0 %3656
    %v3658 = vsel %vm64, %v3654, 0.0
    %3659 = vadd.xlane.f32.xlu0 %v3658
    %v3660 = vpop.xlane.xlu0 %3659
    %v3661 = vmul.f32 %v3657, %v1606
    %v3662 = vmul.f32 %v3660, %v1606
    %v3663 = vsub.f32 %v3653, %v3661
    %v3664 = vsub.f32 %v3654, %v3662
    %v3665 = vmul.f32 %v3663, %v3663
    %v3666 = vmul.f32 %v3664, %v3664
    %v3667 = vsel %vm64, %v3665, 0.0
    %3668 = vadd.xlane.f32.xlu0 %v3667
    %v3669 = vpop.xlane.xlu0 %3668
    %v3670 = vsel %vm64, %v3666, 0.0
    %3671 = vadd.xlane.f32.xlu0 %v3670
    %v3672 = vpop.xlane.xlu0 %3671
    %v3673 = vmul.f32 %v3669, %v1606
    %v3674 = vmul.f32 %v3672, %v1606
    %v3675 = vadd.f32 %v3673, 1e-05
    %v3676 = vadd.f32 %v3674, 1e-05
    %v3677 = vrsqrt.pop %v3675
    %v3678 = vrsqrt.pop %v3676
    %v3679 = vmul.f32 %v3663, %v3677
    %v3680 = vmul.f32 %v3664, %v3678
    %3681 = vrot.lane.b32.xlu0 %v3472, 64
    %v3682 = vpop.permute.xlu0 %3681
    %v3684 = vmul.f32 %v3679, %v3682
    %v3685 = vmul.f32 %v3680, %v3682
    %3686 = vrot.lane.b32.xlu0 %v3472, 32
    %v3687 = vpop.permute.xlu0 %3686
    %v3689 = vadd.f32 %v3684, %v3687
    %v3690 = vadd.f32 %v3685, %v3687
    %v3691 = vadd.f32 %v1888, %v3689
    %v3692 = vadd.f32 %v1889, %v3690
    %v3693 = vsel %vm64, %v3691, 0.0
    %3694 = vadd.xlane.f32.xlu0 %v3693
    %v3695 = vpop.xlane.xlu0 %3694
    %v3696 = vsel %vm64, %v3692, 0.0
    %3697 = vadd.xlane.f32.xlu0 %v3696
    %v3698 = vpop.xlane.xlu0 %3697
    %v3699 = vmul.f32 %v3695, %v1606
    %v3700 = vmul.f32 %v3698, %v1606
    %v3701 = vsub.f32 %v3691, %v3699
    %v3702 = vsub.f32 %v3692, %v3700
    %v3703 = vmul.f32 %v3701, %v3701
    %v3704 = vmul.f32 %v3702, %v3702
    %v3705 = vsel %vm64, %v3703, 0.0
    %3706 = vadd.xlane.f32.xlu0 %v3705
    %v3707 = vpop.xlane.xlu0 %3706
    %v3708 = vsel %vm64, %v3704, 0.0
    %3709 = vadd.xlane.f32.xlu0 %v3708
    %v3710 = vpop.xlane.xlu0 %3709
    %v3711 = vmul.f32 %v3707, %v1606
    %v3712 = vmul.f32 %v3710, %v1606
    %v3713 = vadd.f32 %v3711, 1e-05
    %v3714 = vadd.f32 %v3712, 1e-05
    %v3715 = vrsqrt.pop %v3713
    %v3716 = vrsqrt.pop %v3714
    %v3717 = vmul.f32 %v3701, %v3715
    %v3718 = vmul.f32 %v3702, %v3716
    %v3719 = vmul.f32 %v3717, %v1881
    %v3720 = vmul.f32 %v3718, %v1881
    %v3721 = vadd.f32 %v3719, %v1886
    %v3722 = vadd.f32 %v3720, %v1886
    %3723 = vst.msk [vmem:[#allocation7] sm:$0xff] %vm64, %v3721
    %3724 = vst.msk [vmem:[#allocation7 + $0x8] sm:$0xff] %vm64, %v3722
    // Predicated region
    $region18: #{fused_encoder.1} parent=1 // pred_check
      _
    $region19: #{fused_encoder.1} parent=1 // pred_check_branch
      %3726 = sbr.rel (0) target = $region21
    $region20: #{fused_encoder.1} parent=1 // pred_region
      %s3728 = ssub.s32 256, 256
      %3729 = vsyncadd [#allocation4], %s3728
      %s3730 = sshll.u32 [#allocation7], 4
      %s3731 = int_to_ptr.vmem [resolvable:$true] %s3730
      %3736 = dma.vmem_to_hbm [thread:$0]  %s3731, 256, %s2, [#allocation4], 128, 128, 8
    $region21: #{fused_encoder.1} parent=1 // pred_fallthru
      _
    // Predicated region
    $region22: #{fused_encoder.1} parent=1 // pred_check
      _
    $region23: #{fused_encoder.1} parent=1 // pred_check_branch
      %3738 = sbr.rel (0) target = $region25
    $region24: #{fused_encoder.1} parent=1 // pred_region
      %3739 = dma.done [#allocation4], 256
    $region25: #{fused_encoder.1} parent=1 // pred_fallthru
      _
    %3740 = vsyncpa [#allocation3], 1
    %3741 = vsyncpa [#allocation6], 1
    %3742 = vsyncpa [#allocation4], 1

</llo_original>
